<compile_context>
chip_gen: v6e
topology: v6e:2x2x1
jax: 0.10.0
libtpu: 0.0.40
codegen_flags: <defaults>
</compile_context>

<pallas_src>
import functools

import jax
import jax.numpy as jnp
from jax import lax
from jax.experimental import pallas as pl
from jax.experimental.pallas import tpu as pltpu

_EPS = 1e-5


def _convblock_kernel(*refs, pool, shortcut, N, H, W, Cin, Cout, cdt,
                      cout_major):
    it = iter(refs)
    x_ref = next(it)
    w1_ref, b1_ref, g1_ref, be1_ref = next(it), next(it), next(it), next(it)
    w2_ref, b2_ref, g2_ref, be2_ref = next(it), next(it), next(it), next(it)
    if shortcut:
        gs_ref, bes_ref = next(it), next(it)
    o_ref = next(it)
    pad1_ref, pad2_ref = next(it), next(it)

    Hp, Wp = (H // 2, W // 2) if pool else (H, W)
    M = N * Hp * Wp
    inv_m = 1.0 / M
    ctot = 2 * Cout if shortcut else Cout

    # ---- zero only the 1-element halo of the padded scratches ---------------
    def zero_halo(pad_ref, c):
        row = jnp.zeros((N, 1, Wp + 2, c), cdt)
        col = jnp.zeros((N, Hp + 2, 1, c), cdt)
        pad_ref[:, 0:1, :, :] = row
        pad_ref[:, Hp + 1:Hp + 2, :, :] = row
        pad_ref[:, :, 0:1, :] = col
        pad_ref[:, :, Wp + 1:Wp + 2, :] = col

    zero_halo(pad1_ref, Cin)
    zero_halo(pad2_ref, Cout)

    # ---- optional 2x2 max-pool (stride 2), done in the compute dtype --------
    if pool:
        left = x_ref[:, :, pl.ds(0, Wp, stride=2), :]      # (N, H, Wp, Cin)
        right = x_ref[:, :, pl.ds(1, Wp, stride=2), :]
        xw = jnp.maximum(left, right)
        if H % 2:                                           # floor, like MaxPool2d
            xw = xw[:, :2 * Hp]
        xr = xw.reshape(N, Hp, 2, Wp, Cin)
        pooled = jnp.maximum(xr[:, :, 0:1], xr[:, :, 1:2]).reshape(N, Hp, Wp, Cin)
        pad1_ref[:, 1:Hp + 1, 1:Wp + 1, :] = pooled
    else:
        pad1_ref[:, 1:Hp + 1, 1:Wp + 1, :] = x_ref[...]

    # ---- 3x3 conv: 9 accumulating K=Cin matmuls (no im2col scratch) ---------
    def conv3x3(pad_ref, w_ref, b_ref, cin, cw):
        acc = jnp.broadcast_to(b_ref[...], (M, cw)).astype(jnp.float32)
        for dy in range(3):
            for dx in range(3):
                t = dy * 3 + dx
                tap = pad_ref[:, dy:dy + Hp, dx:dx + Wp, :].reshape(M, cin)
                acc = acc + jnp.dot(tap, w_ref[t],
                                    preferred_element_type=jnp.float32)
        return acc                                          # (M, cw) f32

    # ---- BatchNorm, training-mode (batch mean, biased var), two-pass var ----
    def batchnorm(y, g_ref, b_ref):
        mean = jnp.sum(y, axis=0, keepdims=True) * inv_m
        d = y - mean
        var = jnp.sum(d * d, axis=0, keepdims=True) * inv_m
        return d * lax.rsqrt(var + _EPS) * g_ref[...] + b_ref[...]

    # conv1 (+ fused shortcut 1x1 in the extra Cout columns) -> ReLU -> BN1
    y_all = conv3x3(pad1_ref, w1_ref, b1_ref, Cin, ctot)
    y1 = y_all[:, :Cout] if shortcut else y_all
    y1 = batchnorm(jnp.maximum(y1, 0.0), g1_ref, be1_ref)
    if shortcut:
        s_bn = batchnorm(y_all[:, Cout:], gs_ref, bes_ref)  # no ReLU on shortcut

    # conv2 -> ReLU -> BN2
    pad2_ref[:, 1:Hp + 1, 1:Wp + 1, :] = y1.reshape(N, Hp, Wp, Cout).astype(cdt)
    y2 = conv3x3(pad2_ref, w2_ref, b2_ref, Cout, Cout)
    y2 = batchnorm(jnp.maximum(y2, 0.0), g2_ref, be2_ref)
    if shortcut:
        y2 = y2 + s_bn

    if cout_major:
        # Cout < 128: lane-dense (Cout, M) store (M on lanes)
        o_ref[...] = y2.T.astype(o_ref.dtype)
    else:
        # Cout >= 128: already lane-dense as (M, Cout); skip the XLU transpose
        o_ref[...] = y2.astype(o_ref.dtype)


def _full_spec(shape):
    nd = len(shape)
    return pl.BlockSpec(shape, lambda i: (0,) * nd)


def _vmem_limit_bytes():
    cap = 64 * 1024 * 1024
    try:
        cap = int(pltpu.get_tpu_info().vmem_capacity_bytes)
    except Exception:
        pass
    return max(32 * 1024 * 1024, cap - 16 * 1024 * 1024)


def convblock_forward(x_nchw, params, *, pool=True, shortcut=False,
                      compute_dtype=jnp.bfloat16, out_dtype=None):
    if out_dtype is None:
        out_dtype = compute_dtype
    N, Cin, H, W = x_nchw.shape
    Cout = params["w1"].shape[0]
    Hp, Wp = (H // 2, W // 2) if pool else (H, W)
    M = N * Hp * Wp
    Ctot = 2 * Cout if shortcut else Cout
    cout_major = Cout < 128

    # NCHW -> NHWC (channels on lanes), already in the compute dtype
    x = jnp.transpose(x_nchw, (0, 2, 3, 1)).astype(compute_dtype)

    def w3x3(w, extra_center=None):
        # torch (O, I, 3, 3) -> (9, I, O[, +O]); tap order t = dy*3 + dx
        o, i = w.shape[0], w.shape[1]
        wt = jnp.transpose(w, (2, 3, 1, 0)).reshape(9, i, o)
        if extra_center is not None:                 # fold shortcut 1x1 weight
            sc = jnp.zeros((9, i, o), wt.dtype).at[4].set(extra_center)
            wt = jnp.concatenate([wt, sc], axis=-1)  # (9, i, 2*O)
        return wt.astype(compute_dtype)

    vec = lambda v, c: v.reshape(1, c).astype(jnp.float32)

    ws_center = params["ws"].reshape(Cout, Cin).T if shortcut else None
    b1 = params["b1"]
    if shortcut:                                     # conv1x1 has no bias
        b1 = jnp.concatenate([b1, jnp.zeros((Cout,), b1.dtype)])

    inputs = [x,
              w3x3(params["w1"], ws_center), vec(b1, Ctot),
              vec(params["g1"], Cout), vec(params["beta1"], Cout),
              w3x3(params["w2"]), vec(params["b2"], Cout),
              vec(params["g2"], Cout), vec(params["beta2"], Cout)]
    if shortcut:
        inputs += [vec(params["gs"], Cout), vec(params["betas"], Cout)]

    in_specs = [_full_spec(a.shape) for a in inputs]
    if cout_major:
        out_shape = jax.ShapeDtypeStruct((Cout, M), out_dtype)
        out_spec = pl.BlockSpec((Cout, M), lambda i: (0, 0))
    else:
        out_shape = jax.ShapeDtypeStruct((M, Cout), out_dtype)
        out_spec = pl.BlockSpec((M, Cout), lambda i: (0, 0))

    scratch = [pltpu.VMEM((N, Hp + 2, Wp + 2, Cin), compute_dtype),   # padded (pooled) input
               pltpu.VMEM((N, Hp + 2, Wp + 2, Cout), compute_dtype)]  # padded BN1 output

    kernel = functools.partial(_convblock_kernel, pool=pool, shortcut=shortcut,
                               N=N, H=H, W=W, Cin=Cin, Cout=Cout,
                               cdt=compute_dtype, cout_major=cout_major)

    out = pl.pallas_call(
        kernel,
        out_shape=out_shape,
        grid_spec=pltpu.PrefetchScalarGridSpec(
            num_scalar_prefetch=0,
            grid=(1,),
            in_specs=in_specs,
            out_specs=out_spec,
            scratch_shapes=scratch),
        compiler_params=pltpu.CompilerParams(
            dimension_semantics=("arbitrary",),
            vmem_limit_bytes=_vmem_limit_bytes()),
    )(*inputs)

    if cout_major:
        return jnp.transpose(out.reshape(Cout, N, Hp, Wp), (1, 0, 2, 3))
    return jnp.transpose(out.reshape(N, Hp, Wp, Cout), (0, 3, 1, 2))


# ---------------- pure-JAX reference (for correctness check) ----------------
def convblock_ref(x, params, *, pool=True, shortcut=False,
                  compute_dtype=jnp.float32):
    x = x.astype(jnp.float32)
    N, C, H, W = x.shape
    if pool:
        x = x.reshape(N, C, H // 2, 2, W // 2, 2).max(axis=(3, 5))

    def conv(z, w, pad):
        return lax.conv_general_dilated(
            z.astype(compute_dtype), w.astype(compute_dtype), (1, 1),
            [(pad, pad), (pad, pad)],
            dimension_numbers=("NCHW", "OIHW", "NCHW"),
            preferred_element_type=jnp.float32)

    def bn(z, g, b):
        m = z.mean(axis=(0, 2, 3), keepdims=True)
        v = ((z - m) ** 2).mean(axis=(0, 2, 3), keepdims=True)
        return ((z - m) * lax.rsqrt(v + _EPS) * g.reshape(1, -1, 1, 1)
                + b.reshape(1, -1, 1, 1))

    y = conv(x, params["w1"], 1) + params["b1"].reshape(1, -1, 1, 1)
    y = bn(jnp.maximum(y, 0.0), params["g1"], params["beta1"])
    y = conv(y, params["w2"], 1) + params["b2"].reshape(1, -1, 1, 1)
    y = bn(jnp.maximum(y, 0.0), params["g2"], params["beta2"])
    if shortcut:
        y = y + bn(conv(x, params["ws"], 0), params["gs"], params["betas"])
    return y


if __name__ == "__main__":
    key = jax.random.PRNGKey(0)
    N, Cin, Cout, H, W = 2, 4, 8, 16, 16
    ks = jax.random.split(key, 12)
    params = {
        "w1": 0.1 * jax.random.normal(ks[0], (Cout, Cin, 3, 3), jnp.float32),
        "b1": 0.1 * jax.random.normal(ks[1], (Cout,), jnp.float32),
        "g1": 1.0 + 0.1 * jax.random.normal(ks[2], (Cout,), jnp.float32),
        "beta1": 0.1 * jax.random.normal(ks[3], (Cout,), jnp.float32),
        "w2": 0.1 * jax.random.normal(ks[4], (Cout, Cout, 3, 3), jnp.float32),
        "b2": 0.1 * jax.random.normal(ks[5], (Cout,), jnp.float32),
        "g2": 1.0 + 0.1 * jax.random.normal(ks[6], (Cout,), jnp.float32),
        "beta2": 0.1 * jax.random.normal(ks[7], (Cout,), jnp.float32),
        "ws": 0.1 * jax.random.normal(ks[8], (Cout, Cin, 1, 1), jnp.float32),
        "gs": 1.0 + 0.1 * jax.random.normal(ks[9], (Cout,), jnp.float32),
        "betas": 0.1 * jax.random.normal(ks[10], (Cout,), jnp.float32),
    }
    x = jax.random.normal(ks[11], (N, Cin, H, W), jnp.float32)

    for pool, shortcut in [(True, False), (True, True),
                           (False, False), (False, True)]:
        # exact-semantics check: f32 MXU path + f32 output vs f32 reference
        out = convblock_forward(x, params, pool=pool, shortcut=shortcut,
                                compute_dtype=jnp.float32)
        out = jax.block_until_ready(out)
        ref = convblock_ref(x, params, pool=pool, shortcut=shortcut,
                            compute_dtype=jnp.float32)
        assert out.shape == ref.shape, (out.shape, ref.shape)
        err = float(jnp.max(jnp.abs(out - ref)))
        assert err < 1e-3, f"f32 mismatch pool={pool} shortcut={shortcut}: {err}"

        # performance path: bf16 MXU operands / f32 accumulation / bf16 output,
        # checked against a reference using the same bf16 operand precision.
        out_bf = convblock_forward(x, params, pool=pool, shortcut=shortcut,
                                   compute_dtype=jnp.bfloat16)
        out_bf = jax.block_until_ready(out_bf)
        ref_bf = convblock_ref(x, params, pool=pool, shortcut=shortcut,
                               compute_dtype=jnp.bfloat16)
        err_bf = float(jnp.max(jnp.abs(out_bf.astype(jnp.float32) - ref_bf)))
        assert err_bf < 5e-2, f"bf16 mismatch pool={pool} shortcut={shortcut}: {err_bf}"

    print("KERNEL_OK")
</pallas_src>

<mosaic_0001>
module attributes {stable_mosaic.version = 11 : i64} {
  func.func @_convblock_kernel(%arg0: i32, %arg1: memref<2x16x16x4xf32, #tpu.memory_space<vmem>>, %arg2: memref<9x4x8xf32, #tpu.memory_space<vmem>>, %arg3: memref<1x8xf32, #tpu.memory_space<vmem>>, %arg4: memref<1x8xf32, #tpu.memory_space<vmem>>, %arg5: memref<1x8xf32, #tpu.memory_space<vmem>>, %arg6: memref<9x8x8xf32, #tpu.memory_space<vmem>>, %arg7: memref<1x8xf32, #tpu.memory_space<vmem>>, %arg8: memref<1x8xf32, #tpu.memory_space<vmem>>, %arg9: memref<1x8xf32, #tpu.memory_space<vmem>>, %arg10: memref<8x128xf32, #tpu.memory_space<vmem>>, %arg11: memref<2x10x10x4xf32, #tpu.memory_space<vmem>>, %arg12: memref<2x10x10x8xf32, #tpu.memory_space<vmem>>) attributes {dimension_semantics = [#tpu.dimension_semantics<arbitrary>], iteration_bounds = array<i64: 1>, scalar_prefetch = 0 : i64, scratch_operands = 2 : i64, tpu.core_type = #tpu.core_type<tc>, window_params = [{pipeline_mode = #tpu.pipeline_mode<synchronous>, transform_indices = @transform_0, window_bounds = array<i64: 2, 16, 16, 4>}, {pipeline_mode = #tpu.pipeline_mode<synchronous>, transform_indices = @transform_1, window_bounds = array<i64: 9, 4, 8>}, {pipeline_mode = #tpu.pipeline_mode<synchronous>, transform_indices = @transform_2, window_bounds = array<i64: 1, 8>}, {pipeline_mode = #tpu.pipeline_mode<synchronous>, transform_indices = @transform_3, window_bounds = array<i64: 1, 8>}, {pipeline_mode = #tpu.pipeline_mode<synchronous>, transform_indices = @transform_4, window_bounds = array<i64: 1, 8>}, {pipeline_mode = #tpu.pipeline_mode<synchronous>, transform_indices = @transform_5, window_bounds = array<i64: 9, 8, 8>}, {pipeline_mode = #tpu.pipeline_mode<synchronous>, transform_indices = @transform_6, window_bounds = array<i64: 1, 8>}, {pipeline_mode = #tpu.pipeline_mode<synchronous>, transform_indices = @transform_7, window_bounds = array<i64: 1, 8>}, {pipeline_mode = #tpu.pipeline_mode<synchronous>, transform_indices = @transform_8, window_bounds = array<i64: 1, 8>}, {pipeline_mode = #tpu.pipeline_mode<synchronous>, transform_indices = @transform_9, window_bounds = array<i64: 8, 128>}]} {
    %cst = arith.constant 0.000000e+00 : f32
    %0 = vector.broadcast %cst : f32 to vector<2x1x10x4xf32>
    %cst_0 = arith.constant 0.000000e+00 : f32
    %1 = vector.broadcast %cst_0 : f32 to vector<2x10x1x4xf32>
    %c0 = arith.constant 0 : index
    %c0_1 = arith.constant 0 : index
    %c0_2 = arith.constant 0 : index
    %c0_3 = arith.constant 0 : index
    %2 = vector.load %arg11[%c0, %c0_1, %c0_2, %c0_3] : memref<2x10x10x4xf32, #tpu.memory_space<vmem>>, vector<2x1x10x4xf32>
    tpu.vector_store %arg11[%c0, %c0_1, %c0_2, %c0_3], %0 {strides = array<i32>} : memref<2x10x10x4xf32, #tpu.memory_space<vmem>>, vector<2x1x10x4xf32>,
    %c0_4 = arith.constant 0 : index
    %c9 = arith.constant 9 : index
    %c0_5 = arith.constant 0 : index
    %c0_6 = arith.constant 0 : index
    %3 = vector.load %arg11[%c0_4, %c9, %c0_5, %c0_6] : memref<2x10x10x4xf32, #tpu.memory_space<vmem>>, vector<2x1x10x4xf32>
    tpu.vector_store %arg11[%c0_4, %c9, %c0_5, %c0_6], %0 {strides = array<i32>} : memref<2x10x10x4xf32, #tpu.memory_space<vmem>>, vector<2x1x10x4xf32>,
    %c0_7 = arith.constant 0 : index
    %c0_8 = arith.constant 0 : index
    %c0_9 = arith.constant 0 : index
    %c0_10 = arith.constant 0 : index
    %4 = vector.load %arg11[%c0_7, %c0_8, %c0_9, %c0_10] : memref<2x10x10x4xf32, #tpu.memory_space<vmem>>, vector<2x10x1x4xf32>
    tpu.vector_store %arg11[%c0_7, %c0_8, %c0_9, %c0_10], %1 {strides = array<i32>} : memref<2x10x10x4xf32, #tpu.memory_space<vmem>>, vector<2x10x1x4xf32>,
    %c0_11 = arith.constant 0 : index
    %c0_12 = arith.constant 0 : index
    %c9_13 = arith.constant 9 : index
    %c0_14 = arith.constant 0 : index
    %5 = vector.load %arg11[%c0_11, %c0_12, %c9_13, %c0_14] : memref<2x10x10x4xf32, #tpu.memory_space<vmem>>, vector<2x10x1x4xf32>
    tpu.vector_store %arg11[%c0_11, %c0_12, %c9_13, %c0_14], %1 {strides = array<i32>} : memref<2x10x10x4xf32, #tpu.memory_space<vmem>>, vector<2x10x1x4xf32>,
    %cst_15 = arith.constant 0.000000e+00 : f32
    %6 = vector.broadcast %cst_15 : f32 to vector<2x1x10x8xf32>
    %cst_16 = arith.constant 0.000000e+00 : f32
    %7 = vector.broadcast %cst_16 : f32 to vector<2x10x1x8xf32>
    %c0_17 = arith.constant 0 : index
    %c0_18 = arith.constant 0 : index
    %c0_19 = arith.constant 0 : index
    %c0_20 = arith.constant 0 : index
    %8 = vector.load %arg12[%c0_17, %c0_18, %c0_19, %c0_20] : memref<2x10x10x8xf32, #tpu.memory_space<vmem>>, vector<2x1x10x8xf32>
    tpu.vector_store %arg12[%c0_17, %c0_18, %c0_19, %c0_20], %6 {strides = array<i32>} : memref<2x10x10x8xf32, #tpu.memory_space<vmem>>, vector<2x1x10x8xf32>,
    %c0_21 = arith.constant 0 : index
    %c9_22 = arith.constant 9 : index
    %c0_23 = arith.constant 0 : index
    %c0_24 = arith.constant 0 : index
    %9 = vector.load %arg12[%c0_21, %c9_22, %c0_23, %c0_24] : memref<2x10x10x8xf32, #tpu.memory_space<vmem>>, vector<2x1x10x8xf32>
    tpu.vector_store %arg12[%c0_21, %c9_22, %c0_23, %c0_24], %6 {strides = array<i32>} : memref<2x10x10x8xf32, #tpu.memory_space<vmem>>, vector<2x1x10x8xf32>,
    %c0_25 = arith.constant 0 : index
    %c0_26 = arith.constant 0 : index
    %c0_27 = arith.constant 0 : index
    %c0_28 = arith.constant 0 : index
    %10 = vector.load %arg12[%c0_25, %c0_26, %c0_27, %c0_28] : memref<2x10x10x8xf32, #tpu.memory_space<vmem>>, vector<2x10x1x8xf32>
    tpu.vector_store %arg12[%c0_25, %c0_26, %c0_27, %c0_28], %7 {strides = array<i32>} : memref<2x10x10x8xf32, #tpu.memory_space<vmem>>, vector<2x10x1x8xf32>,
    %c0_29 = arith.constant 0 : index
    %c0_30 = arith.constant 0 : index
    %c9_31 = arith.constant 9 : index
    %c0_32 = arith.constant 0 : index
    %11 = vector.load %arg12[%c0_29, %c0_30, %c9_31, %c0_32] : memref<2x10x10x8xf32, #tpu.memory_space<vmem>>, vector<2x10x1x8xf32>
    tpu.vector_store %arg12[%c0_29, %c0_30, %c9_31, %c0_32], %7 {strides = array<i32>} : memref<2x10x10x8xf32, #tpu.memory_space<vmem>>, vector<2x10x1x8xf32>,
    %c0_33 = arith.constant 0 : index
    %c0_34 = arith.constant 0 : index
    %c0_35 = arith.constant 0 : index
    %c0_36 = arith.constant 0 : index
    %12 = tpu.strided_load %arg1[%c0_33, %c0_34, %c0_35, %c0_36] {strides = array<i32: 1, 1, 2, 1>} : memref<2x16x16x4xf32, #tpu.memory_space<vmem>>, vector<2x16x8x4xf32>
    %c0_37 = arith.constant 0 : index
    %c0_38 = arith.constant 0 : index
    %c1 = arith.constant 1 : index
    %c0_39 = arith.constant 0 : index
    %13 = tpu.strided_load %arg1[%c0_37, %c0_38, %c1, %c0_39] {strides = array<i32: 1, 1, 2, 1>} : memref<2x16x16x4xf32, #tpu.memory_space<vmem>>, vector<2x16x8x4xf32>
    %14 = arith.maximumf %12, %13 : vector<2x16x8x4xf32>
    %15 = vector.shape_cast %14 : vector<2x16x8x4xf32> to vector<2x8x2x8x4xf32>
    %16 = vector.extract_strided_slice %15 {offsets = [0, 0, 0, 0, 0], sizes = [2, 8, 1, 8, 4], strides = [1, 1, 1, 1, 1]} : vector<2x8x2x8x4xf32> to vector<2x8x1x8x4xf32>
    %17 = vector.extract_strided_slice %15 {offsets = [0, 0, 1, 0, 0], sizes = [2, 8, 1, 8, 4], strides = [1, 1, 1, 1, 1]} : vector<2x8x2x8x4xf32> to vector<2x8x1x8x4xf32>
    %18 = arith.maximumf %16, %17 : vector<2x8x1x8x4xf32>
    %19 = vector.shape_cast %18 : vector<2x8x1x8x4xf32> to vector<2x8x8x4xf32>
    %c0_40 = arith.constant 0 : index
    %c1_41 = arith.constant 1 : index
    %c1_42 = arith.constant 1 : index
    %c0_43 = arith.constant 0 : index
    %20 = vector.load %arg11[%c0_40, %c1_41, %c1_42, %c0_43] : memref<2x10x10x4xf32, #tpu.memory_space<vmem>>, vector<2x8x8x4xf32>
    tpu.vector_store %arg11[%c0_40, %c1_41, %c1_42, %c0_43], %19 {strides = array<i32>} : memref<2x10x10x4xf32, #tpu.memory_space<vmem>>, vector<2x8x8x4xf32>,
    %c0_44 = arith.constant 0 : index
    %c0_45 = arith.constant 0 : index
    %21 = vector.load %arg3[%c0_44, %c0_45] : memref<1x8xf32, #tpu.memory_space<vmem>>, vector<1x8xf32>
    %22 = vector.shape_cast %21 : vector<1x8xf32> to vector<1x8xf32>
    %23 = vector.broadcast %22 : vector<1x8xf32> to vector<128x8xf32>
    %c0_46 = arith.constant 0 : index
    %c0_47 = arith.constant 0 : index
    %c0_48 = arith.constant 0 : index
    %c0_49 = arith.constant 0 : index
    %24 = vector.load %arg11[%c0_46, %c0_47, %c0_48, %c0_49] : memref<2x10x10x4xf32, #tpu.memory_space<vmem>>, vector<2x8x8x4xf32>
    %25 = vector.shape_cast %24 : vector<2x8x8x4xf32> to vector<128x4xf32>
    %c0_50 = arith.constant 0 : index
    %c0_51 = arith.constant 0 : index
    %c0_52 = arith.constant 0 : index
    %26 = vector.load %arg2[%c0_50, %c0_51, %c0_52] : memref<9x4x8xf32, #tpu.memory_space<vmem>>, vector<1x4x8xf32>
    %27 = vector.shape_cast %26 : vector<1x4x8xf32> to vector<4x8xf32>
    %cst_53 = arith.constant dense<0.000000e+00> : vector<128x8xf32>
    %28 = tpu.matmul %25, %27, %cst_53 {dimension_numbers = #tpu.dot_dimension_numbers<[1], [0], [0], [1], [0, 0, 1, 1], [], []>} : vector<128x4xf32>, vector<4x8xf32>, vector<128x8xf32> -> vector<128x8xf32>
    %29 = arith.addf %23, %28 : vector<128x8xf32>
    %c0_54 = arith.constant 0 : index
    %c0_55 = arith.constant 0 : index
    %c1_56 = arith.constant 1 : index
    %c0_57 = arith.constant 0 : index
    %30 = vector.load %arg11[%c0_54, %c0_55, %c1_56, %c0_57] : memref<2x10x10x4xf32, #tpu.memory_space<vmem>>, vector<2x8x8x4xf32>
    %31 = vector.shape_cast %30 : vector<2x8x8x4xf32> to vector<128x4xf32>
    %c1_58 = arith.constant 1 : index
    %c0_59 = arith.constant 0 : index
    %c0_60 = arith.constant 0 : index
    %32 = vector.load %arg2[%c1_58, %c0_59, %c0_60] : memref<9x4x8xf32, #tpu.memory_space<vmem>>, vector<1x4x8xf32>
    %33 = vector.shape_cast %32 : vector<1x4x8xf32> to vector<4x8xf32>
    %cst_61 = arith.constant dense<0.000000e+00> : vector<128x8xf32>
    %34 = tpu.matmul %31, %33, %cst_61 {dimension_numbers = #tpu.dot_dimension_numbers<[1], [0], [0], [1], [0, 0, 1, 1], [], []>} : vector<128x4xf32>, vector<4x8xf32>, vector<128x8xf32> -> vector<128x8xf32>
    %35 = arith.addf %29, %34 : vector<128x8xf32>
    %c0_62 = arith.constant 0 : index
    %c0_63 = arith.constant 0 : index
    %c2 = arith.constant 2 : index
    %c0_64 = arith.constant 0 : index
    %36 = vector.load %arg11[%c0_62, %c0_63, %c2, %c0_64] : memref<2x10x10x4xf32, #tpu.memory_space<vmem>>, vector<2x8x8x4xf32>
    %37 = vector.shape_cast %36 : vector<2x8x8x4xf32> to vector<128x4xf32>
    %c2_65 = arith.constant 2 : index
    %c0_66 = arith.constant 0 : index
    %c0_67 = arith.constant 0 : index
    %38 = vector.load %arg2[%c2_65, %c0_66, %c0_67] : memref<9x4x8xf32, #tpu.memory_space<vmem>>, vector<1x4x8xf32>
    %39 = vector.shape_cast %38 : vector<1x4x8xf32> to vector<4x8xf32>
    %cst_68 = arith.constant dense<0.000000e+00> : vector<128x8xf32>
    %40 = tpu.matmul %37, %39, %cst_68 {dimension_numbers = #tpu.dot_dimension_numbers<[1], [0], [0], [1], [0, 0, 1, 1], [], []>} : vector<128x4xf32>, vector<4x8xf32>, vector<128x8xf32> -> vector<128x8xf32>
    %41 = arith.addf %35, %40 : vector<128x8xf32>
    %c0_69 = arith.constant 0 : index
    %c1_70 = arith.constant 1 : index
    %c0_71 = arith.constant 0 : index
    %c0_72 = arith.constant 0 : index
    %42 = vector.load %arg11[%c0_69, %c1_70, %c0_71, %c0_72] : memref<2x10x10x4xf32, #tpu.memory_space<vmem>>, vector<2x8x8x4xf32>
    %43 = vector.shape_cast %42 : vector<2x8x8x4xf32> to vector<128x4xf32>
    %c3 = arith.constant 3 : index
    %c0_73 = arith.constant 0 : index
    %c0_74 = arith.constant 0 : index
    %44 = vector.load %arg2[%c3, %c0_73, %c0_74] : memref<9x4x8xf32, #tpu.memory_space<vmem>>, vector<1x4x8xf32>
    %45 = vector.shape_cast %44 : vector<1x4x8xf32> to vector<4x8xf32>
    %cst_75 = arith.constant dense<0.000000e+00> : vector<128x8xf32>
    %46 = tpu.matmul %43, %45, %cst_75 {dimension_numbers = #tpu.dot_dimension_numbers<[1], [0], [0], [1], [0, 0, 1, 1], [], []>} : vector<128x4xf32>, vector<4x8xf32>, vector<128x8xf32> -> vector<128x8xf32>
    %47 = arith.addf %41, %46 : vector<128x8xf32>
    %c0_76 = arith.constant 0 : index
    %c1_77 = arith.constant 1 : index
    %c1_78 = arith.constant 1 : index
    %c0_79 = arith.constant 0 : index
    %48 = vector.load %arg11[%c0_76, %c1_77, %c1_78, %c0_79] : memref<2x10x10x4xf32, #tpu.memory_space<vmem>>, vector<2x8x8x4xf32>
    %49 = vector.shape_cast %48 : vector<2x8x8x4xf32> to vector<128x4xf32>
    %c4 = arith.constant 4 : index
    %c0_80 = arith.constant 0 : index
    %c0_81 = arith.constant 0 : index
    %50 = vector.load %arg2[%c4, %c0_80, %c0_81] : memref<9x4x8xf32, #tpu.memory_space<vmem>>, vector<1x4x8xf32>
    %51 = vector.shape_cast %50 : vector<1x4x8xf32> to vector<4x8xf32>
    %cst_82 = arith.constant dense<0.000000e+00> : vector<128x8xf32>
    %52 = tpu.matmul %49, %51, %cst_82 {dimension_numbers = #tpu.dot_dimension_numbers<[1], [0], [0], [1], [0, 0, 1, 1], [], []>} : vector<128x4xf32>, vector<4x8xf32>, vector<128x8xf32> -> vector<128x8xf32>
    %53 = arith.addf %47, %52 : vector<128x8xf32>
    %c0_83 = arith.constant 0 : index
    %c1_84 = arith.constant 1 : index
    %c2_85 = arith.constant 2 : index
    %c0_86 = arith.constant 0 : index
    %54 = vector.load %arg11[%c0_83, %c1_84, %c2_85, %c0_86] : memref<2x10x10x4xf32, #tpu.memory_space<vmem>>, vector<2x8x8x4xf32>
    %55 = vector.shape_cast %54 : vector<2x8x8x4xf32> to vector<128x4xf32>
    %c5 = arith.constant 5 : index
    %c0_87 = arith.constant 0 : index
    %c0_88 = arith.constant 0 : index
    %56 = vector.load %arg2[%c5, %c0_87, %c0_88] : memref<9x4x8xf32, #tpu.memory_space<vmem>>, vector<1x4x8xf32>
    %57 = vector.shape_cast %56 : vector<1x4x8xf32> to vector<4x8xf32>
    %cst_89 = arith.constant dense<0.000000e+00> : vector<128x8xf32>
    %58 = tpu.matmul %55, %57, %cst_89 {dimension_numbers = #tpu.dot_dimension_numbers<[1], [0], [0], [1], [0, 0, 1, 1], [], []>} : vector<128x4xf32>, vector<4x8xf32>, vector<128x8xf32> -> vector<128x8xf32>
    %59 = arith.addf %53, %58 : vector<128x8xf32>
    %c0_90 = arith.constant 0 : index
    %c2_91 = arith.constant 2 : index
    %c0_92 = arith.constant 0 : index
    %c0_93 = arith.constant 0 : index
    %60 = vector.load %arg11[%c0_90, %c2_91, %c0_92, %c0_93] : memref<2x10x10x4xf32, #tpu.memory_space<vmem>>, vector<2x8x8x4xf32>
    %61 = vector.shape_cast %60 : vector<2x8x8x4xf32> to vector<128x4xf32>
    %c6 = arith.constant 6 : index
    %c0_94 = arith.constant 0 : index
    %c0_95 = arith.constant 0 : index
    %62 = vector.load %arg2[%c6, %c0_94, %c0_95] : memref<9x4x8xf32, #tpu.memory_space<vmem>>, vector<1x4x8xf32>
    %63 = vector.shape_cast %62 : vector<1x4x8xf32> to vector<4x8xf32>
    %cst_96 = arith.constant dense<0.000000e+00> : vector<128x8xf32>
    %64 = tpu.matmul %61, %63, %cst_96 {dimension_numbers = #tpu.dot_dimension_numbers<[1], [0], [0], [1], [0, 0, 1, 1], [], []>} : vector<128x4xf32>, vector<4x8xf32>, vector<128x8xf32> -> vector<128x8xf32>
    %65 = arith.addf %59, %64 : vector<128x8xf32>
    %c0_97 = arith.constant 0 : index
    %c2_98 = arith.constant 2 : index
    %c1_99 = arith.constant 1 : index
    %c0_100 = arith.constant 0 : index
    %66 = vector.load %arg11[%c0_97, %c2_98, %c1_99, %c0_100] : memref<2x10x10x4xf32, #tpu.memory_space<vmem>>, vector<2x8x8x4xf32>
    %67 = vector.shape_cast %66 : vector<2x8x8x4xf32> to vector<128x4xf32>
    %c7 = arith.constant 7 : index
    %c0_101 = arith.constant 0 : index
    %c0_102 = arith.constant 0 : index
    %68 = vector.load %arg2[%c7, %c0_101, %c0_102] : memref<9x4x8xf32, #tpu.memory_space<vmem>>, vector<1x4x8xf32>
    %69 = vector.shape_cast %68 : vector<1x4x8xf32> to vector<4x8xf32>
    %cst_103 = arith.constant dense<0.000000e+00> : vector<128x8xf32>
    %70 = tpu.matmul %67, %69, %cst_103 {dimension_numbers = #tpu.dot_dimension_numbers<[1], [0], [0], [1], [0, 0, 1, 1], [], []>} : vector<128x4xf32>, vector<4x8xf32>, vector<128x8xf32> -> vector<128x8xf32>
    %71 = arith.addf %65, %70 : vector<128x8xf32>
    %c0_104 = arith.constant 0 : index
    %c2_105 = arith.constant 2 : index
    %c2_106 = arith.constant 2 : index
    %c0_107 = arith.constant 0 : index
    %72 = vector.load %arg11[%c0_104, %c2_105, %c2_106, %c0_107] : memref<2x10x10x4xf32, #tpu.memory_space<vmem>>, vector<2x8x8x4xf32>
    %73 = vector.shape_cast %72 : vector<2x8x8x4xf32> to vector<128x4xf32>
    %c8 = arith.constant 8 : index
    %c0_108 = arith.constant 0 : index
    %c0_109 = arith.constant 0 : index
    %74 = vector.load %arg2[%c8, %c0_108, %c0_109] : memref<9x4x8xf32, #tpu.memory_space<vmem>>, vector<1x4x8xf32>
    %75 = vector.shape_cast %74 : vector<1x4x8xf32> to vector<4x8xf32>
    %cst_110 = arith.constant dense<0.000000e+00> : vector<128x8xf32>
    %76 = tpu.matmul %73, %75, %cst_110 {dimension_numbers = #tpu.dot_dimension_numbers<[1], [0], [0], [1], [0, 0, 1, 1], [], []>} : vector<128x4xf32>, vector<4x8xf32>, vector<128x8xf32> -> vector<128x8xf32>
    %77 = arith.addf %71, %76 : vector<128x8xf32>
    %cst_111 = arith.constant 0.000000e+00 : f32
    %78 = vector.broadcast %cst_111 : f32 to vector<128x8xf32>
    %79 = arith.maximumf %77, %78 : vector<128x8xf32>
    %cst_112 = arith.constant dense<0.000000e+00> : vector<8xf32>
    %80 = vector.multi_reduction <add>, %79, %cst_112 [0] : vector<128x8xf32> to vector<8xf32>
    %81 = vector.shape_cast %80 : vector<8xf32> to vector<1x8xf32>
    %cst_113 = arith.constant 7.812500e-03 : f32
    %82 = vector.broadcast %cst_113 : f32 to vector<1x8xf32>
    %83 = arith.mulf %81, %82 : vector<1x8xf32>
    %84 = vector.broadcast %83 : vector<1x8xf32> to vector<128x8xf32>
    %85 = arith.subf %79, %84 : vector<128x8xf32>
    %86 = arith.mulf %85, %85 : vector<128x8xf32>
    %cst_114 = arith.constant dense<0.000000e+00> : vector<8xf32>
    %87 = vector.multi_reduction <add>, %86, %cst_114 [0] : vector<128x8xf32> to vector<8xf32>
    %88 = vector.shape_cast %87 : vector<8xf32> to vector<1x8xf32>
    %cst_115 = arith.constant 7.812500e-03 : f32
    %89 = vector.broadcast %cst_115 : f32 to vector<1x8xf32>
    %90 = arith.mulf %88, %89 : vector<1x8xf32>
    %cst_116 = arith.constant 9.99999974E-6 : f32
    %91 = vector.broadcast %cst_116 : f32 to vector<1x8xf32>
    %92 = arith.addf %90, %91 : vector<1x8xf32>
    %93 = math.rsqrt %92 : vector<1x8xf32>
    %94 = vector.broadcast %93 : vector<1x8xf32> to vector<128x8xf32>
    %95 = arith.mulf %85, %94 : vector<128x8xf32>
    %c0_117 = arith.constant 0 : index
    %c0_118 = arith.constant 0 : index
    %96 = vector.load %arg4[%c0_117, %c0_118] : memref<1x8xf32, #tpu.memory_space<vmem>>, vector<1x8xf32>
    %97 = vector.broadcast %96 : vector<1x8xf32> to vector<128x8xf32>
    %98 = arith.mulf %95, %97 : vector<128x8xf32>
    %c0_119 = arith.constant 0 : index
    %c0_120 = arith.constant 0 : index
    %99 = vector.load %arg5[%c0_119, %c0_120] : memref<1x8xf32, #tpu.memory_space<vmem>>, vector<1x8xf32>
    %100 = vector.broadcast %99 : vector<1x8xf32> to vector<128x8xf32>
    %101 = arith.addf %98, %100 : vector<128x8xf32>
    %102 = vector.shape_cast %101 : vector<128x8xf32> to vector<2x8x8x8xf32>
    %c0_121 = arith.constant 0 : index
    %c1_122 = arith.constant 1 : index
    %c1_123 = arith.constant 1 : index
    %c0_124 = arith.constant 0 : index
    %103 = vector.load %arg12[%c0_121, %c1_122, %c1_123, %c0_124] : memref<2x10x10x8xf32, #tpu.memory_space<vmem>>, vector<2x8x8x8xf32>
    tpu.vector_store %arg12[%c0_121, %c1_122, %c1_123, %c0_124], %102 {strides = array<i32>} : memref<2x10x10x8xf32, #tpu.memory_space<vmem>>, vector<2x8x8x8xf32>,
    %c0_125 = arith.constant 0 : index
    %c0_126 = arith.constant 0 : index
    %104 = vector.load %arg7[%c0_125, %c0_126] : memref<1x8xf32, #tpu.memory_space<vmem>>, vector<1x8xf32>
    %105 = vector.shape_cast %104 : vector<1x8xf32> to vector<1x8xf32>
    %106 = vector.broadcast %105 : vector<1x8xf32> to vector<128x8xf32>
    %c0_127 = arith.constant 0 : index
    %c0_128 = arith.constant 0 : index
    %c0_129 = arith.constant 0 : index
    %c0_130 = arith.constant 0 : index
    %107 = vector.load %arg12[%c0_127, %c0_128, %c0_129, %c0_130] : memref<2x10x10x8xf32, #tpu.memory_space<vmem>>, vector<2x8x8x8xf32>
    %108 = vector.shape_cast %107 : vector<2x8x8x8xf32> to vector<128x8xf32>
    %c0_131 = arith.constant 0 : index
    %c0_132 = arith.constant 0 : index
    %c0_133 = arith.constant 0 : index
    %109 = vector.load %arg6[%c0_131, %c0_132, %c0_133] : memref<9x8x8xf32, #tpu.memory_space<vmem>>, vector<1x8x8xf32>
    %110 = vector.shape_cast %109 : vector<1x8x8xf32> to vector<8x8xf32>
    %cst_134 = arith.constant dense<0.000000e+00> : vector<128x8xf32>
    %111 = tpu.matmul %108, %110, %cst_134 {dimension_numbers = #tpu.dot_dimension_numbers<[1], [0], [0], [1], [0, 0, 1, 1], [], []>} : vector<128x8xf32>, vector<8x8xf32>, vector<128x8xf32> -> vector<128x8xf32>
    %112 = arith.addf %106, %111 : vector<128x8xf32>
    %c0_135 = arith.constant 0 : index
    %c0_136 = arith.constant 0 : index
    %c1_137 = arith.constant 1 : index
    %c0_138 = arith.constant 0 : index
    %113 = vector.load %arg12[%c0_135, %c0_136, %c1_137, %c0_138] : memref<2x10x10x8xf32, #tpu.memory_space<vmem>>, vector<2x8x8x8xf32>
    %114 = vector.shape_cast %113 : vector<2x8x8x8xf32> to vector<128x8xf32>
    %c1_139 = arith.constant 1 : index
    %c0_140 = arith.constant 0 : index
    %c0_141 = arith.constant 0 : index
    %115 = vector.load %arg6[%c1_139, %c0_140, %c0_141] : memref<9x8x8xf32, #tpu.memory_space<vmem>>, vector<1x8x8xf32>
    %116 = vector.shape_cast %115 : vector<1x8x8xf32> to vector<8x8xf32>
    %cst_142 = arith.constant dense<0.000000e+00> : vector<128x8xf32>
    %117 = tpu.matmul %114, %116, %cst_142 {dimension_numbers = #tpu.dot_dimension_numbers<[1], [0], [0], [1], [0, 0, 1, 1], [], []>} : vector<128x8xf32>, vector<8x8xf32>, vector<128x8xf32> -> vector<128x8xf32>
    %118 = arith.addf %112, %117 : vector<128x8xf32>
    %c0_143 = arith.constant 0 : index
    %c0_144 = arith.constant 0 : index
    %c2_145 = arith.constant 2 : index
    %c0_146 = arith.constant 0 : index
    %119 = vector.load %arg12[%c0_143, %c0_144, %c2_145, %c0_146] : memref<2x10x10x8xf32, #tpu.memory_space<vmem>>, vector<2x8x8x8xf32>
    %120 = vector.shape_cast %119 : vector<2x8x8x8xf32> to vector<128x8xf32>
    %c2_147 = arith.constant 2 : index
    %c0_148 = arith.constant 0 : index
    %c0_149 = arith.constant 0 : index
    %121 = vector.load %arg6[%c2_147, %c0_148, %c0_149] : memref<9x8x8xf32, #tpu.memory_space<vmem>>, vector<1x8x8xf32>
    %122 = vector.shape_cast %121 : vector<1x8x8xf32> to vector<8x8xf32>
    %cst_150 = arith.constant dense<0.000000e+00> : vector<128x8xf32>
    %123 = tpu.matmul %120, %122, %cst_150 {dimension_numbers = #tpu.dot_dimension_numbers<[1], [0], [0], [1], [0, 0, 1, 1], [], []>} : vector<128x8xf32>, vector<8x8xf32>, vector<128x8xf32> -> vector<128x8xf32>
    %124 = arith.addf %118, %123 : vector<128x8xf32>
    %c0_151 = arith.constant 0 : index
    %c1_152 = arith.constant 1 : index
    %c0_153 = arith.constant 0 : index
    %c0_154 = arith.constant 0 : index
    %125 = vector.load %arg12[%c0_151, %c1_152, %c0_153, %c0_154] : memref<2x10x10x8xf32, #tpu.memory_space<vmem>>, vector<2x8x8x8xf32>
    %126 = vector.shape_cast %125 : vector<2x8x8x8xf32> to vector<128x8xf32>
    %c3_155 = arith.constant 3 : index
    %c0_156 = arith.constant 0 : index
    %c0_157 = arith.constant 0 : index
    %127 = vector.load %arg6[%c3_155, %c0_156, %c0_157] : memref<9x8x8xf32, #tpu.memory_space<vmem>>, vector<1x8x8xf32>
    %128 = vector.shape_cast %127 : vector<1x8x8xf32> to vector<8x8xf32>
    %cst_158 = arith.constant dense<0.000000e+00> : vector<128x8xf32>
    %129 = tpu.matmul %126, %128, %cst_158 {dimension_numbers = #tpu.dot_dimension_numbers<[1], [0], [0], [1], [0, 0, 1, 1], [], []>} : vector<128x8xf32>, vector<8x8xf32>, vector<128x8xf32> -> vector<128x8xf32>
    %130 = arith.addf %124, %129 : vector<128x8xf32>
    %c0_159 = arith.constant 0 : index
    %c1_160 = arith.constant 1 : index
    %c1_161 = arith.constant 1 : index
    %c0_162 = arith.constant 0 : index
    %131 = vector.load %arg12[%c0_159, %c1_160, %c1_161, %c0_162] : memref<2x10x10x8xf32, #tpu.memory_space<vmem>>, vector<2x8x8x8xf32>
    %132 = vector.shape_cast %131 : vector<2x8x8x8xf32> to vector<128x8xf32>
    %c4_163 = arith.constant 4 : index
    %c0_164 = arith.constant 0 : index
    %c0_165 = arith.constant 0 : index
    %133 = vector.load %arg6[%c4_163, %c0_164, %c0_165] : memref<9x8x8xf32, #tpu.memory_space<vmem>>, vector<1x8x8xf32>
    %134 = vector.shape_cast %133 : vector<1x8x8xf32> to vector<8x8xf32>
    %cst_166 = arith.constant dense<0.000000e+00> : vector<128x8xf32>
    %135 = tpu.matmul %132, %134, %cst_166 {dimension_numbers = #tpu.dot_dimension_numbers<[1], [0], [0], [1], [0, 0, 1, 1], [], []>} : vector<128x8xf32>, vector<8x8xf32>, vector<128x8xf32> -> vector<128x8xf32>
    %136 = arith.addf %130, %135 : vector<128x8xf32>
    %c0_167 = arith.constant 0 : index
    %c1_168 = arith.constant 1 : index
    %c2_169 = arith.constant 2 : index
    %c0_170 = arith.constant 0 : index
    %137 = vector.load %arg12[%c0_167, %c1_168, %c2_169, %c0_170] : memref<2x10x10x8xf32, #tpu.memory_space<vmem>>, vector<2x8x8x8xf32>
    %138 = vector.shape_cast %137 : vector<2x8x8x8xf32> to vector<128x8xf32>
    %c5_171 = arith.constant 5 : index
    %c0_172 = arith.constant 0 : index
    %c0_173 = arith.constant 0 : index
    %139 = vector.load %arg6[%c5_171, %c0_172, %c0_173] : memref<9x8x8xf32, #tpu.memory_space<vmem>>, vector<1x8x8xf32>
    %140 = vector.shape_cast %139 : vector<1x8x8xf32> to vector<8x8xf32>
    %cst_174 = arith.constant dense<0.000000e+00> : vector<128x8xf32>
    %141 = tpu.matmul %138, %140, %cst_174 {dimension_numbers = #tpu.dot_dimension_numbers<[1], [0], [0], [1], [0, 0, 1, 1], [], []>} : vector<128x8xf32>, vector<8x8xf32>, vector<128x8xf32> -> vector<128x8xf32>
    %142 = arith.addf %136, %141 : vector<128x8xf32>
    %c0_175 = arith.constant 0 : index
    %c2_176 = arith.constant 2 : index
    %c0_177 = arith.constant 0 : index
    %c0_178 = arith.constant 0 : index
    %143 = vector.load %arg12[%c0_175, %c2_176, %c0_177, %c0_178] : memref<2x10x10x8xf32, #tpu.memory_space<vmem>>, vector<2x8x8x8xf32>
    %144 = vector.shape_cast %143 : vector<2x8x8x8xf32> to vector<128x8xf32>
    %c6_179 = arith.constant 6 : index
    %c0_180 = arith.constant 0 : index
    %c0_181 = arith.constant 0 : index
    %145 = vector.load %arg6[%c6_179, %c0_180, %c0_181] : memref<9x8x8xf32, #tpu.memory_space<vmem>>, vector<1x8x8xf32>
    %146 = vector.shape_cast %145 : vector<1x8x8xf32> to vector<8x8xf32>
    %cst_182 = arith.constant dense<0.000000e+00> : vector<128x8xf32>
    %147 = tpu.matmul %144, %146, %cst_182 {dimension_numbers = #tpu.dot_dimension_numbers<[1], [0], [0], [1], [0, 0, 1, 1], [], []>} : vector<128x8xf32>, vector<8x8xf32>, vector<128x8xf32> -> vector<128x8xf32>
    %148 = arith.addf %142, %147 : vector<128x8xf32>
    %c0_183 = arith.constant 0 : index
    %c2_184 = arith.constant 2 : index
    %c1_185 = arith.constant 1 : index
    %c0_186 = arith.constant 0 : index
    %149 = vector.load %arg12[%c0_183, %c2_184, %c1_185, %c0_186] : memref<2x10x10x8xf32, #tpu.memory_space<vmem>>, vector<2x8x8x8xf32>
    %150 = vector.shape_cast %149 : vector<2x8x8x8xf32> to vector<128x8xf32>
    %c7_187 = arith.constant 7 : index
    %c0_188 = arith.constant 0 : index
    %c0_189 = arith.constant 0 : index
    %151 = vector.load %arg6[%c7_187, %c0_188, %c0_189] : memref<9x8x8xf32, #tpu.memory_space<vmem>>, vector<1x8x8xf32>
    %152 = vector.shape_cast %151 : vector<1x8x8xf32> to vector<8x8xf32>
    %cst_190 = arith.constant dense<0.000000e+00> : vector<128x8xf32>
    %153 = tpu.matmul %150, %152, %cst_190 {dimension_numbers = #tpu.dot_dimension_numbers<[1], [0], [0], [1], [0, 0, 1, 1], [], []>} : vector<128x8xf32>, vector<8x8xf32>, vector<128x8xf32> -> vector<128x8xf32>
    %154 = arith.addf %148, %153 : vector<128x8xf32>
    %c0_191 = arith.constant 0 : index
    %c2_192 = arith.constant 2 : index
    %c2_193 = arith.constant 2 : index
    %c0_194 = arith.constant 0 : index
    %155 = vector.load %arg12[%c0_191, %c2_192, %c2_193, %c0_194] : memref<2x10x10x8xf32, #tpu.memory_space<vmem>>, vector<2x8x8x8xf32>
    %156 = vector.shape_cast %155 : vector<2x8x8x8xf32> to vector<128x8xf32>
    %c8_195 = arith.constant 8 : index
    %c0_196 = arith.constant 0 : index
    %c0_197 = arith.constant 0 : index
    %157 = vector.load %arg6[%c8_195, %c0_196, %c0_197] : memref<9x8x8xf32, #tpu.memory_space<vmem>>, vector<1x8x8xf32>
    %158 = vector.shape_cast %157 : vector<1x8x8xf32> to vector<8x8xf32>
    %cst_198 = arith.constant dense<0.000000e+00> : vector<128x8xf32>
    %159 = tpu.matmul %156, %158, %cst_198 {dimension_numbers = #tpu.dot_dimension_numbers<[1], [0], [0], [1], [0, 0, 1, 1], [], []>} : vector<128x8xf32>, vector<8x8xf32>, vector<128x8xf32> -> vector<128x8xf32>
    %160 = arith.addf %154, %159 : vector<128x8xf32>
    %cst_199 = arith.constant 0.000000e+00 : f32
    %161 = vector.broadcast %cst_199 : f32 to vector<128x8xf32>
    %162 = arith.maximumf %160, %161 : vector<128x8xf32>
    %cst_200 = arith.constant dense<0.000000e+00> : vector<8xf32>
    %163 = vector.multi_reduction <add>, %162, %cst_200 [0] : vector<128x8xf32> to vector<8xf32>
    %164 = vector.shape_cast %163 : vector<8xf32> to vector<1x8xf32>
    %cst_201 = arith.constant 7.812500e-03 : f32
    %165 = vector.broadcast %cst_201 : f32 to vector<1x8xf32>
    %166 = arith.mulf %164, %165 : vector<1x8xf32>
    %167 = vector.broadcast %166 : vector<1x8xf32> to vector<128x8xf32>
    %168 = arith.subf %162, %167 : vector<128x8xf32>
    %169 = arith.mulf %168, %168 : vector<128x8xf32>
    %cst_202 = arith.constant dense<0.000000e+00> : vector<8xf32>
    %170 = vector.multi_reduction <add>, %169, %cst_202 [0] : vector<128x8xf32> to vector<8xf32>
    %171 = vector.shape_cast %170 : vector<8xf32> to vector<1x8xf32>
    %cst_203 = arith.constant 7.812500e-03 : f32
    %172 = vector.broadcast %cst_203 : f32 to vector<1x8xf32>
    %173 = arith.mulf %171, %172 : vector<1x8xf32>
    %cst_204 = arith.constant 9.99999974E-6 : f32
    %174 = vector.broadcast %cst_204 : f32 to vector<1x8xf32>
    %175 = arith.addf %173, %174 : vector<1x8xf32>
    %176 = math.rsqrt %175 : vector<1x8xf32>
    %177 = vector.broadcast %176 : vector<1x8xf32> to vector<128x8xf32>
    %178 = arith.mulf %168, %177 : vector<128x8xf32>
    %c0_205 = arith.constant 0 : index
    %c0_206 = arith.constant 0 : index
    %179 = vector.load %arg8[%c0_205, %c0_206] : memref<1x8xf32, #tpu.memory_space<vmem>>, vector<1x8xf32>
    %180 = vector.broadcast %179 : vector<1x8xf32> to vector<128x8xf32>
    %181 = arith.mulf %178, %180 : vector<128x8xf32>
    %c0_207 = arith.constant 0 : index
    %c0_208 = arith.constant 0 : index
    %182 = vector.load %arg9[%c0_207, %c0_208] : memref<1x8xf32, #tpu.memory_space<vmem>>, vector<1x8xf32>
    %183 = vector.broadcast %182 : vector<1x8xf32> to vector<128x8xf32>
    %184 = arith.addf %181, %183 : vector<128x8xf32>
    %185 = tpu.transpose %184, [1, 0] : vector<128x8xf32> -> vector<8x128xf32>
    %c0_209 = arith.constant 0 : index
    %c0_210 = arith.constant 0 : index
    %186 = vector.load %arg10[%c0_209, %c0_210] : memref<8x128xf32, #tpu.memory_space<vmem>>, vector<8x128xf32>
    tpu.vector_store %arg10[%c0_209, %c0_210], %185 {strides = array<i32>} : memref<8x128xf32, #tpu.memory_space<vmem>>, vector<8x128xf32>,
    return
  }
  func.func @transform_0(%arg0: i32) -> (i32, i32, i32, i32) {
    %c0_i32 = arith.constant 0 : i32
    %c0_i32_0 = arith.constant 0 : i32
    %c0_i32_1 = arith.constant 0 : i32
    %c0_i32_2 = arith.constant 0 : i32
    %c0_i32_3 = arith.constant 0 : i32
    return %c0_i32, %c0_i32_0, %c0_i32_1, %c0_i32_2 : i32, i32, i32, i32
  }
  func.func @transform_1(%arg0: i32) -> (i32, i32, i32) {
    %c0_i32 = arith.constant 0 : i32
    %c0_i32_0 = arith.constant 0 : i32
    %c0_i32_1 = arith.constant 0 : i32
    %c0_i32_2 = arith.constant 0 : i32
    return %c0_i32, %c0_i32_0, %c0_i32_1 : i32, i32, i32
  }
  func.func @transform_2(%arg0: i32) -> (i32, i32) {
    %c0_i32 = arith.constant 0 : i32
    %c0_i32_0 = arith.constant 0 : i32
    %c0_i32_1 = arith.constant 0 : i32
    return %c0_i32, %c0_i32_0 : i32, i32
  }
  func.func @transform_3(%arg0: i32) -> (i32, i32) {
    %c0_i32 = arith.constant 0 : i32
    %c0_i32_0 = arith.constant 0 : i32
    %c0_i32_1 = arith.constant 0 : i32
    return %c0_i32, %c0_i32_0 : i32, i32
  }
  func.func @transform_4(%arg0: i32) -> (i32, i32) {
    %c0_i32 = arith.constant 0 : i32
    %c0_i32_0 = arith.constant 0 : i32
    %c0_i32_1 = arith.constant 0 : i32
    return %c0_i32, %c0_i32_0 : i32, i32
  }
  func.func @transform_5(%arg0: i32) -> (i32, i32, i32) {
    %c0_i32 = arith.constant 0 : i32
    %c0_i32_0 = arith.constant 0 : i32
    %c0_i32_1 = arith.constant 0 : i32
    %c0_i32_2 = arith.constant 0 : i32
    return %c0_i32, %c0_i32_0, %c0_i32_1 : i32, i32, i32
  }
  func.func @transform_6(%arg0: i32) -> (i32, i32) {
    %c0_i32 = arith.constant 0 : i32
    %c0_i32_0 = arith.constant 0 : i32
    %c0_i32_1 = arith.constant 0 : i32
    return %c0_i32, %c0_i32_0 : i32, i32
  }
  func.func @transform_7(%arg0: i32) -> (i32, i32) {
    %c0_i32 = arith.constant 0 : i32
    %c0_i32_0 = arith.constant 0 : i32
    %c0_i32_1 = arith.constant 0 : i32
    return %c0_i32, %c0_i32_0 : i32, i32
  }
  func.func @transform_8(%arg0: i32) -> (i32, i32) {
    %c0_i32 = arith.constant 0 : i32
    %c0_i32_0 = arith.constant 0 : i32
    %c0_i32_1 = arith.constant 0 : i32
    return %c0_i32, %c0_i32_0 : i32, i32
  }
  func.func @transform_9(%arg0: i32) -> (i32, i32) {
    %c0_i32 = arith.constant 0 : i32
    %c0_i32_0 = arith.constant 0 : i32
    %c0_i32_1 = arith.constant 0 : i32
    return %c0_i32, %c0_i32_0 : i32, i32
  }
}

</mosaic_0001>

<llo_original>
// kernel: tpu_custom_call.1
$region0: #{tpu_custom_call.1}
  #allocation0 [shape = 'u32[]', space=smem, size = 0x4, offset = 0x4, fixed_abs, tag = 'smem constant byte address 0x4 - core index']
  #allocation1 [shape = 'u32[144,128]{1,0:T(1,128)}', space=vmem, size = 0x12000, scoped, tag = 'internal scratch']
  #allocation2 [shape = 'f32[2,10,10,4]{3,2,1,0:T(8,128)}', space=vmem, size = 0x28000, scoped, tag = 'scratch operand']
  #allocation3 [shape = 'f32[2,10,10,8]{3,2,1,0:T(8,128)}', space=vmem, size = 0x28000, scoped, tag = 'scratch operand']
  %s0 = inlined_call_operand.vmem [shape: f32[2,16,16,4], index: 0, kind: input, shape index: {}]
  %s1 = inlined_call_operand.vmem [shape: f32[9,4,8], index: 1, kind: input, shape index: {}]
  %s2 = inlined_call_operand.vmem [shape: f32[1,8], index: 2, kind: input, shape index: {}]
  %s3 = inlined_call_operand.vmem [shape: f32[1,8], index: 3, kind: input, shape index: {}]
  %s4 = inlined_call_operand.vmem [shape: f32[1,8], index: 4, kind: input, shape index: {}]
  %s5 = inlined_call_operand.vmem [shape: f32[9,8,8], index: 5, kind: input, shape index: {}]
  %s6 = inlined_call_operand.vmem [shape: f32[1,8], index: 6, kind: input, shape index: {}]
  %s7 = inlined_call_operand.vmem [shape: f32[1,8], index: 7, kind: input, shape index: {}]
  %s8 = inlined_call_operand.vmem [shape: f32[1,8], index: 8, kind: input, shape index: {}]
  %s9 = inlined_call_operand.hbm [shape: f32[8,128], index: 9, kind: output, shape index: {}]
  %s10 = sld [smem:[#allocation0]]
  $region46: #{tpu_custom_call.1} parent=0
    _
  %s12 = ssub.s32 1, %s10
  %s13 = scalar_select 0, %s12, %s10
  $region1: #{tpu_custom_call.1} parent=0
    #allocation4 [shape = 'u8[4096]{0}', space=vmem, size = 0x1000, scoped, tag = 'output window, operand 0, single buffered']
    #allocation5 [shape = 's32[1]{0}', space=sflag, size = 0x4, scoped, tag = 'scoped memory for tpu_custom_call.1']
    %14 = vsyncpa [#allocation5], 0
    // Predicated region
    $region2: #{tpu_custom_call.1} parent=1 // pred_check
      _
    $region3: #{tpu_custom_call.1} parent=1 // pred_check_branch
      %16 = sbr.rel (0) target = $region5
    $region4: #{tpu_custom_call.1} parent=1 // pred_region
      _
    $region5: #{tpu_custom_call.1} parent=1 // pred_fallthru
      _
    // Predicated region
    $region6: #{tpu_custom_call.1} parent=1 // pred_check
      _
    $region7: #{tpu_custom_call.1} parent=1 // pred_check_branch
      %18 = sbr.rel (0) target = $region9
    $region8: #{tpu_custom_call.1} parent=1 // pred_region
      _
    $region9: #{tpu_custom_call.1} parent=1 // pred_fallthru
      _
    // Predicated region
    $region10: #{tpu_custom_call.1} parent=1 // pred_check
      _
    $region11: #{tpu_custom_call.1} parent=1 // pred_check_branch
      %20 = sbr.rel (0) target = $region13
    $region12: #{tpu_custom_call.1} parent=1 // pred_region
      _
    $region13: #{tpu_custom_call.1} parent=1 // pred_fallthru
      _
    // Predicated region
    $region14: #{tpu_custom_call.1} parent=1 // pred_check
      _
    $region15: #{tpu_custom_call.1} parent=1 // pred_check_branch
      %22 = sbr.rel (0) target = $region17
    $region16: #{tpu_custom_call.1} parent=1 // pred_region
      _
    $region17: #{tpu_custom_call.1} parent=1 // pred_fallthru
      _
    // Predicated region
    $region18: #{tpu_custom_call.1} parent=1 // pred_check
      _
    $region19: #{tpu_custom_call.1} parent=1 // pred_check_branch
      %24 = sbr.rel (0) target = $region21
    $region20: #{tpu_custom_call.1} parent=1 // pred_region
      _
    $region21: #{tpu_custom_call.1} parent=1 // pred_fallthru
      _
    // Predicated region
    $region22: #{tpu_custom_call.1} parent=1 // pred_check
      _
    $region23: #{tpu_custom_call.1} parent=1 // pred_check_branch
      %26 = sbr.rel (0) target = $region25
    $region24: #{tpu_custom_call.1} parent=1 // pred_region
      _
    $region25: #{tpu_custom_call.1} parent=1 // pred_fallthru
      _
    // Predicated region
    $region26: #{tpu_custom_call.1} parent=1 // pred_check
      _
    $region27: #{tpu_custom_call.1} parent=1 // pred_check_branch
      %28 = sbr.rel (0) target = $region29
    $region28: #{tpu_custom_call.1} parent=1 // pred_region
      _
    $region29: #{tpu_custom_call.1} parent=1 // pred_fallthru
      _
    // Predicated region
    $region30: #{tpu_custom_call.1} parent=1 // pred_check
      _
    $region31: #{tpu_custom_call.1} parent=1 // pred_check_branch
      %30 = sbr.rel (0) target = $region33
    $region32: #{tpu_custom_call.1} parent=1 // pred_region
      _
    $region33: #{tpu_custom_call.1} parent=1 // pred_fallthru
      _
    // Predicated region
    $region34: #{tpu_custom_call.1} parent=1 // pred_check
      _
    $region35: #{tpu_custom_call.1} parent=1 // pred_check_branch
      %32 = sbr.rel (0) target = $region37
    $region36: #{tpu_custom_call.1} parent=1 // pred_region
      _
    $region37: #{tpu_custom_call.1} parent=1 // pred_fallthru
      _
    %vm33 = vcmask 31744
    %34 = vst.msk [vmem:[#allocation2] sm:$0xff] %vm33, 0.0
    %vm35 = vcmask 25600
    %36 = vst.msk [vmem:[#allocation2 + $0x8] sm:$0x3] %vm35, 0.0
    %37 = vst.msk [vmem:[#allocation2 + $0xa0] sm:$0xff] %vm33, 0.0
    %38 = vst.msk [vmem:[#allocation2 + $0xa8] sm:$0x3] %vm35, 0.0
    %s39 = scalar_lea.vmem [#allocation2], 144
    %40 = vst.msk [vmem:[%s39] sm:$0xff] %vm33, 0.0
    %41 = vst.msk [vmem:[%s39 + $0x8] sm:$0x3] %vm35, 0.0
    %42 = vst.msk [vmem:[%s39 + $0xa0] sm:$0xff] %vm33, 0.0
    %43 = vst.msk [vmem:[%s39 + $0xa8] sm:$0x3] %vm35, 0.0
    %vm44 = vcmask 24576
    %45 = vst.msk [vmem:[#allocation2] sm:$0x1] %vm44, 0.0
    %46 = vst.msk [vmem:[#allocation2 + $0x10] sm:$0x1] %vm44, 0.0
    %47 = vst.msk [vmem:[#allocation2 + $0x20] sm:$0x1] %vm44, 0.0
    %48 = vst.msk [vmem:[#allocation2 + $0x30] sm:$0x1] %vm44, 0.0
    %49 = vst.msk [vmem:[#allocation2 + $0x40] sm:$0x1] %vm44, 0.0
    %50 = vst.msk [vmem:[#allocation2 + $0x50] sm:$0x1] %vm44, 0.0
    %51 = vst.msk [vmem:[#allocation2 + $0x60] sm:$0x1] %vm44, 0.0
    %52 = vst.msk [vmem:[#allocation2 + $0x70] sm:$0x1] %vm44, 0.0
    %53 = vst.msk [vmem:[#allocation2 + $0x80] sm:$0x1] %vm44, 0.0
    %54 = vst.msk [vmem:[#allocation2 + $0x90] sm:$0x1] %vm44, 0.0
    %55 = vst.msk [vmem:[#allocation2 + $0xa0] sm:$0x1] %vm44, 0.0
    %56 = vst.msk [vmem:[#allocation2 + $0xb0] sm:$0x1] %vm44, 0.0
    %57 = vst.msk [vmem:[#allocation2 + $0xc0] sm:$0x1] %vm44, 0.0
    %58 = vst.msk [vmem:[#allocation2 + $0xd0] sm:$0x1] %vm44, 0.0
    %59 = vst.msk [vmem:[#allocation2 + $0xe0] sm:$0x1] %vm44, 0.0
    %60 = vst.msk [vmem:[#allocation2 + $0xf0] sm:$0x1] %vm44, 0.0
    %61 = vst.msk [vmem:[#allocation2 + $0x100] sm:$0x1] %vm44, 0.0
    %62 = vst.msk [vmem:[#allocation2 + $0x110] sm:$0x1] %vm44, 0.0
    %63 = vst.msk [vmem:[#allocation2 + $0x120] sm:$0x1] %vm44, 0.0
    %64 = vst.msk [vmem:[#allocation2 + $0x130] sm:$0x1] %vm44, 0.0
    %65 = vst.msk [vmem:[#allocation2 + $0x9] sm:$0x1] %vm44, 0.0
    %66 = vst.msk [vmem:[#allocation2 + $0x19] sm:$0x1] %vm44, 0.0
    %67 = vst.msk [vmem:[#allocation2 + $0x29] sm:$0x1] %vm44, 0.0
    %68 = vst.msk [vmem:[#allocation2 + $0x39] sm:$0x1] %vm44, 0.0
    %69 = vst.msk [vmem:[#allocation2 + $0x49] sm:$0x1] %vm44, 0.0
    %70 = vst.msk [vmem:[#allocation2 + $0x59] sm:$0x1] %vm44, 0.0
    %71 = vst.msk [vmem:[#allocation2 + $0x69] sm:$0x1] %vm44, 0.0
    %72 = vst.msk [vmem:[#allocation2 + $0x79] sm:$0x1] %vm44, 0.0
    %73 = vst.msk [vmem:[#allocation2 + $0x89] sm:$0x1] %vm44, 0.0
    %74 = vst.msk [vmem:[#allocation2 + $0x99] sm:$0x1] %vm44, 0.0
    %75 = vst.msk [vmem:[#allocation2 + $0xa9] sm:$0x1] %vm44, 0.0
    %76 = vst.msk [vmem:[#allocation2 + $0xb9] sm:$0x1] %vm44, 0.0
    %77 = vst.msk [vmem:[#allocation2 + $0xc9] sm:$0x1] %vm44, 0.0
    %78 = vst.msk [vmem:[#allocation2 + $0xd9] sm:$0x1] %vm44, 0.0
    %79 = vst.msk [vmem:[#allocation2 + $0xe9] sm:$0x1] %vm44, 0.0
    %80 = vst.msk [vmem:[#allocation2 + $0xf9] sm:$0x1] %vm44, 0.0
    %81 = vst.msk [vmem:[#allocation2 + $0x109] sm:$0x1] %vm44, 0.0
    %82 = vst.msk [vmem:[#allocation2 + $0x119] sm:$0x1] %vm44, 0.0
    %83 = vst.msk [vmem:[#allocation2 + $0x129] sm:$0x1] %vm44, 0.0
    %84 = vst.msk [vmem:[#allocation2 + $0x139] sm:$0x1] %vm44, 0.0
    %vm85 = vcmask 64512
    %86 = vst.msk [vmem:[#allocation3] sm:$0xff] %vm85, 0.0
    %vm87 = vcmask 58368
    %88 = vst.msk [vmem:[#allocation3 + $0x8] sm:$0x3] %vm87, 0.0
    %89 = vst.msk [vmem:[#allocation3 + $0xa0] sm:$0xff] %vm85, 0.0
    %90 = vst.msk [vmem:[#allocation3 + $0xa8] sm:$0x3] %vm87, 0.0
    %s91 = scalar_lea.vmem [#allocation3], 144
    %92 = vst.msk [vmem:[%s91] sm:$0xff] %vm85, 0.0
    %93 = vst.msk [vmem:[%s91 + $0x8] sm:$0x3] %vm87, 0.0
    %94 = vst.msk [vmem:[%s91 + $0xa0] sm:$0xff] %vm85, 0.0
    %95 = vst.msk [vmem:[%s91 + $0xa8] sm:$0x3] %vm87, 0.0
    %vm96 = vcmask 57344
    %97 = vst.msk [vmem:[#allocation3] sm:$0x1] %vm96, 0.0
    %98 = vst.msk [vmem:[#allocation3 + $0x10] sm:$0x1] %vm96, 0.0
    %99 = vst.msk [vmem:[#allocation3 + $0x20] sm:$0x1] %vm96, 0.0
    %100 = vst.msk [vmem:[#allocation3 + $0x30] sm:$0x1] %vm96, 0.0
    %101 = vst.msk [vmem:[#allocation3 + $0x40] sm:$0x1] %vm96, 0.0
    %102 = vst.msk [vmem:[#allocation3 + $0x50] sm:$0x1] %vm96, 0.0
    %103 = vst.msk [vmem:[#allocation3 + $0x60] sm:$0x1] %vm96, 0.0
    %104 = vst.msk [vmem:[#allocation3 + $0x70] sm:$0x1] %vm96, 0.0
    %105 = vst.msk [vmem:[#allocation3 + $0x80] sm:$0x1] %vm96, 0.0
    %106 = vst.msk [vmem:[#allocation3 + $0x90] sm:$0x1] %vm96, 0.0
    %107 = vst.msk [vmem:[#allocation3 + $0xa0] sm:$0x1] %vm96, 0.0
    %108 = vst.msk [vmem:[#allocation3 + $0xb0] sm:$0x1] %vm96, 0.0
    %109 = vst.msk [vmem:[#allocation3 + $0xc0] sm:$0x1] %vm96, 0.0
    %110 = vst.msk [vmem:[#allocation3 + $0xd0] sm:$0x1] %vm96, 0.0
    %111 = vst.msk [vmem:[#allocation3 + $0xe0] sm:$0x1] %vm96, 0.0
    %112 = vst.msk [vmem:[#allocation3 + $0xf0] sm:$0x1] %vm96, 0.0
    %113 = vst.msk [vmem:[#allocation3 + $0x100] sm:$0x1] %vm96, 0.0
    %114 = vst.msk [vmem:[#allocation3 + $0x110] sm:$0x1] %vm96, 0.0
    %115 = vst.msk [vmem:[#allocation3 + $0x120] sm:$0x1] %vm96, 0.0
    %116 = vst.msk [vmem:[#allocation3 + $0x130] sm:$0x1] %vm96, 0.0
    %117 = vst.msk [vmem:[#allocation3 + $0x9] sm:$0x1] %vm96, 0.0
    %118 = vst.msk [vmem:[#allocation3 + $0x19] sm:$0x1] %vm96, 0.0
    %119 = vst.msk [vmem:[#allocation3 + $0x29] sm:$0x1] %vm96, 0.0
    %120 = vst.msk [vmem:[#allocation3 + $0x39] sm:$0x1] %vm96, 0.0
    %121 = vst.msk [vmem:[#allocation3 + $0x49] sm:$0x1] %vm96, 0.0
    %122 = vst.msk [vmem:[#allocation3 + $0x59] sm:$0x1] %vm96, 0.0
    %123 = vst.msk [vmem:[#allocation3 + $0x69] sm:$0x1] %vm96, 0.0
    %124 = vst.msk [vmem:[#allocation3 + $0x79] sm:$0x1] %vm96, 0.0
    %125 = vst.msk [vmem:[#allocation3 + $0x89] sm:$0x1] %vm96, 0.0
    %126 = vst.msk [vmem:[#allocation3 + $0x99] sm:$0x1] %vm96, 0.0
    %127 = vst.msk [vmem:[#allocation3 + $0xa9] sm:$0x1] %vm96, 0.0
    %128 = vst.msk [vmem:[#allocation3 + $0xb9] sm:$0x1] %vm96, 0.0
    %129 = vst.msk [vmem:[#allocation3 + $0xc9] sm:$0x1] %vm96, 0.0
    %130 = vst.msk [vmem:[#allocation3 + $0xd9] sm:$0x1] %vm96, 0.0
    %131 = vst.msk [vmem:[#allocation3 + $0xe9] sm:$0x1] %vm96, 0.0
    %132 = vst.msk [vmem:[#allocation3 + $0xf9] sm:$0x1] %vm96, 0.0
    %133 = vst.msk [vmem:[#allocation3 + $0x109] sm:$0x1] %vm96, 0.0
    %134 = vst.msk [vmem:[#allocation3 + $0x119] sm:$0x1] %vm96, 0.0
    %135 = vst.msk [vmem:[#allocation3 + $0x129] sm:$0x1] %vm96, 0.0
    %136 = vst.msk [vmem:[#allocation3 + $0x139] sm:$0x1] %vm96, 0.0
    %v137 = vld [vmem:[%s0] ss:$2 sm:$0xff]
    %s138 = scalar_lea.vmem %s0, 16
    %v139 = vld [vmem:[%s138] ss:$2 sm:$0xff]
    %s140 = scalar_lea.vmem %s0, 32
    %v141 = vld [vmem:[%s140] ss:$2 sm:$0xff]
    %s142 = scalar_lea.vmem %s0, 48
    %v143 = vld [vmem:[%s142] ss:$2 sm:$0xff]
    %s144 = scalar_lea.vmem %s0, 64
    %v145 = vld [vmem:[%s144] ss:$2 sm:$0xff]
    %s146 = scalar_lea.vmem %s0, 80
    %v147 = vld [vmem:[%s146] ss:$2 sm:$0xff]
    %s148 = scalar_lea.vmem %s0, 96
    %v149 = vld [vmem:[%s148] ss:$2 sm:$0xff]
    %s150 = scalar_lea.vmem %s0, 112
    %v151 = vld [vmem:[%s150] ss:$2 sm:$0xff]
    %s152 = scalar_lea.vmem %s0, 128
    %v153 = vld [vmem:[%s152] ss:$2 sm:$0xff]
    %s154 = scalar_lea.vmem %s0, 144
    %v155 = vld [vmem:[%s154] ss:$2 sm:$0xff]
    %s156 = scalar_lea.vmem %s0, 160
    %v157 = vld [vmem:[%s156] ss:$2 sm:$0xff]
    %s158 = scalar_lea.vmem %s0, 176
    %v159 = vld [vmem:[%s158] ss:$2 sm:$0xff]
    %s160 = scalar_lea.vmem %s0, 192
    %v161 = vld [vmem:[%s160] ss:$2 sm:$0xff]
    %s162 = scalar_lea.vmem %s0, 208
    %v163 = vld [vmem:[%s162] ss:$2 sm:$0xff]
    %s164 = scalar_lea.vmem %s0, 224
    %v165 = vld [vmem:[%s164] ss:$2 sm:$0xff]
    %s166 = scalar_lea.vmem %s0, 240
    %v167 = vld [vmem:[%s166] ss:$2 sm:$0xff]
    %s168 = scalar_lea.vmem %s0, 256
    %v169 = vld [vmem:[%s168] ss:$2 sm:$0xff]
    %s170 = scalar_lea.vmem %s0, 272
    %v171 = vld [vmem:[%s170] ss:$2 sm:$0xff]
    %s172 = scalar_lea.vmem %s0, 288
    %v173 = vld [vmem:[%s172] ss:$2 sm:$0xff]
    %s174 = scalar_lea.vmem %s0, 304
    %v175 = vld [vmem:[%s174] ss:$2 sm:$0xff]
    %s176 = scalar_lea.vmem %s0, 320
    %v177 = vld [vmem:[%s176] ss:$2 sm:$0xff]
    %s178 = scalar_lea.vmem %s0, 336
    %v179 = vld [vmem:[%s178] ss:$2 sm:$0xff]
    %s180 = scalar_lea.vmem %s0, 352
    %v181 = vld [vmem:[%s180] ss:$2 sm:$0xff]
    %s182 = scalar_lea.vmem %s0, 368
    %v183 = vld [vmem:[%s182] ss:$2 sm:$0xff]
    %s184 = scalar_lea.vmem %s0, 384
    %v185 = vld [vmem:[%s184] ss:$2 sm:$0xff]
    %s186 = scalar_lea.vmem %s0, 400
    %v187 = vld [vmem:[%s186] ss:$2 sm:$0xff]
    %s188 = scalar_lea.vmem %s0, 416
    %v189 = vld [vmem:[%s188] ss:$2 sm:$0xff]
    %s190 = scalar_lea.vmem %s0, 432
    %v191 = vld [vmem:[%s190] ss:$2 sm:$0xff]
    %s192 = scalar_lea.vmem %s0, 448
    %v193 = vld [vmem:[%s192] ss:$2 sm:$0xff]
    %s194 = scalar_lea.vmem %s0, 464
    %v195 = vld [vmem:[%s194] ss:$2 sm:$0xff]
    %s196 = scalar_lea.vmem %s0, 480
    %v197 = vld [vmem:[%s196] ss:$2 sm:$0xff]
    %s198 = scalar_lea.vmem %s0, 496
    %v199 = vld [vmem:[%s198] ss:$2 sm:$0xff]
    %s200 = scalar_lea.vmem %s0, 1
    %v201 = vld [vmem:[%s200] ss:$2 sm:$0xff]
    %s202 = scalar_lea.vmem %s0, 17
    %v203 = vld [vmem:[%s202] ss:$2 sm:$0xff]
    %s204 = scalar_lea.vmem %s0, 33
    %v205 = vld [vmem:[%s204] ss:$2 sm:$0xff]
    %s206 = scalar_lea.vmem %s0, 49
    %v207 = vld [vmem:[%s206] ss:$2 sm:$0xff]
    %s208 = scalar_lea.vmem %s0, 65
    %v209 = vld [vmem:[%s208] ss:$2 sm:$0xff]
    %s210 = scalar_lea.vmem %s0, 81
    %v211 = vld [vmem:[%s210] ss:$2 sm:$0xff]
    %s212 = scalar_lea.vmem %s0, 97
    %v213 = vld [vmem:[%s212] ss:$2 sm:$0xff]
    %s214 = scalar_lea.vmem %s0, 113
    %v215 = vld [vmem:[%s214] ss:$2 sm:$0xff]
    %s216 = scalar_lea.vmem %s0, 129
    %v217 = vld [vmem:[%s216] ss:$2 sm:$0xff]
    %s218 = scalar_lea.vmem %s0, 145
    %v219 = vld [vmem:[%s218] ss:$2 sm:$0xff]
    %s220 = scalar_lea.vmem %s0, 161
    %v221 = vld [vmem:[%s220] ss:$2 sm:$0xff]
    %s222 = scalar_lea.vmem %s0, 177
    %v223 = vld [vmem:[%s222] ss:$2 sm:$0xff]
    %s224 = scalar_lea.vmem %s0, 193
    %v225 = vld [vmem:[%s224] ss:$2 sm:$0xff]
    %s226 = scalar_lea.vmem %s0, 209
    %v227 = vld [vmem:[%s226] ss:$2 sm:$0xff]
    %s228 = scalar_lea.vmem %s0, 225
    %v229 = vld [vmem:[%s228] ss:$2 sm:$0xff]
    %s230 = scalar_lea.vmem %s0, 241
    %v231 = vld [vmem:[%s230] ss:$2 sm:$0xff]
    %s232 = scalar_lea.vmem %s0, 257
    %v233 = vld [vmem:[%s232] ss:$2 sm:$0xff]
    %s234 = scalar_lea.vmem %s0, 273
    %v235 = vld [vmem:[%s234] ss:$2 sm:$0xff]
    %s236 = scalar_lea.vmem %s0, 289
    %v237 = vld [vmem:[%s236] ss:$2 sm:$0xff]
    %s238 = scalar_lea.vmem %s0, 305
    %v239 = vld [vmem:[%s238] ss:$2 sm:$0xff]
    %s240 = scalar_lea.vmem %s0, 321
    %v241 = vld [vmem:[%s240] ss:$2 sm:$0xff]
    %s242 = scalar_lea.vmem %s0, 337
    %v243 = vld [vmem:[%s242] ss:$2 sm:$0xff]
    %s244 = scalar_lea.vmem %s0, 353
    %v245 = vld [vmem:[%s244] ss:$2 sm:$0xff]
    %s246 = scalar_lea.vmem %s0, 369
    %v247 = vld [vmem:[%s246] ss:$2 sm:$0xff]
    %s248 = scalar_lea.vmem %s0, 385
    %v249 = vld [vmem:[%s248] ss:$2 sm:$0xff]
    %s250 = scalar_lea.vmem %s0, 401
    %v251 = vld [vmem:[%s250] ss:$2 sm:$0xff]
    %s252 = scalar_lea.vmem %s0, 417
    %v253 = vld [vmem:[%s252] ss:$2 sm:$0xff]
    %s254 = scalar_lea.vmem %s0, 433
    %v255 = vld [vmem:[%s254] ss:$2 sm:$0xff]
    %s256 = scalar_lea.vmem %s0, 449
    %v257 = vld [vmem:[%s256] ss:$2 sm:$0xff]
    %s258 = scalar_lea.vmem %s0, 465
    %v259 = vld [vmem:[%s258] ss:$2 sm:$0xff]
    %s260 = scalar_lea.vmem %s0, 481
    %v261 = vld [vmem:[%s260] ss:$2 sm:$0xff]
    %s262 = scalar_lea.vmem %s0, 497
    %v263 = vld [vmem:[%s262] ss:$2 sm:$0xff]
    %v264 = vmax.f32 %v137, %v201
    %v265 = vmax.f32 %v139, %v203
    %v266 = vmax.f32 %v141, %v205
    %v267 = vmax.f32 %v143, %v207
    %v268 = vmax.f32 %v145, %v209
    %v269 = vmax.f32 %v147, %v211
    %v270 = vmax.f32 %v149, %v213
    %v271 = vmax.f32 %v151, %v215
    %v272 = vmax.f32 %v153, %v217
    %v273 = vmax.f32 %v155, %v219
    %v274 = vmax.f32 %v157, %v221
    %v275 = vmax.f32 %v159, %v223
    %v276 = vmax.f32 %v161, %v225
    %v277 = vmax.f32 %v163, %v227
    %v278 = vmax.f32 %v165, %v229
    %v279 = vmax.f32 %v167, %v231
    %v280 = vmax.f32 %v169, %v233
    %v281 = vmax.f32 %v171, %v235
    %v282 = vmax.f32 %v173, %v237
    %v283 = vmax.f32 %v175, %v239
    %v284 = vmax.f32 %v177, %v241
    %v285 = vmax.f32 %v179, %v243
    %v286 = vmax.f32 %v181, %v245
    %v287 = vmax.f32 %v183, %v247
    %v288 = vmax.f32 %v185, %v249
    %v289 = vmax.f32 %v187, %v251
    %v290 = vmax.f32 %v189, %v253
    %v291 = vmax.f32 %v191, %v255
    %v292 = vmax.f32 %v193, %v257
    %v293 = vmax.f32 %v195, %v259
    %v294 = vmax.f32 %v197, %v261
    %v295 = vmax.f32 %v199, %v263
    %v296 = vmax.f32 %v264, %v265
    %v297 = vmax.f32 %v266, %v267
    %v298 = vmax.f32 %v268, %v269
    %v299 = vmax.f32 %v270, %v271
    %v300 = vmax.f32 %v272, %v273
    %v301 = vmax.f32 %v274, %v275
    %v302 = vmax.f32 %v276, %v277
    %v303 = vmax.f32 %v278, %v279
    %v304 = vmax.f32 %v280, %v281
    %v305 = vmax.f32 %v282, %v283
    %v306 = vmax.f32 %v284, %v285
    %v307 = vmax.f32 %v286, %v287
    %v308 = vmax.f32 %v288, %v289
    %v309 = vmax.f32 %v290, %v291
    %v310 = vmax.f32 %v292, %v293
    %v311 = vmax.f32 %v294, %v295
    %s312 = scalar_lea.vmem [#allocation2], 16
    %313 = vst.msk [vmem:[%s312 + $0x1] sm:$0xff] %vm33, %v296
    %314 = vst.msk [vmem:[%s312 + $0x11] sm:$0xff] %vm33, %v297
    %315 = vst.msk [vmem:[%s312 + $0x21] sm:$0xff] %vm33, %v298
    %316 = vst.msk [vmem:[%s312 + $0x31] sm:$0xff] %vm33, %v299
    %317 = vst.msk [vmem:[%s312 + $0x41] sm:$0xff] %vm33, %v300
    %318 = vst.msk [vmem:[%s312 + $0x51] sm:$0xff] %vm33, %v301
    %319 = vst.msk [vmem:[%s312 + $0x61] sm:$0xff] %vm33, %v302
    %320 = vst.msk [vmem:[%s312 + $0x71] sm:$0xff] %vm33, %v303
    %321 = vst.msk [vmem:[%s312 + $0xa1] sm:$0xff] %vm33, %v304
    %322 = vst.msk [vmem:[%s312 + $0xb1] sm:$0xff] %vm33, %v305
    %323 = vst.msk [vmem:[%s312 + $0xc1] sm:$0xff] %vm33, %v306
    %324 = vst.msk [vmem:[%s312 + $0xd1] sm:$0xff] %vm33, %v307
    %325 = vst.msk [vmem:[%s312 + $0xe1] sm:$0xff] %vm33, %v308
    %326 = vst.msk [vmem:[%s312 + $0xf1] sm:$0xff] %vm33, %v309
    %327 = vst.msk [vmem:[%s312 + $0x101] sm:$0xff] %vm33, %v310
    %328 = vst.msk [vmem:[%s312 + $0x111] sm:$0xff] %vm33, %v311
    %v329 = vld [vmem:[%s2] sm:$0x1]
    %v331 = vlaneseq
    %v332 = vshrl.u32 %v331, 7
    %v333 = vsub.s32 0, %v332
    %v334 = vrot.slane %v329, %v333
    %v336 = vld [vmem:[#allocation2] sm:$0xff]
    %v337 = vld [vmem:[#allocation2 + $0x10] sm:$0xff]
    %v338 = vld [vmem:[#allocation2 + $0x20] sm:$0xff]
    %v339 = vld [vmem:[#allocation2 + $0x30] sm:$0xff]
    %v340 = vld [vmem:[#allocation2 + $0x40] sm:$0xff]
    %v341 = vld [vmem:[#allocation2 + $0x50] sm:$0xff]
    %v342 = vld [vmem:[#allocation2 + $0x60] sm:$0xff]
    %v343 = vld [vmem:[#allocation2 + $0x70] sm:$0xff]
    %v344 = vld [vmem:[#allocation2 + $0xa0] sm:$0xff]
    %v345 = vld [vmem:[#allocation2 + $0xb0] sm:$0xff]
    %v346 = vld [vmem:[#allocation2 + $0xc0] sm:$0xff]
    %v347 = vld [vmem:[#allocation2 + $0xd0] sm:$0xff]
    %v348 = vld [vmem:[#allocation2 + $0xe0] sm:$0xff]
    %v349 = vld [vmem:[#allocation2 + $0xf0] sm:$0xff]
    %v350 = vld [vmem:[#allocation2 + $0x100] sm:$0xff]
    %v351 = vld [vmem:[#allocation2 + $0x110] sm:$0xff]
    %v352 = vld [vmem:[%s1] sm:$0xf]
    %v354 = vsel %vm33, %v336, 0
    %v357 = vsel %vm33, %v337, 0
    %v360 = vsel %vm33, %v338, 0
    %v363 = vsel %vm33, %v339, 0
    %v366 = vsel %vm33, %v340, 0
    %v369 = vsel %vm33, %v341, 0
    %v372 = vsel %vm33, %v342, 0
    %v375 = vsel %vm33, %v343, 0
    %v378 = vsel %vm33, %v344, 0
    %v381 = vsel %vm33, %v345, 0
    %v384 = vsel %vm33, %v346, 0
    %v387 = vsel %vm33, %v347, 0
    %v390 = vsel %vm33, %v348, 0
    %v393 = vsel %vm33, %v349, 0
    %v396 = vsel %vm33, %v350, 0
    %v399 = vsel %vm33, %v351, 0
    %vm401 = vcmask 1043456
    %v403 = vsel %vm401, %v352, 0
    %405 = vmatprep.subr.mxu0 0.0
    %406 = vmatpush1.msra.mxu0 0.0
    %407 = vmatprep.subr.mxu0 0.0
    %408 = vmatpush1.msra.mxu0 0.0
    %409 = vmatprep.subr.mxu0 0.0
    %410 = vmatpush1.msra.mxu0 0.0
    %411 = vmatprep.subr.mxu0 0.0
    %412 = vmatpush1.msra.mxu0 0.0
    %413 = vmatprep.subr.mxu0 0.0
    %414 = vmatpush1.msra.mxu0 0.0
    %415 = vmatprep.subr.mxu0 0.0
    %416 = vmatpush1.msra.mxu0 0.0
    %417 = vmatprep.subr.mxu0 0.0
    %418 = vmatpush1.msra.mxu0 0.0
    %419 = vmatprep.subr.mxu0 0.0
    %420 = vmatpush1.msra.mxu0 0.0
    %421 = vmatprep.subr.mxu0 0.0
    %422 = vmatpush1.msra.mxu0 0.0
    %423 = vmatprep.subr.mxu0 0.0
    %424 = vmatpush1.msra.mxu0 0.0
    %425 = vmatprep.subr.mxu0 0.0
    %426 = vmatpush1.msra.mxu0 0.0
    %427 = vmatprep.subr.mxu0 0.0
    %428 = vmatpush1.msra.mxu0 0.0
    %429 = vmatprep.subr.mxu0 0.0
    %430 = vmatpush1.msra.mxu0 0.0
    %431 = vmatprep.subr.mxu0 0.0
    %432 = vmatpush1.msra.mxu0 0.0
    %433 = vmatprep.subr.mxu0 0.0
    %434 = vmatpush1.msra.mxu0 0.0
    %435 = vmatprep.subr.mxu0 0.0
    %436 = vmatpush1.msra.mxu0 %v403
    %437 = vmatprep.subr.mxu0 0.0
    %438 = vmatpush2.msra.mxu0 0.0
    %439 = vmatprep.subr.mxu0 0.0
    %440 = vmatpush2.msra.mxu0 0.0
    %441 = vmatprep.subr.mxu0 0.0
    %442 = vmatpush2.msra.mxu0 0.0
    %443 = vmatprep.subr.mxu0 0.0
    %444 = vmatpush2.msra.mxu0 0.0
    %445 = vmatprep.subr.mxu0 0.0
    %446 = vmatpush2.msra.mxu0 0.0
    %447 = vmatprep.subr.mxu0 0.0
    %448 = vmatpush2.msra.mxu0 0.0
    %449 = vmatprep.subr.mxu0 0.0
    %450 = vmatpush2.msra.mxu0 0.0
    %451 = vmatprep.subr.mxu0 0.0
    %452 = vmatpush2.msra.mxu0 0.0
    %453 = vmatprep.subr.mxu0 0.0
    %454 = vmatpush2.msra.mxu0 0.0
    %455 = vmatprep.subr.mxu0 0.0
    %456 = vmatpush2.msra.mxu0 0.0
    %457 = vmatprep.subr.mxu0 0.0
    %458 = vmatpush2.msra.mxu0 0.0
    %459 = vmatprep.subr.mxu0 0.0
    %460 = vmatpush2.msra.mxu0 0.0
    %461 = vmatprep.subr.mxu0 0.0
    %462 = vmatpush2.msra.mxu0 0.0
    %463 = vmatprep.subr.mxu0 0.0
    %464 = vmatpush2.msra.mxu0 0.0
    %465 = vmatprep.subr.mxu0 0.0
    %466 = vmatpush2.msra.mxu0 0.0
    %467 = vmatprep.subr.mxu0 0.0
    %468 = vmatpush2.msra.mxu0 0.0
    %469 = vmatprep.mubr.f32.mxu0 0.0
    %470 = vmatmul.mubr.f32.gmra.mxu0 %v354
    %v471 = vpop.f32.mrf.mxu0
    %v472 = vadd.f32 0.0, %v471
    %v473 = vpop.f32.mrf.mxu0
    %474 = vmatprep.mubr.f32.mxu0 0.0
    %475 = vmatmul.mubr.f32.gmra.mxu0 %v357
    %v476 = vpop.f32.mrf.mxu0
    %v477 = vadd.f32 0.0, %v476
    %v478 = vpop.f32.mrf.mxu0
    %479 = vmatprep.mubr.f32.mxu0 0.0
    %480 = vmatmul.mubr.f32.gmra.mxu0 %v360
    %v481 = vpop.f32.mrf.mxu0
    %v482 = vadd.f32 0.0, %v481
    %v483 = vpop.f32.mrf.mxu0
    %484 = vmatprep.mubr.f32.mxu0 0.0
    %485 = vmatmul.mubr.f32.gmra.mxu0 %v363
    %v486 = vpop.f32.mrf.mxu0
    %v487 = vadd.f32 0.0, %v486
    %v488 = vpop.f32.mrf.mxu0
    %489 = vmatprep.mubr.f32.mxu0 0.0
    %490 = vmatmul.mubr.f32.gmra.mxu0 %v366
    %v491 = vpop.f32.mrf.mxu0
    %v492 = vadd.f32 0.0, %v491
    %v493 = vpop.f32.mrf.mxu0
    %494 = vmatprep.mubr.f32.mxu0 0.0
    %495 = vmatmul.mubr.f32.gmra.mxu0 %v369
    %v496 = vpop.f32.mrf.mxu0
    %v497 = vadd.f32 0.0, %v496
    %v498 = vpop.f32.mrf.mxu0
    %499 = vmatprep.mubr.f32.mxu0 0.0
    %500 = vmatmul.mubr.f32.gmra.mxu0 %v372
    %v501 = vpop.f32.mrf.mxu0
    %v502 = vadd.f32 0.0, %v501
    %v503 = vpop.f32.mrf.mxu0
    %504 = vmatprep.mubr.f32.mxu0 0.0
    %505 = vmatmul.mubr.f32.gmra.mxu0 %v375
    %v506 = vpop.f32.mrf.mxu0
    %v507 = vadd.f32 0.0, %v506
    %v508 = vpop.f32.mrf.mxu0
    %509 = vmatprep.mubr.f32.mxu0 0.0
    %510 = vmatmul.mubr.f32.gmra.mxu0 %v378
    %v511 = vpop.f32.mrf.mxu0
    %v512 = vadd.f32 0.0, %v511
    %v513 = vpop.f32.mrf.mxu0
    %514 = vmatprep.mubr.f32.mxu0 0.0
    %515 = vmatmul.mubr.f32.gmra.mxu0 %v381
    %v516 = vpop.f32.mrf.mxu0
    %v517 = vadd.f32 0.0, %v516
    %v518 = vpop.f32.mrf.mxu0
    %519 = vmatprep.mubr.f32.mxu0 0.0
    %520 = vmatmul.mubr.f32.gmra.mxu0 %v384
    %v521 = vpop.f32.mrf.mxu0
    %v522 = vadd.f32 0.0, %v521
    %v523 = vpop.f32.mrf.mxu0
    %524 = vmatprep.mubr.f32.mxu0 0.0
    %525 = vmatmul.mubr.f32.gmra.mxu0 %v387
    %v526 = vpop.f32.mrf.mxu0
    %v527 = vadd.f32 0.0, %v526
    %v528 = vpop.f32.mrf.mxu0
    %529 = vmatprep.mubr.f32.mxu0 0.0
    %530 = vmatmul.mubr.f32.gmra.mxu0 %v390
    %v531 = vpop.f32.mrf.mxu0
    %v532 = vadd.f32 0.0, %v531
    %v533 = vpop.f32.mrf.mxu0
    %534 = vmatprep.mubr.f32.mxu0 0.0
    %535 = vmatmul.mubr.f32.gmra.mxu0 %v393
    %v536 = vpop.f32.mrf.mxu0
    %v537 = vadd.f32 0.0, %v536
    %v538 = vpop.f32.mrf.mxu0
    %539 = vmatprep.mubr.f32.mxu0 0.0
    %540 = vmatmul.mubr.f32.gmra.mxu0 %v396
    %v541 = vpop.f32.mrf.mxu0
    %v542 = vadd.f32 0.0, %v541
    %v543 = vpop.f32.mrf.mxu0
    %544 = vmatprep.mubr.f32.mxu0 0.0
    %545 = vmatmul.mubr.f32.gmra.mxu0 %v399
    %v546 = vpop.f32.mrf.mxu0
    %v547 = vadd.f32 0.0, %v546
    %v548 = vpop.f32.mrf.mxu0
    %549 = vdwg.mxu0
    %v550 = vadd.f32 %v334, %v472
    %v551 = vadd.f32 %v334, %v477
    %v552 = vadd.f32 %v334, %v482
    %v553 = vadd.f32 %v334, %v487
    %v554 = vadd.f32 %v334, %v492
    %v555 = vadd.f32 %v334, %v497
    %v556 = vadd.f32 %v334, %v502
    %v557 = vadd.f32 %v334, %v507
    %v558 = vadd.f32 %v334, %v512
    %v559 = vadd.f32 %v334, %v517
    %v560 = vadd.f32 %v334, %v522
    %v561 = vadd.f32 %v334, %v527
    %v562 = vadd.f32 %v334, %v532
    %v563 = vadd.f32 %v334, %v537
    %v564 = vadd.f32 %v334, %v542
    %v565 = vadd.f32 %v334, %v547
    %v566 = vld [vmem:[#allocation2 + $0x1] sm:$0xff]
    %v567 = vld [vmem:[#allocation2 + $0x11] sm:$0xff]
    %v568 = vld [vmem:[#allocation2 + $0x21] sm:$0xff]
    %v569 = vld [vmem:[#allocation2 + $0x31] sm:$0xff]
    %v570 = vld [vmem:[#allocation2 + $0x41] sm:$0xff]
    %v571 = vld [vmem:[#allocation2 + $0x51] sm:$0xff]
    %v572 = vld [vmem:[#allocation2 + $0x61] sm:$0xff]
    %v573 = vld [vmem:[#allocation2 + $0x71] sm:$0xff]
    %v574 = vld [vmem:[#allocation2 + $0xa1] sm:$0xff]
    %v575 = vld [vmem:[#allocation2 + $0xb1] sm:$0xff]
    %v576 = vld [vmem:[#allocation2 + $0xc1] sm:$0xff]
    %v577 = vld [vmem:[#allocation2 + $0xd1] sm:$0xff]
    %v578 = vld [vmem:[#allocation2 + $0xe1] sm:$0xff]
    %v579 = vld [vmem:[#allocation2 + $0xf1] sm:$0xff]
    %v580 = vld [vmem:[#allocation2 + $0x101] sm:$0xff]
    %v581 = vld [vmem:[#allocation2 + $0x111] sm:$0xff]
    %s582 = scalar_lea.vmem %s1, 4
    %v583 = vld [vmem:[%s582] sm:$0xf]
    %v585 = vsel %vm33, %v566, 0
    %v588 = vsel %vm33, %v567, 0
    %v591 = vsel %vm33, %v568, 0
    %v594 = vsel %vm33, %v569, 0
    %v597 = vsel %vm33, %v570, 0
    %v600 = vsel %vm33, %v571, 0
    %v603 = vsel %vm33, %v572, 0
    %v606 = vsel %vm33, %v573, 0
    %v609 = vsel %vm33, %v574, 0
    %v612 = vsel %vm33, %v575, 0
    %v615 = vsel %vm33, %v576, 0
    %v618 = vsel %vm33, %v577, 0
    %v621 = vsel %vm33, %v578, 0
    %v624 = vsel %vm33, %v579, 0
    %v627 = vsel %vm33, %v580, 0
    %v630 = vsel %vm33, %v581, 0
    %v633 = vsel %vm401, %v583, 0
    %635 = vmatprep.subr.mxu0 0.0
    %636 = vmatpush1.msra.mxu0 0.0
    %637 = vmatprep.subr.mxu0 0.0
    %638 = vmatpush1.msra.mxu0 0.0
    %639 = vmatprep.subr.mxu0 0.0
    %640 = vmatpush1.msra.mxu0 0.0
    %641 = vmatprep.subr.mxu0 0.0
    %642 = vmatpush1.msra.mxu0 0.0
    %643 = vmatprep.subr.mxu0 0.0
    %644 = vmatpush1.msra.mxu0 0.0
    %645 = vmatprep.subr.mxu0 0.0
    %646 = vmatpush1.msra.mxu0 0.0
    %647 = vmatprep.subr.mxu0 0.0
    %648 = vmatpush1.msra.mxu0 0.0
    %649 = vmatprep.subr.mxu0 0.0
    %650 = vmatpush1.msra.mxu0 0.0
    %651 = vmatprep.subr.mxu0 0.0
    %652 = vmatpush1.msra.mxu0 0.0
    %653 = vmatprep.subr.mxu0 0.0
    %654 = vmatpush1.msra.mxu0 0.0
    %655 = vmatprep.subr.mxu0 0.0
    %656 = vmatpush1.msra.mxu0 0.0
    %657 = vmatprep.subr.mxu0 0.0
    %658 = vmatpush1.msra.mxu0 0.0
    %659 = vmatprep.subr.mxu0 0.0
    %660 = vmatpush1.msra.mxu0 0.0
    %661 = vmatprep.subr.mxu0 0.0
    %662 = vmatpush1.msra.mxu0 0.0
    %663 = vmatprep.subr.mxu0 0.0
    %664 = vmatpush1.msra.mxu0 0.0
    %665 = vmatprep.subr.mxu0 0.0
    %666 = vmatpush1.msra.mxu0 %v633
    %667 = vmatprep.subr.mxu0 0.0
    %668 = vmatpush2.msra.mxu0 0.0
    %669 = vmatprep.subr.mxu0 0.0
    %670 = vmatpush2.msra.mxu0 0.0
    %671 = vmatprep.subr.mxu0 0.0
    %672 = vmatpush2.msra.mxu0 0.0
    %673 = vmatprep.subr.mxu0 0.0
    %674 = vmatpush2.msra.mxu0 0.0
    %675 = vmatprep.subr.mxu0 0.0
    %676 = vmatpush2.msra.mxu0 0.0
    %677 = vmatprep.subr.mxu0 0.0
    %678 = vmatpush2.msra.mxu0 0.0
    %679 = vmatprep.subr.mxu0 0.0
    %680 = vmatpush2.msra.mxu0 0.0
    %681 = vmatprep.subr.mxu0 0.0
    %682 = vmatpush2.msra.mxu0 0.0
    %683 = vmatprep.subr.mxu0 0.0
    %684 = vmatpush2.msra.mxu0 0.0
    %685 = vmatprep.subr.mxu0 0.0
    %686 = vmatpush2.msra.mxu0 0.0
    %687 = vmatprep.subr.mxu0 0.0
    %688 = vmatpush2.msra.mxu0 0.0
    %689 = vmatprep.subr.mxu0 0.0
    %690 = vmatpush2.msra.mxu0 0.0
    %691 = vmatprep.subr.mxu0 0.0
    %692 = vmatpush2.msra.mxu0 0.0
    %693 = vmatprep.subr.mxu0 0.0
    %694 = vmatpush2.msra.mxu0 0.0
    %695 = vmatprep.subr.mxu0 0.0
    %696 = vmatpush2.msra.mxu0 0.0
    %697 = vmatprep.subr.mxu0 0.0
    %698 = vmatpush2.msra.mxu0 0.0
    %699 = vmatprep.mubr.f32.mxu0 0.0
    %700 = vmatmul.mubr.f32.gmra.mxu0 %v585
    %v701 = vpop.f32.mrf.mxu0
    %v702 = vadd.f32 0.0, %v701
    %v703 = vpop.f32.mrf.mxu0
    %704 = vmatprep.mubr.f32.mxu0 0.0
    %705 = vmatmul.mubr.f32.gmra.mxu0 %v588
    %v706 = vpop.f32.mrf.mxu0
    %v707 = vadd.f32 0.0, %v706
    %v708 = vpop.f32.mrf.mxu0
    %709 = vmatprep.mubr.f32.mxu0 0.0
    %710 = vmatmul.mubr.f32.gmra.mxu0 %v591
    %v711 = vpop.f32.mrf.mxu0
    %v712 = vadd.f32 0.0, %v711
    %v713 = vpop.f32.mrf.mxu0
    %714 = vmatprep.mubr.f32.mxu0 0.0
    %715 = vmatmul.mubr.f32.gmra.mxu0 %v594
    %v716 = vpop.f32.mrf.mxu0
    %v717 = vadd.f32 0.0, %v716
    %v718 = vpop.f32.mrf.mxu0
    %719 = vmatprep.mubr.f32.mxu0 0.0
    %720 = vmatmul.mubr.f32.gmra.mxu0 %v597
    %v721 = vpop.f32.mrf.mxu0
    %v722 = vadd.f32 0.0, %v721
    %v723 = vpop.f32.mrf.mxu0
    %724 = vmatprep.mubr.f32.mxu0 0.0
    %725 = vmatmul.mubr.f32.gmra.mxu0 %v600
    %v726 = vpop.f32.mrf.mxu0
    %v727 = vadd.f32 0.0, %v726
    %v728 = vpop.f32.mrf.mxu0
    %729 = vmatprep.mubr.f32.mxu0 0.0
    %730 = vmatmul.mubr.f32.gmra.mxu0 %v603
    %v731 = vpop.f32.mrf.mxu0
    %v732 = vadd.f32 0.0, %v731
    %v733 = vpop.f32.mrf.mxu0
    %734 = vmatprep.mubr.f32.mxu0 0.0
    %735 = vmatmul.mubr.f32.gmra.mxu0 %v606
    %v736 = vpop.f32.mrf.mxu0
    %v737 = vadd.f32 0.0, %v736
    %v738 = vpop.f32.mrf.mxu0
    %739 = vmatprep.mubr.f32.mxu0 0.0
    %740 = vmatmul.mubr.f32.gmra.mxu0 %v609
    %v741 = vpop.f32.mrf.mxu0
    %v742 = vadd.f32 0.0, %v741
    %v743 = vpop.f32.mrf.mxu0
    %744 = vmatprep.mubr.f32.mxu0 0.0
    %745 = vmatmul.mubr.f32.gmra.mxu0 %v612
    %v746 = vpop.f32.mrf.mxu0
    %v747 = vadd.f32 0.0, %v746
    %v748 = vpop.f32.mrf.mxu0
    %749 = vmatprep.mubr.f32.mxu0 0.0
    %750 = vmatmul.mubr.f32.gmra.mxu0 %v615
    %v751 = vpop.f32.mrf.mxu0
    %v752 = vadd.f32 0.0, %v751
    %v753 = vpop.f32.mrf.mxu0
    %754 = vmatprep.mubr.f32.mxu0 0.0
    %755 = vmatmul.mubr.f32.gmra.mxu0 %v618
    %v756 = vpop.f32.mrf.mxu0
    %v757 = vadd.f32 0.0, %v756
    %v758 = vpop.f32.mrf.mxu0
    %759 = vmatprep.mubr.f32.mxu0 0.0
    %760 = vmatmul.mubr.f32.gmra.mxu0 %v621
    %v761 = vpop.f32.mrf.mxu0
    %v762 = vadd.f32 0.0, %v761
    %v763 = vpop.f32.mrf.mxu0
    %764 = vmatprep.mubr.f32.mxu0 0.0
    %765 = vmatmul.mubr.f32.gmra.mxu0 %v624
    %v766 = vpop.f32.mrf.mxu0
    %v767 = vadd.f32 0.0, %v766
    %v768 = vpop.f32.mrf.mxu0
    %769 = vmatprep.mubr.f32.mxu0 0.0
    %770 = vmatmul.mubr.f32.gmra.mxu0 %v627
    %v771 = vpop.f32.mrf.mxu0
    %v772 = vadd.f32 0.0, %v771
    %v773 = vpop.f32.mrf.mxu0
    %774 = vmatprep.mubr.f32.mxu0 0.0
    %775 = vmatmul.mubr.f32.gmra.mxu0 %v630
    %v776 = vpop.f32.mrf.mxu0
    %v777 = vadd.f32 0.0, %v776
    %v778 = vpop.f32.mrf.mxu0
    %779 = vdwg.mxu0
    %v780 = vadd.f32 %v550, %v702
    %v781 = vadd.f32 %v551, %v707
    %v782 = vadd.f32 %v552, %v712
    %v783 = vadd.f32 %v553, %v717
    %v784 = vadd.f32 %v554, %v722
    %v785 = vadd.f32 %v555, %v727
    %v786 = vadd.f32 %v556, %v732
    %v787 = vadd.f32 %v557, %v737
    %v788 = vadd.f32 %v558, %v742
    %v789 = vadd.f32 %v559, %v747
    %v790 = vadd.f32 %v560, %v752
    %v791 = vadd.f32 %v561, %v757
    %v792 = vadd.f32 %v562, %v762
    %v793 = vadd.f32 %v563, %v767
    %v794 = vadd.f32 %v564, %v772
    %v795 = vadd.f32 %v565, %v777
    %v796 = vld [vmem:[#allocation2 + $0x2] sm:$0xff]
    %v797 = vld [vmem:[#allocation2 + $0x12] sm:$0xff]
    %v798 = vld [vmem:[#allocation2 + $0x22] sm:$0xff]
    %v799 = vld [vmem:[#allocation2 + $0x32] sm:$0xff]
    %v800 = vld [vmem:[#allocation2 + $0x42] sm:$0xff]
    %v801 = vld [vmem:[#allocation2 + $0x52] sm:$0xff]
    %v802 = vld [vmem:[#allocation2 + $0x62] sm:$0xff]
    %v803 = vld [vmem:[#allocation2 + $0x72] sm:$0xff]
    %v804 = vld [vmem:[#allocation2 + $0xa2] sm:$0xff]
    %v805 = vld [vmem:[#allocation2 + $0xb2] sm:$0xff]
    %v806 = vld [vmem:[#allocation2 + $0xc2] sm:$0xff]
    %v807 = vld [vmem:[#allocation2 + $0xd2] sm:$0xff]
    %v808 = vld [vmem:[#allocation2 + $0xe2] sm:$0xff]
    %v809 = vld [vmem:[#allocation2 + $0xf2] sm:$0xff]
    %v810 = vld [vmem:[#allocation2 + $0x102] sm:$0xff]
    %v811 = vld [vmem:[#allocation2 + $0x112] sm:$0xff]
    %s812 = scalar_lea.vmem %s1, 8
    %v813 = vld [vmem:[%s812] sm:$0xf]
    %v815 = vsel %vm33, %v796, 0
    %v818 = vsel %vm33, %v797, 0
    %v821 = vsel %vm33, %v798, 0
    %v824 = vsel %vm33, %v799, 0
    %v827 = vsel %vm33, %v800, 0
    %v830 = vsel %vm33, %v801, 0
    %v833 = vsel %vm33, %v802, 0
    %v836 = vsel %vm33, %v803, 0
    %v839 = vsel %vm33, %v804, 0
    %v842 = vsel %vm33, %v805, 0
    %v845 = vsel %vm33, %v806, 0
    %v848 = vsel %vm33, %v807, 0
    %v851 = vsel %vm33, %v808, 0
    %v854 = vsel %vm33, %v809, 0
    %v857 = vsel %vm33, %v810, 0
    %v860 = vsel %vm33, %v811, 0
    %v863 = vsel %vm401, %v813, 0
    %865 = vmatprep.subr.mxu0 0.0
    %866 = vmatpush1.msra.mxu0 0.0
    %867 = vmatprep.subr.mxu0 0.0
    %868 = vmatpush1.msra.mxu0 0.0
    %869 = vmatprep.subr.mxu0 0.0
    %870 = vmatpush1.msra.mxu0 0.0
    %871 = vmatprep.subr.mxu0 0.0
    %872 = vmatpush1.msra.mxu0 0.0
    %873 = vmatprep.subr.mxu0 0.0
    %874 = vmatpush1.msra.mxu0 0.0
    %875 = vmatprep.subr.mxu0 0.0
    %876 = vmatpush1.msra.mxu0 0.0
    %877 = vmatprep.subr.mxu0 0.0
    %878 = vmatpush1.msra.mxu0 0.0
    %879 = vmatprep.subr.mxu0 0.0
    %880 = vmatpush1.msra.mxu0 0.0
    %881 = vmatprep.subr.mxu0 0.0
    %882 = vmatpush1.msra.mxu0 0.0
    %883 = vmatprep.subr.mxu0 0.0
    %884 = vmatpush1.msra.mxu0 0.0
    %885 = vmatprep.subr.mxu0 0.0
    %886 = vmatpush1.msra.mxu0 0.0
    %887 = vmatprep.subr.mxu0 0.0
    %888 = vmatpush1.msra.mxu0 0.0
    %889 = vmatprep.subr.mxu0 0.0
    %890 = vmatpush1.msra.mxu0 0.0
    %891 = vmatprep.subr.mxu0 0.0
    %892 = vmatpush1.msra.mxu0 0.0
    %893 = vmatprep.subr.mxu0 0.0
    %894 = vmatpush1.msra.mxu0 0.0
    %895 = vmatprep.subr.mxu0 0.0
    %896 = vmatpush1.msra.mxu0 %v863
    %897 = vmatprep.subr.mxu0 0.0
    %898 = vmatpush2.msra.mxu0 0.0
    %899 = vmatprep.subr.mxu0 0.0
    %900 = vmatpush2.msra.mxu0 0.0
    %901 = vmatprep.subr.mxu0 0.0
    %902 = vmatpush2.msra.mxu0 0.0
    %903 = vmatprep.subr.mxu0 0.0
    %904 = vmatpush2.msra.mxu0 0.0
    %905 = vmatprep.subr.mxu0 0.0
    %906 = vmatpush2.msra.mxu0 0.0
    %907 = vmatprep.subr.mxu0 0.0
    %908 = vmatpush2.msra.mxu0 0.0
    %909 = vmatprep.subr.mxu0 0.0
    %910 = vmatpush2.msra.mxu0 0.0
    %911 = vmatprep.subr.mxu0 0.0
    %912 = vmatpush2.msra.mxu0 0.0
    %913 = vmatprep.subr.mxu0 0.0
    %914 = vmatpush2.msra.mxu0 0.0
    %915 = vmatprep.subr.mxu0 0.0
    %916 = vmatpush2.msra.mxu0 0.0
    %917 = vmatprep.subr.mxu0 0.0
    %918 = vmatpush2.msra.mxu0 0.0
    %919 = vmatprep.subr.mxu0 0.0
    %920 = vmatpush2.msra.mxu0 0.0
    %921 = vmatprep.subr.mxu0 0.0
    %922 = vmatpush2.msra.mxu0 0.0
    %923 = vmatprep.subr.mxu0 0.0
    %924 = vmatpush2.msra.mxu0 0.0
    %925 = vmatprep.subr.mxu0 0.0
    %926 = vmatpush2.msra.mxu0 0.0
    %927 = vmatprep.subr.mxu0 0.0
    %928 = vmatpush2.msra.mxu0 0.0
    %929 = vmatprep.mubr.f32.mxu0 0.0
    %930 = vmatmul.mubr.f32.gmra.mxu0 %v815
    %v931 = vpop.f32.mrf.mxu0
    %v932 = vadd.f32 0.0, %v931
    %v933 = vpop.f32.mrf.mxu0
    %934 = vmatprep.mubr.f32.mxu0 0.0
    %935 = vmatmul.mubr.f32.gmra.mxu0 %v818
    %v936 = vpop.f32.mrf.mxu0
    %v937 = vadd.f32 0.0, %v936
    %v938 = vpop.f32.mrf.mxu0
    %939 = vmatprep.mubr.f32.mxu0 0.0
    %940 = vmatmul.mubr.f32.gmra.mxu0 %v821
    %v941 = vpop.f32.mrf.mxu0
    %v942 = vadd.f32 0.0, %v941
    %v943 = vpop.f32.mrf.mxu0
    %944 = vmatprep.mubr.f32.mxu0 0.0
    %945 = vmatmul.mubr.f32.gmra.mxu0 %v824
    %v946 = vpop.f32.mrf.mxu0
    %v947 = vadd.f32 0.0, %v946
    %v948 = vpop.f32.mrf.mxu0
    %949 = vmatprep.mubr.f32.mxu0 0.0
    %950 = vmatmul.mubr.f32.gmra.mxu0 %v827
    %v951 = vpop.f32.mrf.mxu0
    %v952 = vadd.f32 0.0, %v951
    %v953 = vpop.f32.mrf.mxu0
    %954 = vmatprep.mubr.f32.mxu0 0.0
    %955 = vmatmul.mubr.f32.gmra.mxu0 %v830
    %v956 = vpop.f32.mrf.mxu0
    %v957 = vadd.f32 0.0, %v956
    %v958 = vpop.f32.mrf.mxu0
    %959 = vmatprep.mubr.f32.mxu0 0.0
    %960 = vmatmul.mubr.f32.gmra.mxu0 %v833
    %v961 = vpop.f32.mrf.mxu0
    %v962 = vadd.f32 0.0, %v961
    %v963 = vpop.f32.mrf.mxu0
    %964 = vmatprep.mubr.f32.mxu0 0.0
    %965 = vmatmul.mubr.f32.gmra.mxu0 %v836
    %v966 = vpop.f32.mrf.mxu0
    %v967 = vadd.f32 0.0, %v966
    %v968 = vpop.f32.mrf.mxu0
    %969 = vmatprep.mubr.f32.mxu0 0.0
    %970 = vmatmul.mubr.f32.gmra.mxu0 %v839
    %v971 = vpop.f32.mrf.mxu0
    %v972 = vadd.f32 0.0, %v971
    %v973 = vpop.f32.mrf.mxu0
    %974 = vmatprep.mubr.f32.mxu0 0.0
    %975 = vmatmul.mubr.f32.gmra.mxu0 %v842
    %v976 = vpop.f32.mrf.mxu0
    %v977 = vadd.f32 0.0, %v976
    %v978 = vpop.f32.mrf.mxu0
    %979 = vmatprep.mubr.f32.mxu0 0.0
    %980 = vmatmul.mubr.f32.gmra.mxu0 %v845
    %v981 = vpop.f32.mrf.mxu0
    %v982 = vadd.f32 0.0, %v981
    %v983 = vpop.f32.mrf.mxu0
    %984 = vmatprep.mubr.f32.mxu0 0.0
    %985 = vmatmul.mubr.f32.gmra.mxu0 %v848
    %v986 = vpop.f32.mrf.mxu0
    %v987 = vadd.f32 0.0, %v986
    %v988 = vpop.f32.mrf.mxu0
    %989 = vmatprep.mubr.f32.mxu0 0.0
    %990 = vmatmul.mubr.f32.gmra.mxu0 %v851
    %v991 = vpop.f32.mrf.mxu0
    %v992 = vadd.f32 0.0, %v991
    %v993 = vpop.f32.mrf.mxu0
    %994 = vmatprep.mubr.f32.mxu0 0.0
    %995 = vmatmul.mubr.f32.gmra.mxu0 %v854
    %v996 = vpop.f32.mrf.mxu0
    %v997 = vadd.f32 0.0, %v996
    %v998 = vpop.f32.mrf.mxu0
    %999 = vmatprep.mubr.f32.mxu0 0.0
    %1000 = vmatmul.mubr.f32.gmra.mxu0 %v857
    %v1001 = vpop.f32.mrf.mxu0
    %v1002 = vadd.f32 0.0, %v1001
    %v1003 = vpop.f32.mrf.mxu0
    %1004 = vmatprep.mubr.f32.mxu0 0.0
    %1005 = vmatmul.mubr.f32.gmra.mxu0 %v860
    %v1006 = vpop.f32.mrf.mxu0
    %v1007 = vadd.f32 0.0, %v1006
    %v1008 = vpop.f32.mrf.mxu0
    %1009 = vdwg.mxu0
    %v1010 = vadd.f32 %v780, %v932
    %v1011 = vadd.f32 %v781, %v937
    %v1012 = vadd.f32 %v782, %v942
    %v1013 = vadd.f32 %v783, %v947
    %v1014 = vadd.f32 %v784, %v952
    %v1015 = vadd.f32 %v785, %v957
    %v1016 = vadd.f32 %v786, %v962
    %v1017 = vadd.f32 %v787, %v967
    %v1018 = vadd.f32 %v788, %v972
    %v1019 = vadd.f32 %v789, %v977
    %v1020 = vadd.f32 %v790, %v982
    %v1021 = vadd.f32 %v791, %v987
    %v1022 = vadd.f32 %v792, %v992
    %v1023 = vadd.f32 %v793, %v997
    %v1024 = vadd.f32 %v794, %v1002
    %v1025 = vadd.f32 %v795, %v1007
    %v1026 = vld [vmem:[%s312] sm:$0xff]
    %v1027 = vld [vmem:[%s312 + $0x10] sm:$0xff]
    %v1028 = vld [vmem:[%s312 + $0x20] sm:$0xff]
    %v1029 = vld [vmem:[%s312 + $0x30] sm:$0xff]
    %v1030 = vld [vmem:[%s312 + $0x40] sm:$0xff]
    %v1031 = vld [vmem:[%s312 + $0x50] sm:$0xff]
    %v1032 = vld [vmem:[%s312 + $0x60] sm:$0xff]
    %v1033 = vld [vmem:[%s312 + $0x70] sm:$0xff]
    %v1034 = vld [vmem:[%s312 + $0xa0] sm:$0xff]
    %v1035 = vld [vmem:[%s312 + $0xb0] sm:$0xff]
    %v1036 = vld [vmem:[%s312 + $0xc0] sm:$0xff]
    %v1037 = vld [vmem:[%s312 + $0xd0] sm:$0xff]
    %v1038 = vld [vmem:[%s312 + $0xe0] sm:$0xff]
    %v1039 = vld [vmem:[%s312 + $0xf0] sm:$0xff]
    %v1040 = vld [vmem:[%s312 + $0x100] sm:$0xff]
    %v1041 = vld [vmem:[%s312 + $0x110] sm:$0xff]
    %s1042 = scalar_lea.vmem %s1, 12
    %v1043 = vld [vmem:[%s1042] sm:$0xf]
    %v1045 = vsel %vm33, %v1026, 0
    %v1048 = vsel %vm33, %v1027, 0
    %v1051 = vsel %vm33, %v1028, 0
    %v1054 = vsel %vm33, %v1029, 0
    %v1057 = vsel %vm33, %v1030, 0
    %v1060 = vsel %vm33, %v1031, 0
    %v1063 = vsel %vm33, %v1032, 0
    %v1066 = vsel %vm33, %v1033, 0
    %v1069 = vsel %vm33, %v1034, 0
    %v1072 = vsel %vm33, %v1035, 0
    %v1075 = vsel %vm33, %v1036, 0
    %v1078 = vsel %vm33, %v1037, 0
    %v1081 = vsel %vm33, %v1038, 0
    %v1084 = vsel %vm33, %v1039, 0
    %v1087 = vsel %vm33, %v1040, 0
    %v1090 = vsel %vm33, %v1041, 0
    %v1093 = vsel %vm401, %v1043, 0
    %1095 = vmatprep.subr.mxu0 0.0
    %1096 = vmatpush1.msra.mxu0 0.0
    %1097 = vmatprep.subr.mxu0 0.0
    %1098 = vmatpush1.msra.mxu0 0.0
    %1099 = vmatprep.subr.mxu0 0.0
    %1100 = vmatpush1.msra.mxu0 0.0
    %1101 = vmatprep.subr.mxu0 0.0
    %1102 = vmatpush1.msra.mxu0 0.0
    %1103 = vmatprep.subr.mxu0 0.0
    %1104 = vmatpush1.msra.mxu0 0.0
    %1105 = vmatprep.subr.mxu0 0.0
    %1106 = vmatpush1.msra.mxu0 0.0
    %1107 = vmatprep.subr.mxu0 0.0
    %1108 = vmatpush1.msra.mxu0 0.0
    %1109 = vmatprep.subr.mxu0 0.0
    %1110 = vmatpush1.msra.mxu0 0.0
    %1111 = vmatprep.subr.mxu0 0.0
    %1112 = vmatpush1.msra.mxu0 0.0
    %1113 = vmatprep.subr.mxu0 0.0
    %1114 = vmatpush1.msra.mxu0 0.0
    %1115 = vmatprep.subr.mxu0 0.0
    %1116 = vmatpush1.msra.mxu0 0.0
    %1117 = vmatprep.subr.mxu0 0.0
    %1118 = vmatpush1.msra.mxu0 0.0
    %1119 = vmatprep.subr.mxu0 0.0
    %1120 = vmatpush1.msra.mxu0 0.0
    %1121 = vmatprep.subr.mxu0 0.0
    %1122 = vmatpush1.msra.mxu0 0.0
    %1123 = vmatprep.subr.mxu0 0.0
    %1124 = vmatpush1.msra.mxu0 0.0
    %1125 = vmatprep.subr.mxu0 0.0
    %1126 = vmatpush1.msra.mxu0 %v1093
    %1127 = vmatprep.subr.mxu0 0.0
    %1128 = vmatpush2.msra.mxu0 0.0
    %1129 = vmatprep.subr.mxu0 0.0
    %1130 = vmatpush2.msra.mxu0 0.0
    %1131 = vmatprep.subr.mxu0 0.0
    %1132 = vmatpush2.msra.mxu0 0.0
    %1133 = vmatprep.subr.mxu0 0.0
    %1134 = vmatpush2.msra.mxu0 0.0
    %1135 = vmatprep.subr.mxu0 0.0
    %1136 = vmatpush2.msra.mxu0 0.0
    %1137 = vmatprep.subr.mxu0 0.0
    %1138 = vmatpush2.msra.mxu0 0.0
    %1139 = vmatprep.subr.mxu0 0.0
    %1140 = vmatpush2.msra.mxu0 0.0
    %1141 = vmatprep.subr.mxu0 0.0
    %1142 = vmatpush2.msra.mxu0 0.0
    %1143 = vmatprep.subr.mxu0 0.0
    %1144 = vmatpush2.msra.mxu0 0.0
    %1145 = vmatprep.subr.mxu0 0.0
    %1146 = vmatpush2.msra.mxu0 0.0
    %1147 = vmatprep.subr.mxu0 0.0
    %1148 = vmatpush2.msra.mxu0 0.0
    %1149 = vmatprep.subr.mxu0 0.0
    %1150 = vmatpush2.msra.mxu0 0.0
    %1151 = vmatprep.subr.mxu0 0.0
    %1152 = vmatpush2.msra.mxu0 0.0
    %1153 = vmatprep.subr.mxu0 0.0
    %1154 = vmatpush2.msra.mxu0 0.0
    %1155 = vmatprep.subr.mxu0 0.0
    %1156 = vmatpush2.msra.mxu0 0.0
    %1157 = vmatprep.subr.mxu0 0.0
    %1158 = vmatpush2.msra.mxu0 0.0
    %1159 = vmatprep.mubr.f32.mxu0 0.0
    %1160 = vmatmul.mubr.f32.gmra.mxu0 %v1045
    %v1161 = vpop.f32.mrf.mxu0
    %v1162 = vadd.f32 0.0, %v1161
    %v1163 = vpop.f32.mrf.mxu0
    %1164 = vmatprep.mubr.f32.mxu0 0.0
    %1165 = vmatmul.mubr.f32.gmra.mxu0 %v1048
    %v1166 = vpop.f32.mrf.mxu0
    %v1167 = vadd.f32 0.0, %v1166
    %v1168 = vpop.f32.mrf.mxu0
    %1169 = vmatprep.mubr.f32.mxu0 0.0
    %1170 = vmatmul.mubr.f32.gmra.mxu0 %v1051
    %v1171 = vpop.f32.mrf.mxu0
    %v1172 = vadd.f32 0.0, %v1171
    %v1173 = vpop.f32.mrf.mxu0
    %1174 = vmatprep.mubr.f32.mxu0 0.0
    %1175 = vmatmul.mubr.f32.gmra.mxu0 %v1054
    %v1176 = vpop.f32.mrf.mxu0
    %v1177 = vadd.f32 0.0, %v1176
    %v1178 = vpop.f32.mrf.mxu0
    %1179 = vmatprep.mubr.f32.mxu0 0.0
    %1180 = vmatmul.mubr.f32.gmra.mxu0 %v1057
    %v1181 = vpop.f32.mrf.mxu0
    %v1182 = vadd.f32 0.0, %v1181
    %v1183 = vpop.f32.mrf.mxu0
    %1184 = vmatprep.mubr.f32.mxu0 0.0
    %1185 = vmatmul.mubr.f32.gmra.mxu0 %v1060
    %v1186 = vpop.f32.mrf.mxu0
    %v1187 = vadd.f32 0.0, %v1186
    %v1188 = vpop.f32.mrf.mxu0
    %1189 = vmatprep.mubr.f32.mxu0 0.0
    %1190 = vmatmul.mubr.f32.gmra.mxu0 %v1063
    %v1191 = vpop.f32.mrf.mxu0
    %v1192 = vadd.f32 0.0, %v1191
    %v1193 = vpop.f32.mrf.mxu0
    %1194 = vmatprep.mubr.f32.mxu0 0.0
    %1195 = vmatmul.mubr.f32.gmra.mxu0 %v1066
    %v1196 = vpop.f32.mrf.mxu0
    %v1197 = vadd.f32 0.0, %v1196
    %v1198 = vpop.f32.mrf.mxu0
    %1199 = vmatprep.mubr.f32.mxu0 0.0
    %1200 = vmatmul.mubr.f32.gmra.mxu0 %v1069
    %v1201 = vpop.f32.mrf.mxu0
    %v1202 = vadd.f32 0.0, %v1201
    %v1203 = vpop.f32.mrf.mxu0
    %1204 = vmatprep.mubr.f32.mxu0 0.0
    %1205 = vmatmul.mubr.f32.gmra.mxu0 %v1072
    %v1206 = vpop.f32.mrf.mxu0
    %v1207 = vadd.f32 0.0, %v1206
    %v1208 = vpop.f32.mrf.mxu0
    %1209 = vmatprep.mubr.f32.mxu0 0.0
    %1210 = vmatmul.mubr.f32.gmra.mxu0 %v1075
    %v1211 = vpop.f32.mrf.mxu0
    %v1212 = vadd.f32 0.0, %v1211
    %v1213 = vpop.f32.mrf.mxu0
    %1214 = vmatprep.mubr.f32.mxu0 0.0
    %1215 = vmatmul.mubr.f32.gmra.mxu0 %v1078
    %v1216 = vpop.f32.mrf.mxu0
    %v1217 = vadd.f32 0.0, %v1216
    %v1218 = vpop.f32.mrf.mxu0
    %1219 = vmatprep.mubr.f32.mxu0 0.0
    %1220 = vmatmul.mubr.f32.gmra.mxu0 %v1081
    %v1221 = vpop.f32.mrf.mxu0
    %v1222 = vadd.f32 0.0, %v1221
    %v1223 = vpop.f32.mrf.mxu0
    %1224 = vmatprep.mubr.f32.mxu0 0.0
    %1225 = vmatmul.mubr.f32.gmra.mxu0 %v1084
    %v1226 = vpop.f32.mrf.mxu0
    %v1227 = vadd.f32 0.0, %v1226
    %v1228 = vpop.f32.mrf.mxu0
    %1229 = vmatprep.mubr.f32.mxu0 0.0
    %1230 = vmatmul.mubr.f32.gmra.mxu0 %v1087
    %v1231 = vpop.f32.mrf.mxu0
    %v1232 = vadd.f32 0.0, %v1231
    %v1233 = vpop.f32.mrf.mxu0
    %1234 = vmatprep.mubr.f32.mxu0 0.0
    %1235 = vmatmul.mubr.f32.gmra.mxu0 %v1090
    %v1236 = vpop.f32.mrf.mxu0
    %v1237 = vadd.f32 0.0, %v1236
    %v1238 = vpop.f32.mrf.mxu0
    %1239 = vdwg.mxu0
    %v1240 = vadd.f32 %v1010, %v1162
    %v1241 = vadd.f32 %v1011, %v1167
    %v1242 = vadd.f32 %v1012, %v1172
    %v1243 = vadd.f32 %v1013, %v1177
    %v1244 = vadd.f32 %v1014, %v1182
    %v1245 = vadd.f32 %v1015, %v1187
    %v1246 = vadd.f32 %v1016, %v1192
    %v1247 = vadd.f32 %v1017, %v1197
    %v1248 = vadd.f32 %v1018, %v1202
    %v1249 = vadd.f32 %v1019, %v1207
    %v1250 = vadd.f32 %v1020, %v1212
    %v1251 = vadd.f32 %v1021, %v1217
    %v1252 = vadd.f32 %v1022, %v1222
    %v1253 = vadd.f32 %v1023, %v1227
    %v1254 = vadd.f32 %v1024, %v1232
    %v1255 = vadd.f32 %v1025, %v1237
    %v1256 = vld [vmem:[%s312 + $0x1] sm:$0xff]
    %v1257 = vld [vmem:[%s312 + $0x11] sm:$0xff]
    %v1258 = vld [vmem:[%s312 + $0x21] sm:$0xff]
    %v1259 = vld [vmem:[%s312 + $0x31] sm:$0xff]
    %v1260 = vld [vmem:[%s312 + $0x41] sm:$0xff]
    %v1261 = vld [vmem:[%s312 + $0x51] sm:$0xff]
    %v1262 = vld [vmem:[%s312 + $0x61] sm:$0xff]
    %v1263 = vld [vmem:[%s312 + $0x71] sm:$0xff]
    %v1264 = vld [vmem:[%s312 + $0xa1] sm:$0xff]
    %v1265 = vld [vmem:[%s312 + $0xb1] sm:$0xff]
    %v1266 = vld [vmem:[%s312 + $0xc1] sm:$0xff]
    %v1267 = vld [vmem:[%s312 + $0xd1] sm:$0xff]
    %v1268 = vld [vmem:[%s312 + $0xe1] sm:$0xff]
    %v1269 = vld [vmem:[%s312 + $0xf1] sm:$0xff]
    %v1270 = vld [vmem:[%s312 + $0x101] sm:$0xff]
    %v1271 = vld [vmem:[%s312 + $0x111] sm:$0xff]
    %s1272 = scalar_lea.vmem %s1, 16
    %v1273 = vld [vmem:[%s1272] sm:$0xf]
    %v1275 = vsel %vm33, %v1256, 0
    %v1278 = vsel %vm33, %v1257, 0
    %v1281 = vsel %vm33, %v1258, 0
    %v1284 = vsel %vm33, %v1259, 0
    %v1287 = vsel %vm33, %v1260, 0
    %v1290 = vsel %vm33, %v1261, 0
    %v1293 = vsel %vm33, %v1262, 0
    %v1296 = vsel %vm33, %v1263, 0
    %v1299 = vsel %vm33, %v1264, 0
    %v1302 = vsel %vm33, %v1265, 0
    %v1305 = vsel %vm33, %v1266, 0
    %v1308 = vsel %vm33, %v1267, 0
    %v1311 = vsel %vm33, %v1268, 0
    %v1314 = vsel %vm33, %v1269, 0
    %v1317 = vsel %vm33, %v1270, 0
    %v1320 = vsel %vm33, %v1271, 0
    %v1323 = vsel %vm401, %v1273, 0
    %1325 = vmatprep.subr.mxu0 0.0
    %1326 = vmatpush1.msra.mxu0 0.0
    %1327 = vmatprep.subr.mxu0 0.0
    %1328 = vmatpush1.msra.mxu0 0.0
    %1329 = vmatprep.subr.mxu0 0.0
    %1330 = vmatpush1.msra.mxu0 0.0
    %1331 = vmatprep.subr.mxu0 0.0
    %1332 = vmatpush1.msra.mxu0 0.0
    %1333 = vmatprep.subr.mxu0 0.0
    %1334 = vmatpush1.msra.mxu0 0.0
    %1335 = vmatprep.subr.mxu0 0.0
    %1336 = vmatpush1.msra.mxu0 0.0
    %1337 = vmatprep.subr.mxu0 0.0
    %1338 = vmatpush1.msra.mxu0 0.0
    %1339 = vmatprep.subr.mxu0 0.0
    %1340 = vmatpush1.msra.mxu0 0.0
    %1341 = vmatprep.subr.mxu0 0.0
    %1342 = vmatpush1.msra.mxu0 0.0
    %1343 = vmatprep.subr.mxu0 0.0
    %1344 = vmatpush1.msra.mxu0 0.0
    %1345 = vmatprep.subr.mxu0 0.0
    %1346 = vmatpush1.msra.mxu0 0.0
    %1347 = vmatprep.subr.mxu0 0.0
    %1348 = vmatpush1.msra.mxu0 0.0
    %1349 = vmatprep.subr.mxu0 0.0
    %1350 = vmatpush1.msra.mxu0 0.0
    %1351 = vmatprep.subr.mxu0 0.0
    %1352 = vmatpush1.msra.mxu0 0.0
    %1353 = vmatprep.subr.mxu0 0.0
    %1354 = vmatpush1.msra.mxu0 0.0
    %1355 = vmatprep.subr.mxu0 0.0
    %1356 = vmatpush1.msra.mxu0 %v1323
    %1357 = vmatprep.subr.mxu0 0.0
    %1358 = vmatpush2.msra.mxu0 0.0
    %1359 = vmatprep.subr.mxu0 0.0
    %1360 = vmatpush2.msra.mxu0 0.0
    %1361 = vmatprep.subr.mxu0 0.0
    %1362 = vmatpush2.msra.mxu0 0.0
    %1363 = vmatprep.subr.mxu0 0.0
    %1364 = vmatpush2.msra.mxu0 0.0
    %1365 = vmatprep.subr.mxu0 0.0
    %1366 = vmatpush2.msra.mxu0 0.0
    %1367 = vmatprep.subr.mxu0 0.0
    %1368 = vmatpush2.msra.mxu0 0.0
    %1369 = vmatprep.subr.mxu0 0.0
    %1370 = vmatpush2.msra.mxu0 0.0
    %1371 = vmatprep.subr.mxu0 0.0
    %1372 = vmatpush2.msra.mxu0 0.0
    %1373 = vmatprep.subr.mxu0 0.0
    %1374 = vmatpush2.msra.mxu0 0.0
    %1375 = vmatprep.subr.mxu0 0.0
    %1376 = vmatpush2.msra.mxu0 0.0
    %1377 = vmatprep.subr.mxu0 0.0
    %1378 = vmatpush2.msra.mxu0 0.0
    %1379 = vmatprep.subr.mxu0 0.0
    %1380 = vmatpush2.msra.mxu0 0.0
    %1381 = vmatprep.subr.mxu0 0.0
    %1382 = vmatpush2.msra.mxu0 0.0
    %1383 = vmatprep.subr.mxu0 0.0
    %1384 = vmatpush2.msra.mxu0 0.0
    %1385 = vmatprep.subr.mxu0 0.0
    %1386 = vmatpush2.msra.mxu0 0.0
    %1387 = vmatprep.subr.mxu0 0.0
    %1388 = vmatpush2.msra.mxu0 0.0
    %1389 = vmatprep.mubr.f32.mxu0 0.0
    %1390 = vmatmul.mubr.f32.gmra.mxu0 %v1275
    %v1391 = vpop.f32.mrf.mxu0
    %v1392 = vadd.f32 0.0, %v1391
    %v1393 = vpop.f32.mrf.mxu0
    %1394 = vmatprep.mubr.f32.mxu0 0.0
    %1395 = vmatmul.mubr.f32.gmra.mxu0 %v1278
    %v1396 = vpop.f32.mrf.mxu0
    %v1397 = vadd.f32 0.0, %v1396
    %v1398 = vpop.f32.mrf.mxu0
    %1399 = vmatprep.mubr.f32.mxu0 0.0
    %1400 = vmatmul.mubr.f32.gmra.mxu0 %v1281
    %v1401 = vpop.f32.mrf.mxu0
    %v1402 = vadd.f32 0.0, %v1401
    %v1403 = vpop.f32.mrf.mxu0
    %1404 = vmatprep.mubr.f32.mxu0 0.0
    %1405 = vmatmul.mubr.f32.gmra.mxu0 %v1284
    %v1406 = vpop.f32.mrf.mxu0
    %v1407 = vadd.f32 0.0, %v1406
    %v1408 = vpop.f32.mrf.mxu0
    %1409 = vmatprep.mubr.f32.mxu0 0.0
    %1410 = vmatmul.mubr.f32.gmra.mxu0 %v1287
    %v1411 = vpop.f32.mrf.mxu0
    %v1412 = vadd.f32 0.0, %v1411
    %v1413 = vpop.f32.mrf.mxu0
    %1414 = vmatprep.mubr.f32.mxu0 0.0
    %1415 = vmatmul.mubr.f32.gmra.mxu0 %v1290
    %v1416 = vpop.f32.mrf.mxu0
    %v1417 = vadd.f32 0.0, %v1416
    %v1418 = vpop.f32.mrf.mxu0
    %1419 = vmatprep.mubr.f32.mxu0 0.0
    %1420 = vmatmul.mubr.f32.gmra.mxu0 %v1293
    %v1421 = vpop.f32.mrf.mxu0
    %v1422 = vadd.f32 0.0, %v1421
    %v1423 = vpop.f32.mrf.mxu0
    %1424 = vmatprep.mubr.f32.mxu0 0.0
    %1425 = vmatmul.mubr.f32.gmra.mxu0 %v1296
    %v1426 = vpop.f32.mrf.mxu0
    %v1427 = vadd.f32 0.0, %v1426
    %v1428 = vpop.f32.mrf.mxu0
    %1429 = vmatprep.mubr.f32.mxu0 0.0
    %1430 = vmatmul.mubr.f32.gmra.mxu0 %v1299
    %v1431 = vpop.f32.mrf.mxu0
    %v1432 = vadd.f32 0.0, %v1431
    %v1433 = vpop.f32.mrf.mxu0
    %1434 = vmatprep.mubr.f32.mxu0 0.0
    %1435 = vmatmul.mubr.f32.gmra.mxu0 %v1302
    %v1436 = vpop.f32.mrf.mxu0
    %v1437 = vadd.f32 0.0, %v1436
    %v1438 = vpop.f32.mrf.mxu0
    %1439 = vmatprep.mubr.f32.mxu0 0.0
    %1440 = vmatmul.mubr.f32.gmra.mxu0 %v1305
    %v1441 = vpop.f32.mrf.mxu0
    %v1442 = vadd.f32 0.0, %v1441
    %v1443 = vpop.f32.mrf.mxu0
    %1444 = vmatprep.mubr.f32.mxu0 0.0
    %1445 = vmatmul.mubr.f32.gmra.mxu0 %v1308
    %v1446 = vpop.f32.mrf.mxu0
    %v1447 = vadd.f32 0.0, %v1446
    %v1448 = vpop.f32.mrf.mxu0
    %1449 = vmatprep.mubr.f32.mxu0 0.0
    %1450 = vmatmul.mubr.f32.gmra.mxu0 %v1311
    %v1451 = vpop.f32.mrf.mxu0
    %v1452 = vadd.f32 0.0, %v1451
    %v1453 = vpop.f32.mrf.mxu0
    %1454 = vmatprep.mubr.f32.mxu0 0.0
    %1455 = vmatmul.mubr.f32.gmra.mxu0 %v1314
    %v1456 = vpop.f32.mrf.mxu0
    %v1457 = vadd.f32 0.0, %v1456
    %v1458 = vpop.f32.mrf.mxu0
    %1459 = vmatprep.mubr.f32.mxu0 0.0
    %1460 = vmatmul.mubr.f32.gmra.mxu0 %v1317
    %v1461 = vpop.f32.mrf.mxu0
    %v1462 = vadd.f32 0.0, %v1461
    %v1463 = vpop.f32.mrf.mxu0
    %1464 = vmatprep.mubr.f32.mxu0 0.0
    %1465 = vmatmul.mubr.f32.gmra.mxu0 %v1320
    %v1466 = vpop.f32.mrf.mxu0
    %v1467 = vadd.f32 0.0, %v1466
    %v1468 = vpop.f32.mrf.mxu0
    %1469 = vdwg.mxu0
    %v1470 = vadd.f32 %v1240, %v1392
    %v1471 = vadd.f32 %v1241, %v1397
    %v1472 = vadd.f32 %v1242, %v1402
    %v1473 = vadd.f32 %v1243, %v1407
    %v1474 = vadd.f32 %v1244, %v1412
    %v1475 = vadd.f32 %v1245, %v1417
    %v1476 = vadd.f32 %v1246, %v1422
    %v1477 = vadd.f32 %v1247, %v1427
    %v1478 = vadd.f32 %v1248, %v1432
    %v1479 = vadd.f32 %v1249, %v1437
    %v1480 = vadd.f32 %v1250, %v1442
    %v1481 = vadd.f32 %v1251, %v1447
    %v1482 = vadd.f32 %v1252, %v1452
    %v1483 = vadd.f32 %v1253, %v1457
    %v1484 = vadd.f32 %v1254, %v1462
    %v1485 = vadd.f32 %v1255, %v1467
    %v1486 = vld [vmem:[%s312 + $0x2] sm:$0xff]
    %v1487 = vld [vmem:[%s312 + $0x12] sm:$0xff]
    %v1488 = vld [vmem:[%s312 + $0x22] sm:$0xff]
    %v1489 = vld [vmem:[%s312 + $0x32] sm:$0xff]
    %v1490 = vld [vmem:[%s312 + $0x42] sm:$0xff]
    %v1491 = vld [vmem:[%s312 + $0x52] sm:$0xff]
    %v1492 = vld [vmem:[%s312 + $0x62] sm:$0xff]
    %v1493 = vld [vmem:[%s312 + $0x72] sm:$0xff]
    %v1494 = vld [vmem:[%s312 + $0xa2] sm:$0xff]
    %v1495 = vld [vmem:[%s312 + $0xb2] sm:$0xff]
    %v1496 = vld [vmem:[%s312 + $0xc2] sm:$0xff]
    %v1497 = vld [vmem:[%s312 + $0xd2] sm:$0xff]
    %v1498 = vld [vmem:[%s312 + $0xe2] sm:$0xff]
    %v1499 = vld [vmem:[%s312 + $0xf2] sm:$0xff]
    %v1500 = vld [vmem:[%s312 + $0x102] sm:$0xff]
    %v1501 = vld [vmem:[%s312 + $0x112] sm:$0xff]
    %s1502 = scalar_lea.vmem %s1, 20
    %v1503 = vld [vmem:[%s1502] sm:$0xf]
    %v1505 = vsel %vm33, %v1486, 0
    %v1508 = vsel %vm33, %v1487, 0
    %v1511 = vsel %vm33, %v1488, 0
    %v1514 = vsel %vm33, %v1489, 0
    %v1517 = vsel %vm33, %v1490, 0
    %v1520 = vsel %vm33, %v1491, 0
    %v1523 = vsel %vm33, %v1492, 0
    %v1526 = vsel %vm33, %v1493, 0
    %v1529 = vsel %vm33, %v1494, 0
    %v1532 = vsel %vm33, %v1495, 0
    %v1535 = vsel %vm33, %v1496, 0
    %v1538 = vsel %vm33, %v1497, 0
    %v1541 = vsel %vm33, %v1498, 0
    %v1544 = vsel %vm33, %v1499, 0
    %v1547 = vsel %vm33, %v1500, 0
    %v1550 = vsel %vm33, %v1501, 0
    %v1553 = vsel %vm401, %v1503, 0
    %1555 = vmatprep.subr.mxu0 0.0
    %1556 = vmatpush1.msra.mxu0 0.0
    %1557 = vmatprep.subr.mxu0 0.0
    %1558 = vmatpush1.msra.mxu0 0.0
    %1559 = vmatprep.subr.mxu0 0.0
    %1560 = vmatpush1.msra.mxu0 0.0
    %1561 = vmatprep.subr.mxu0 0.0
    %1562 = vmatpush1.msra.mxu0 0.0
    %1563 = vmatprep.subr.mxu0 0.0
    %1564 = vmatpush1.msra.mxu0 0.0
    %1565 = vmatprep.subr.mxu0 0.0
    %1566 = vmatpush1.msra.mxu0 0.0
    %1567 = vmatprep.subr.mxu0 0.0
    %1568 = vmatpush1.msra.mxu0 0.0
    %1569 = vmatprep.subr.mxu0 0.0
    %1570 = vmatpush1.msra.mxu0 0.0
    %1571 = vmatprep.subr.mxu0 0.0
    %1572 = vmatpush1.msra.mxu0 0.0
    %1573 = vmatprep.subr.mxu0 0.0
    %1574 = vmatpush1.msra.mxu0 0.0
    %1575 = vmatprep.subr.mxu0 0.0
    %1576 = vmatpush1.msra.mxu0 0.0
    %1577 = vmatprep.subr.mxu0 0.0
    %1578 = vmatpush1.msra.mxu0 0.0
    %1579 = vmatprep.subr.mxu0 0.0
    %1580 = vmatpush1.msra.mxu0 0.0
    %1581 = vmatprep.subr.mxu0 0.0
    %1582 = vmatpush1.msra.mxu0 0.0
    %1583 = vmatprep.subr.mxu0 0.0
    %1584 = vmatpush1.msra.mxu0 0.0
    %1585 = vmatprep.subr.mxu0 0.0
    %1586 = vmatpush1.msra.mxu0 %v1553
    %1587 = vmatprep.subr.mxu0 0.0
    %1588 = vmatpush2.msra.mxu0 0.0
    %1589 = vmatprep.subr.mxu0 0.0
    %1590 = vmatpush2.msra.mxu0 0.0
    %1591 = vmatprep.subr.mxu0 0.0
    %1592 = vmatpush2.msra.mxu0 0.0
    %1593 = vmatprep.subr.mxu0 0.0
    %1594 = vmatpush2.msra.mxu0 0.0
    %1595 = vmatprep.subr.mxu0 0.0
    %1596 = vmatpush2.msra.mxu0 0.0
    %1597 = vmatprep.subr.mxu0 0.0
    %1598 = vmatpush2.msra.mxu0 0.0
    %1599 = vmatprep.subr.mxu0 0.0
    %1600 = vmatpush2.msra.mxu0 0.0
    %1601 = vmatprep.subr.mxu0 0.0
    %1602 = vmatpush2.msra.mxu0 0.0
    %1603 = vmatprep.subr.mxu0 0.0
    %1604 = vmatpush2.msra.mxu0 0.0
    %1605 = vmatprep.subr.mxu0 0.0
    %1606 = vmatpush2.msra.mxu0 0.0
    %1607 = vmatprep.subr.mxu0 0.0
    %1608 = vmatpush2.msra.mxu0 0.0
    %1609 = vmatprep.subr.mxu0 0.0
    %1610 = vmatpush2.msra.mxu0 0.0
    %1611 = vmatprep.subr.mxu0 0.0
    %1612 = vmatpush2.msra.mxu0 0.0
    %1613 = vmatprep.subr.mxu0 0.0
    %1614 = vmatpush2.msra.mxu0 0.0
    %1615 = vmatprep.subr.mxu0 0.0
    %1616 = vmatpush2.msra.mxu0 0.0
    %1617 = vmatprep.subr.mxu0 0.0
    %1618 = vmatpush2.msra.mxu0 0.0
    %1619 = vmatprep.mubr.f32.mxu0 0.0
    %1620 = vmatmul.mubr.f32.gmra.mxu0 %v1505
    %v1621 = vpop.f32.mrf.mxu0
    %v1622 = vadd.f32 0.0, %v1621
    %v1623 = vpop.f32.mrf.mxu0
    %1624 = vmatprep.mubr.f32.mxu0 0.0
    %1625 = vmatmul.mubr.f32.gmra.mxu0 %v1508
    %v1626 = vpop.f32.mrf.mxu0
    %v1627 = vadd.f32 0.0, %v1626
    %v1628 = vpop.f32.mrf.mxu0
    %1629 = vmatprep.mubr.f32.mxu0 0.0
    %1630 = vmatmul.mubr.f32.gmra.mxu0 %v1511
    %v1631 = vpop.f32.mrf.mxu0
    %v1632 = vadd.f32 0.0, %v1631
    %v1633 = vpop.f32.mrf.mxu0
    %1634 = vmatprep.mubr.f32.mxu0 0.0
    %1635 = vmatmul.mubr.f32.gmra.mxu0 %v1514
    %v1636 = vpop.f32.mrf.mxu0
    %v1637 = vadd.f32 0.0, %v1636
    %v1638 = vpop.f32.mrf.mxu0
    %1639 = vmatprep.mubr.f32.mxu0 0.0
    %1640 = vmatmul.mubr.f32.gmra.mxu0 %v1517
    %v1641 = vpop.f32.mrf.mxu0
    %v1642 = vadd.f32 0.0, %v1641
    %v1643 = vpop.f32.mrf.mxu0
    %1644 = vmatprep.mubr.f32.mxu0 0.0
    %1645 = vmatmul.mubr.f32.gmra.mxu0 %v1520
    %v1646 = vpop.f32.mrf.mxu0
    %v1647 = vadd.f32 0.0, %v1646
    %v1648 = vpop.f32.mrf.mxu0
    %1649 = vmatprep.mubr.f32.mxu0 0.0
    %1650 = vmatmul.mubr.f32.gmra.mxu0 %v1523
    %v1651 = vpop.f32.mrf.mxu0
    %v1652 = vadd.f32 0.0, %v1651
    %v1653 = vpop.f32.mrf.mxu0
    %1654 = vmatprep.mubr.f32.mxu0 0.0
    %1655 = vmatmul.mubr.f32.gmra.mxu0 %v1526
    %v1656 = vpop.f32.mrf.mxu0
    %v1657 = vadd.f32 0.0, %v1656
    %v1658 = vpop.f32.mrf.mxu0
    %1659 = vmatprep.mubr.f32.mxu0 0.0
    %1660 = vmatmul.mubr.f32.gmra.mxu0 %v1529
    %v1661 = vpop.f32.mrf.mxu0
    %v1662 = vadd.f32 0.0, %v1661
    %v1663 = vpop.f32.mrf.mxu0
    %1664 = vmatprep.mubr.f32.mxu0 0.0
    %1665 = vmatmul.mubr.f32.gmra.mxu0 %v1532
    %v1666 = vpop.f32.mrf.mxu0
    %v1667 = vadd.f32 0.0, %v1666
    %v1668 = vpop.f32.mrf.mxu0
    %1669 = vmatprep.mubr.f32.mxu0 0.0
    %1670 = vmatmul.mubr.f32.gmra.mxu0 %v1535
    %v1671 = vpop.f32.mrf.mxu0
    %v1672 = vadd.f32 0.0, %v1671
    %v1673 = vpop.f32.mrf.mxu0
    %1674 = vmatprep.mubr.f32.mxu0 0.0
    %1675 = vmatmul.mubr.f32.gmra.mxu0 %v1538
    %v1676 = vpop.f32.mrf.mxu0
    %v1677 = vadd.f32 0.0, %v1676
    %v1678 = vpop.f32.mrf.mxu0
    %1679 = vmatprep.mubr.f32.mxu0 0.0
    %1680 = vmatmul.mubr.f32.gmra.mxu0 %v1541
    %v1681 = vpop.f32.mrf.mxu0
    %v1682 = vadd.f32 0.0, %v1681
    %v1683 = vpop.f32.mrf.mxu0
    %1684 = vmatprep.mubr.f32.mxu0 0.0
    %1685 = vmatmul.mubr.f32.gmra.mxu0 %v1544
    %v1686 = vpop.f32.mrf.mxu0
    %v1687 = vadd.f32 0.0, %v1686
    %v1688 = vpop.f32.mrf.mxu0
    %1689 = vmatprep.mubr.f32.mxu0 0.0
    %1690 = vmatmul.mubr.f32.gmra.mxu0 %v1547
    %v1691 = vpop.f32.mrf.mxu0
    %v1692 = vadd.f32 0.0, %v1691
    %v1693 = vpop.f32.mrf.mxu0
    %1694 = vmatprep.mubr.f32.mxu0 0.0
    %1695 = vmatmul.mubr.f32.gmra.mxu0 %v1550
    %v1696 = vpop.f32.mrf.mxu0
    %v1697 = vadd.f32 0.0, %v1696
    %v1698 = vpop.f32.mrf.mxu0
    %1699 = vdwg.mxu0
    %v1700 = vadd.f32 %v1470, %v1622
    %v1701 = vadd.f32 %v1471, %v1627
    %v1702 = vadd.f32 %v1472, %v1632
    %v1703 = vadd.f32 %v1473, %v1637
    %v1704 = vadd.f32 %v1474, %v1642
    %v1705 = vadd.f32 %v1475, %v1647
    %v1706 = vadd.f32 %v1476, %v1652
    %v1707 = vadd.f32 %v1477, %v1657
    %v1708 = vadd.f32 %v1478, %v1662
    %v1709 = vadd.f32 %v1479, %v1667
    %v1710 = vadd.f32 %v1480, %v1672
    %v1711 = vadd.f32 %v1481, %v1677
    %v1712 = vadd.f32 %v1482, %v1682
    %v1713 = vadd.f32 %v1483, %v1687
    %v1714 = vadd.f32 %v1484, %v1692
    %v1715 = vadd.f32 %v1485, %v1697
    %s1716 = scalar_lea.vmem [#allocation2], 32
    %v1717 = vld [vmem:[%s1716] sm:$0xff]
    %v1718 = vld [vmem:[%s1716 + $0x10] sm:$0xff]
    %v1719 = vld [vmem:[%s1716 + $0x20] sm:$0xff]
    %v1720 = vld [vmem:[%s1716 + $0x30] sm:$0xff]
    %v1721 = vld [vmem:[%s1716 + $0x40] sm:$0xff]
    %v1722 = vld [vmem:[%s1716 + $0x50] sm:$0xff]
    %v1723 = vld [vmem:[%s1716 + $0x60] sm:$0xff]
    %v1724 = vld [vmem:[%s1716 + $0x70] sm:$0xff]
    %v1725 = vld [vmem:[%s1716 + $0xa0] sm:$0xff]
    %v1726 = vld [vmem:[%s1716 + $0xb0] sm:$0xff]
    %v1727 = vld [vmem:[%s1716 + $0xc0] sm:$0xff]
    %v1728 = vld [vmem:[%s1716 + $0xd0] sm:$0xff]
    %v1729 = vld [vmem:[%s1716 + $0xe0] sm:$0xff]
    %v1730 = vld [vmem:[%s1716 + $0xf0] sm:$0xff]
    %v1731 = vld [vmem:[%s1716 + $0x100] sm:$0xff]
    %v1732 = vld [vmem:[%s1716 + $0x110] sm:$0xff]
    %s1733 = scalar_lea.vmem %s1, 24
    %v1734 = vld [vmem:[%s1733] sm:$0xf]
    %v1736 = vsel %vm33, %v1717, 0
    %v1739 = vsel %vm33, %v1718, 0
    %v1742 = vsel %vm33, %v1719, 0
    %v1745 = vsel %vm33, %v1720, 0
    %v1748 = vsel %vm33, %v1721, 0
    %v1751 = vsel %vm33, %v1722, 0
    %v1754 = vsel %vm33, %v1723, 0
    %v1757 = vsel %vm33, %v1724, 0
    %v1760 = vsel %vm33, %v1725, 0
    %v1763 = vsel %vm33, %v1726, 0
    %v1766 = vsel %vm33, %v1727, 0
    %v1769 = vsel %vm33, %v1728, 0
    %v1772 = vsel %vm33, %v1729, 0
    %v1775 = vsel %vm33, %v1730, 0
    %v1778 = vsel %vm33, %v1731, 0
    %v1781 = vsel %vm33, %v1732, 0
    %v1784 = vsel %vm401, %v1734, 0
    %1786 = vmatprep.subr.mxu0 0.0
    %1787 = vmatpush1.msra.mxu0 0.0
    %1788 = vmatprep.subr.mxu0 0.0
    %1789 = vmatpush1.msra.mxu0 0.0
    %1790 = vmatprep.subr.mxu0 0.0
    %1791 = vmatpush1.msra.mxu0 0.0
    %1792 = vmatprep.subr.mxu0 0.0
    %1793 = vmatpush1.msra.mxu0 0.0
    %1794 = vmatprep.subr.mxu0 0.0
    %1795 = vmatpush1.msra.mxu0 0.0
    %1796 = vmatprep.subr.mxu0 0.0
    %1797 = vmatpush1.msra.mxu0 0.0
    %1798 = vmatprep.subr.mxu0 0.0
    %1799 = vmatpush1.msra.mxu0 0.0
    %1800 = vmatprep.subr.mxu0 0.0
    %1801 = vmatpush1.msra.mxu0 0.0
    %1802 = vmatprep.subr.mxu0 0.0
    %1803 = vmatpush1.msra.mxu0 0.0
    %1804 = vmatprep.subr.mxu0 0.0
    %1805 = vmatpush1.msra.mxu0 0.0
    %1806 = vmatprep.subr.mxu0 0.0
    %1807 = vmatpush1.msra.mxu0 0.0
    %1808 = vmatprep.subr.mxu0 0.0
    %1809 = vmatpush1.msra.mxu0 0.0
    %1810 = vmatprep.subr.mxu0 0.0
    %1811 = vmatpush1.msra.mxu0 0.0
    %1812 = vmatprep.subr.mxu0 0.0
    %1813 = vmatpush1.msra.mxu0 0.0
    %1814 = vmatprep.subr.mxu0 0.0
    %1815 = vmatpush1.msra.mxu0 0.0
    %1816 = vmatprep.subr.mxu0 0.0
    %1817 = vmatpush1.msra.mxu0 %v1784
    %1818 = vmatprep.subr.mxu0 0.0
    %1819 = vmatpush2.msra.mxu0 0.0
    %1820 = vmatprep.subr.mxu0 0.0
    %1821 = vmatpush2.msra.mxu0 0.0
    %1822 = vmatprep.subr.mxu0 0.0
    %1823 = vmatpush2.msra.mxu0 0.0
    %1824 = vmatprep.subr.mxu0 0.0
    %1825 = vmatpush2.msra.mxu0 0.0
    %1826 = vmatprep.subr.mxu0 0.0
    %1827 = vmatpush2.msra.mxu0 0.0
    %1828 = vmatprep.subr.mxu0 0.0
    %1829 = vmatpush2.msra.mxu0 0.0
    %1830 = vmatprep.subr.mxu0 0.0
    %1831 = vmatpush2.msra.mxu0 0.0
    %1832 = vmatprep.subr.mxu0 0.0
    %1833 = vmatpush2.msra.mxu0 0.0
    %1834 = vmatprep.subr.mxu0 0.0
    %1835 = vmatpush2.msra.mxu0 0.0
    %1836 = vmatprep.subr.mxu0 0.0
    %1837 = vmatpush2.msra.mxu0 0.0
    %1838 = vmatprep.subr.mxu0 0.0
    %1839 = vmatpush2.msra.mxu0 0.0
    %1840 = vmatprep.subr.mxu0 0.0
    %1841 = vmatpush2.msra.mxu0 0.0
    %1842 = vmatprep.subr.mxu0 0.0
    %1843 = vmatpush2.msra.mxu0 0.0
    %1844 = vmatprep.subr.mxu0 0.0
    %1845 = vmatpush2.msra.mxu0 0.0
    %1846 = vmatprep.subr.mxu0 0.0
    %1847 = vmatpush2.msra.mxu0 0.0
    %1848 = vmatprep.subr.mxu0 0.0
    %1849 = vmatpush2.msra.mxu0 0.0
    %1850 = vmatprep.mubr.f32.mxu0 0.0
    %1851 = vmatmul.mubr.f32.gmra.mxu0 %v1736
    %v1852 = vpop.f32.mrf.mxu0
    %v1853 = vadd.f32 0.0, %v1852
    %v1854 = vpop.f32.mrf.mxu0
    %1855 = vmatprep.mubr.f32.mxu0 0.0
    %1856 = vmatmul.mubr.f32.gmra.mxu0 %v1739
    %v1857 = vpop.f32.mrf.mxu0
    %v1858 = vadd.f32 0.0, %v1857
    %v1859 = vpop.f32.mrf.mxu0
    %1860 = vmatprep.mubr.f32.mxu0 0.0
    %1861 = vmatmul.mubr.f32.gmra.mxu0 %v1742
    %v1862 = vpop.f32.mrf.mxu0
    %v1863 = vadd.f32 0.0, %v1862
    %v1864 = vpop.f32.mrf.mxu0
    %1865 = vmatprep.mubr.f32.mxu0 0.0
    %1866 = vmatmul.mubr.f32.gmra.mxu0 %v1745
    %v1867 = vpop.f32.mrf.mxu0
    %v1868 = vadd.f32 0.0, %v1867
    %v1869 = vpop.f32.mrf.mxu0
    %1870 = vmatprep.mubr.f32.mxu0 0.0
    %1871 = vmatmul.mubr.f32.gmra.mxu0 %v1748
    %v1872 = vpop.f32.mrf.mxu0
    %v1873 = vadd.f32 0.0, %v1872
    %v1874 = vpop.f32.mrf.mxu0
    %1875 = vmatprep.mubr.f32.mxu0 0.0
    %1876 = vmatmul.mubr.f32.gmra.mxu0 %v1751
    %v1877 = vpop.f32.mrf.mxu0
    %v1878 = vadd.f32 0.0, %v1877
    %v1879 = vpop.f32.mrf.mxu0
    %1880 = vmatprep.mubr.f32.mxu0 0.0
    %1881 = vmatmul.mubr.f32.gmra.mxu0 %v1754
    %v1882 = vpop.f32.mrf.mxu0
    %v1883 = vadd.f32 0.0, %v1882
    %v1884 = vpop.f32.mrf.mxu0
    %1885 = vmatprep.mubr.f32.mxu0 0.0
    %1886 = vmatmul.mubr.f32.gmra.mxu0 %v1757
    %v1887 = vpop.f32.mrf.mxu0
    %v1888 = vadd.f32 0.0, %v1887
    %v1889 = vpop.f32.mrf.mxu0
    %1890 = vmatprep.mubr.f32.mxu0 0.0
    %1891 = vmatmul.mubr.f32.gmra.mxu0 %v1760
    %v1892 = vpop.f32.mrf.mxu0
    %v1893 = vadd.f32 0.0, %v1892
    %v1894 = vpop.f32.mrf.mxu0
    %1895 = vmatprep.mubr.f32.mxu0 0.0
    %1896 = vmatmul.mubr.f32.gmra.mxu0 %v1763
    %v1897 = vpop.f32.mrf.mxu0
    %v1898 = vadd.f32 0.0, %v1897
    %v1899 = vpop.f32.mrf.mxu0
    %1900 = vmatprep.mubr.f32.mxu0 0.0
    %1901 = vmatmul.mubr.f32.gmra.mxu0 %v1766
    %v1902 = vpop.f32.mrf.mxu0
    %v1903 = vadd.f32 0.0, %v1902
    %v1904 = vpop.f32.mrf.mxu0
    %1905 = vmatprep.mubr.f32.mxu0 0.0
    %1906 = vmatmul.mubr.f32.gmra.mxu0 %v1769
    %v1907 = vpop.f32.mrf.mxu0
    %v1908 = vadd.f32 0.0, %v1907
    %v1909 = vpop.f32.mrf.mxu0
    %1910 = vmatprep.mubr.f32.mxu0 0.0
    %1911 = vmatmul.mubr.f32.gmra.mxu0 %v1772
    %v1912 = vpop.f32.mrf.mxu0
    %v1913 = vadd.f32 0.0, %v1912
    %v1914 = vpop.f32.mrf.mxu0
    %1915 = vmatprep.mubr.f32.mxu0 0.0
    %1916 = vmatmul.mubr.f32.gmra.mxu0 %v1775
    %v1917 = vpop.f32.mrf.mxu0
    %v1918 = vadd.f32 0.0, %v1917
    %v1919 = vpop.f32.mrf.mxu0
    %1920 = vmatprep.mubr.f32.mxu0 0.0
    %1921 = vmatmul.mubr.f32.gmra.mxu0 %v1778
    %v1922 = vpop.f32.mrf.mxu0
    %v1923 = vadd.f32 0.0, %v1922
    %v1924 = vpop.f32.mrf.mxu0
    %1925 = vmatprep.mubr.f32.mxu0 0.0
    %1926 = vmatmul.mubr.f32.gmra.mxu0 %v1781
    %v1927 = vpop.f32.mrf.mxu0
    %v1928 = vadd.f32 0.0, %v1927
    %v1929 = vpop.f32.mrf.mxu0
    %1930 = vdwg.mxu0
    %v1931 = vadd.f32 %v1700, %v1853
    %v1932 = vadd.f32 %v1701, %v1858
    %v1933 = vadd.f32 %v1702, %v1863
    %v1934 = vadd.f32 %v1703, %v1868
    %v1935 = vadd.f32 %v1704, %v1873
    %v1936 = vadd.f32 %v1705, %v1878
    %v1937 = vadd.f32 %v1706, %v1883
    %v1938 = vadd.f32 %v1707, %v1888
    %v1939 = vadd.f32 %v1708, %v1893
    %v1940 = vadd.f32 %v1709, %v1898
    %v1941 = vadd.f32 %v1710, %v1903
    %v1942 = vadd.f32 %v1711, %v1908
    %v1943 = vadd.f32 %v1712, %v1913
    %v1944 = vadd.f32 %v1713, %v1918
    %v1945 = vadd.f32 %v1714, %v1923
    %v1946 = vadd.f32 %v1715, %v1928
    %v1947 = vld [vmem:[%s1716 + $0x1] sm:$0xff]
    %v1948 = vld [vmem:[%s1716 + $0x11] sm:$0xff]
    %v1949 = vld [vmem:[%s1716 + $0x21] sm:$0xff]
    %v1950 = vld [vmem:[%s1716 + $0x31] sm:$0xff]
    %v1951 = vld [vmem:[%s1716 + $0x41] sm:$0xff]
    %v1952 = vld [vmem:[%s1716 + $0x51] sm:$0xff]
    %v1953 = vld [vmem:[%s1716 + $0x61] sm:$0xff]
    %v1954 = vld [vmem:[%s1716 + $0x71] sm:$0xff]
    %v1955 = vld [vmem:[%s1716 + $0xa1] sm:$0xff]
    %v1956 = vld [vmem:[%s1716 + $0xb1] sm:$0xff]
    %v1957 = vld [vmem:[%s1716 + $0xc1] sm:$0xff]
    %v1958 = vld [vmem:[%s1716 + $0xd1] sm:$0xff]
    %v1959 = vld [vmem:[%s1716 + $0xe1] sm:$0xff]
    %v1960 = vld [vmem:[%s1716 + $0xf1] sm:$0xff]
    %v1961 = vld [vmem:[%s1716 + $0x101] sm:$0xff]
    %v1962 = vld [vmem:[%s1716 + $0x111] sm:$0xff]
    %s1963 = scalar_lea.vmem %s1, 28
    %v1964 = vld [vmem:[%s1963] sm:$0xf]
    %v1966 = vsel %vm33, %v1947, 0
    %v1969 = vsel %vm33, %v1948, 0
    %v1972 = vsel %vm33, %v1949, 0
    %v1975 = vsel %vm33, %v1950, 0
    %v1978 = vsel %vm33, %v1951, 0
    %v1981 = vsel %vm33, %v1952, 0
    %v1984 = vsel %vm33, %v1953, 0
    %v1987 = vsel %vm33, %v1954, 0
    %v1990 = vsel %vm33, %v1955, 0
    %v1993 = vsel %vm33, %v1956, 0
    %v1996 = vsel %vm33, %v1957, 0
    %v1999 = vsel %vm33, %v1958, 0
    %v2002 = vsel %vm33, %v1959, 0
    %v2005 = vsel %vm33, %v1960, 0
    %v2008 = vsel %vm33, %v1961, 0
    %v2011 = vsel %vm33, %v1962, 0
    %v2014 = vsel %vm401, %v1964, 0
    %2016 = vmatprep.subr.mxu0 0.0
    %2017 = vmatpush1.msra.mxu0 0.0
    %2018 = vmatprep.subr.mxu0 0.0
    %2019 = vmatpush1.msra.mxu0 0.0
    %2020 = vmatprep.subr.mxu0 0.0
    %2021 = vmatpush1.msra.mxu0 0.0
    %2022 = vmatprep.subr.mxu0 0.0
    %2023 = vmatpush1.msra.mxu0 0.0
    %2024 = vmatprep.subr.mxu0 0.0
    %2025 = vmatpush1.msra.mxu0 0.0
    %2026 = vmatprep.subr.mxu0 0.0
    %2027 = vmatpush1.msra.mxu0 0.0
    %2028 = vmatprep.subr.mxu0 0.0
    %2029 = vmatpush1.msra.mxu0 0.0
    %2030 = vmatprep.subr.mxu0 0.0
    %2031 = vmatpush1.msra.mxu0 0.0
    %2032 = vmatprep.subr.mxu0 0.0
    %2033 = vmatpush1.msra.mxu0 0.0
    %2034 = vmatprep.subr.mxu0 0.0
    %2035 = vmatpush1.msra.mxu0 0.0
    %2036 = vmatprep.subr.mxu0 0.0
    %2037 = vmatpush1.msra.mxu0 0.0
    %2038 = vmatprep.subr.mxu0 0.0
    %2039 = vmatpush1.msra.mxu0 0.0
    %2040 = vmatprep.subr.mxu0 0.0
    %2041 = vmatpush1.msra.mxu0 0.0
    %2042 = vmatprep.subr.mxu0 0.0
    %2043 = vmatpush1.msra.mxu0 0.0
    %2044 = vmatprep.subr.mxu0 0.0
    %2045 = vmatpush1.msra.mxu0 0.0
    %2046 = vmatprep.subr.mxu0 0.0
    %2047 = vmatpush1.msra.mxu0 %v2014
    %2048 = vmatprep.subr.mxu0 0.0
    %2049 = vmatpush2.msra.mxu0 0.0
    %2050 = vmatprep.subr.mxu0 0.0
    %2051 = vmatpush2.msra.mxu0 0.0
    %2052 = vmatprep.subr.mxu0 0.0
    %2053 = vmatpush2.msra.mxu0 0.0
    %2054 = vmatprep.subr.mxu0 0.0
    %2055 = vmatpush2.msra.mxu0 0.0
    %2056 = vmatprep.subr.mxu0 0.0
    %2057 = vmatpush2.msra.mxu0 0.0
    %2058 = vmatprep.subr.mxu0 0.0
    %2059 = vmatpush2.msra.mxu0 0.0
    %2060 = vmatprep.subr.mxu0 0.0
    %2061 = vmatpush2.msra.mxu0 0.0
    %2062 = vmatprep.subr.mxu0 0.0
    %2063 = vmatpush2.msra.mxu0 0.0
    %2064 = vmatprep.subr.mxu0 0.0
    %2065 = vmatpush2.msra.mxu0 0.0
    %2066 = vmatprep.subr.mxu0 0.0
    %2067 = vmatpush2.msra.mxu0 0.0
    %2068 = vmatprep.subr.mxu0 0.0
    %2069 = vmatpush2.msra.mxu0 0.0
    %2070 = vmatprep.subr.mxu0 0.0
    %2071 = vmatpush2.msra.mxu0 0.0
    %2072 = vmatprep.subr.mxu0 0.0
    %2073 = vmatpush2.msra.mxu0 0.0
    %2074 = vmatprep.subr.mxu0 0.0
    %2075 = vmatpush2.msra.mxu0 0.0
    %2076 = vmatprep.subr.mxu0 0.0
    %2077 = vmatpush2.msra.mxu0 0.0
    %2078 = vmatprep.subr.mxu0 0.0
    %2079 = vmatpush2.msra.mxu0 0.0
    %2080 = vmatprep.mubr.f32.mxu0 0.0
    %2081 = vmatmul.mubr.f32.gmra.mxu0 %v1966
    %v2082 = vpop.f32.mrf.mxu0
    %v2083 = vadd.f32 0.0, %v2082
    %v2084 = vpop.f32.mrf.mxu0
    %2085 = vmatprep.mubr.f32.mxu0 0.0
    %2086 = vmatmul.mubr.f32.gmra.mxu0 %v1969
    %v2087 = vpop.f32.mrf.mxu0
    %v2088 = vadd.f32 0.0, %v2087
    %v2089 = vpop.f32.mrf.mxu0
    %2090 = vmatprep.mubr.f32.mxu0 0.0
    %2091 = vmatmul.mubr.f32.gmra.mxu0 %v1972
    %v2092 = vpop.f32.mrf.mxu0
    %v2093 = vadd.f32 0.0, %v2092
    %v2094 = vpop.f32.mrf.mxu0
    %2095 = vmatprep.mubr.f32.mxu0 0.0
    %2096 = vmatmul.mubr.f32.gmra.mxu0 %v1975
    %v2097 = vpop.f32.mrf.mxu0
    %v2098 = vadd.f32 0.0, %v2097
    %v2099 = vpop.f32.mrf.mxu0
    %2100 = vmatprep.mubr.f32.mxu0 0.0
    %2101 = vmatmul.mubr.f32.gmra.mxu0 %v1978
    %v2102 = vpop.f32.mrf.mxu0
    %v2103 = vadd.f32 0.0, %v2102
    %v2104 = vpop.f32.mrf.mxu0
    %2105 = vmatprep.mubr.f32.mxu0 0.0
    %2106 = vmatmul.mubr.f32.gmra.mxu0 %v1981
    %v2107 = vpop.f32.mrf.mxu0
    %v2108 = vadd.f32 0.0, %v2107
    %v2109 = vpop.f32.mrf.mxu0
    %2110 = vmatprep.mubr.f32.mxu0 0.0
    %2111 = vmatmul.mubr.f32.gmra.mxu0 %v1984
    %v2112 = vpop.f32.mrf.mxu0
    %v2113 = vadd.f32 0.0, %v2112
    %v2114 = vpop.f32.mrf.mxu0
    %2115 = vmatprep.mubr.f32.mxu0 0.0
    %2116 = vmatmul.mubr.f32.gmra.mxu0 %v1987
    %v2117 = vpop.f32.mrf.mxu0
    %v2118 = vadd.f32 0.0, %v2117
    %v2119 = vpop.f32.mrf.mxu0
    %2120 = vmatprep.mubr.f32.mxu0 0.0
    %2121 = vmatmul.mubr.f32.gmra.mxu0 %v1990
    %v2122 = vpop.f32.mrf.mxu0
    %v2123 = vadd.f32 0.0, %v2122
    %v2124 = vpop.f32.mrf.mxu0
    %2125 = vmatprep.mubr.f32.mxu0 0.0
    %2126 = vmatmul.mubr.f32.gmra.mxu0 %v1993
    %v2127 = vpop.f32.mrf.mxu0
    %v2128 = vadd.f32 0.0, %v2127
    %v2129 = vpop.f32.mrf.mxu0
    %2130 = vmatprep.mubr.f32.mxu0 0.0
    %2131 = vmatmul.mubr.f32.gmra.mxu0 %v1996
    %v2132 = vpop.f32.mrf.mxu0
    %v2133 = vadd.f32 0.0, %v2132
    %v2134 = vpop.f32.mrf.mxu0
    %2135 = vmatprep.mubr.f32.mxu0 0.0
    %2136 = vmatmul.mubr.f32.gmra.mxu0 %v1999
    %v2137 = vpop.f32.mrf.mxu0
    %v2138 = vadd.f32 0.0, %v2137
    %v2139 = vpop.f32.mrf.mxu0
    %2140 = vmatprep.mubr.f32.mxu0 0.0
    %2141 = vmatmul.mubr.f32.gmra.mxu0 %v2002
    %v2142 = vpop.f32.mrf.mxu0
    %v2143 = vadd.f32 0.0, %v2142
    %v2144 = vpop.f32.mrf.mxu0
    %2145 = vmatprep.mubr.f32.mxu0 0.0
    %2146 = vmatmul.mubr.f32.gmra.mxu0 %v2005
    %v2147 = vpop.f32.mrf.mxu0
    %v2148 = vadd.f32 0.0, %v2147
    %v2149 = vpop.f32.mrf.mxu0
    %2150 = vmatprep.mubr.f32.mxu0 0.0
    %2151 = vmatmul.mubr.f32.gmra.mxu0 %v2008
    %v2152 = vpop.f32.mrf.mxu0
    %v2153 = vadd.f32 0.0, %v2152
    %v2154 = vpop.f32.mrf.mxu0
    %2155 = vmatprep.mubr.f32.mxu0 0.0
    %2156 = vmatmul.mubr.f32.gmra.mxu0 %v2011
    %v2157 = vpop.f32.mrf.mxu0
    %v2158 = vadd.f32 0.0, %v2157
    %v2159 = vpop.f32.mrf.mxu0
    %2160 = vdwg.mxu0
    %v2161 = vadd.f32 %v1931, %v2083
    %v2162 = vadd.f32 %v1932, %v2088
    %v2163 = vadd.f32 %v1933, %v2093
    %v2164 = vadd.f32 %v1934, %v2098
    %v2165 = vadd.f32 %v1935, %v2103
    %v2166 = vadd.f32 %v1936, %v2108
    %v2167 = vadd.f32 %v1937, %v2113
    %v2168 = vadd.f32 %v1938, %v2118
    %v2169 = vadd.f32 %v1939, %v2123
    %v2170 = vadd.f32 %v1940, %v2128
    %v2171 = vadd.f32 %v1941, %v2133
    %v2172 = vadd.f32 %v1942, %v2138
    %v2173 = vadd.f32 %v1943, %v2143
    %v2174 = vadd.f32 %v1944, %v2148
    %v2175 = vadd.f32 %v1945, %v2153
    %v2176 = vadd.f32 %v1946, %v2158
    %v2177 = vld [vmem:[%s1716 + $0x2] sm:$0xff]
    %v2178 = vld [vmem:[%s1716 + $0x12] sm:$0xff]
    %v2179 = vld [vmem:[%s1716 + $0x22] sm:$0xff]
    %v2180 = vld [vmem:[%s1716 + $0x32] sm:$0xff]
    %v2181 = vld [vmem:[%s1716 + $0x42] sm:$0xff]
    %v2182 = vld [vmem:[%s1716 + $0x52] sm:$0xff]
    %v2183 = vld [vmem:[%s1716 + $0x62] sm:$0xff]
    %v2184 = vld [vmem:[%s1716 + $0x72] sm:$0xff]
    %v2185 = vld [vmem:[%s1716 + $0xa2] sm:$0xff]
    %v2186 = vld [vmem:[%s1716 + $0xb2] sm:$0xff]
    %v2187 = vld [vmem:[%s1716 + $0xc2] sm:$0xff]
    %v2188 = vld [vmem:[%s1716 + $0xd2] sm:$0xff]
    %v2189 = vld [vmem:[%s1716 + $0xe2] sm:$0xff]
    %v2190 = vld [vmem:[%s1716 + $0xf2] sm:$0xff]
    %v2191 = vld [vmem:[%s1716 + $0x102] sm:$0xff]
    %v2192 = vld [vmem:[%s1716 + $0x112] sm:$0xff]
    %s2193 = scalar_lea.vmem %s1, 32
    %v2194 = vld [vmem:[%s2193] sm:$0xf]
    %v2196 = vsel %vm33, %v2177, 0
    %v2199 = vsel %vm33, %v2178, 0
    %v2202 = vsel %vm33, %v2179, 0
    %v2205 = vsel %vm33, %v2180, 0
    %v2208 = vsel %vm33, %v2181, 0
    %v2211 = vsel %vm33, %v2182, 0
    %v2214 = vsel %vm33, %v2183, 0
    %v2217 = vsel %vm33, %v2184, 0
    %v2220 = vsel %vm33, %v2185, 0
    %v2223 = vsel %vm33, %v2186, 0
    %v2226 = vsel %vm33, %v2187, 0
    %v2229 = vsel %vm33, %v2188, 0
    %v2232 = vsel %vm33, %v2189, 0
    %v2235 = vsel %vm33, %v2190, 0
    %v2238 = vsel %vm33, %v2191, 0
    %v2241 = vsel %vm33, %v2192, 0
    %v2244 = vsel %vm401, %v2194, 0
    %2246 = vmatprep.subr.mxu0 0.0
    %2247 = vmatpush1.msra.mxu0 0.0
    %2248 = vmatprep.subr.mxu0 0.0
    %2249 = vmatpush1.msra.mxu0 0.0
    %2250 = vmatprep.subr.mxu0 0.0
    %2251 = vmatpush1.msra.mxu0 0.0
    %2252 = vmatprep.subr.mxu0 0.0
    %2253 = vmatpush1.msra.mxu0 0.0
    %2254 = vmatprep.subr.mxu0 0.0
    %2255 = vmatpush1.msra.mxu0 0.0
    %2256 = vmatprep.subr.mxu0 0.0
    %2257 = vmatpush1.msra.mxu0 0.0
    %2258 = vmatprep.subr.mxu0 0.0
    %2259 = vmatpush1.msra.mxu0 0.0
    %2260 = vmatprep.subr.mxu0 0.0
    %2261 = vmatpush1.msra.mxu0 0.0
    %2262 = vmatprep.subr.mxu0 0.0
    %2263 = vmatpush1.msra.mxu0 0.0
    %2264 = vmatprep.subr.mxu0 0.0
    %2265 = vmatpush1.msra.mxu0 0.0
    %2266 = vmatprep.subr.mxu0 0.0
    %2267 = vmatpush1.msra.mxu0 0.0
    %2268 = vmatprep.subr.mxu0 0.0
    %2269 = vmatpush1.msra.mxu0 0.0
    %2270 = vmatprep.subr.mxu0 0.0
    %2271 = vmatpush1.msra.mxu0 0.0
    %2272 = vmatprep.subr.mxu0 0.0
    %2273 = vmatpush1.msra.mxu0 0.0
    %2274 = vmatprep.subr.mxu0 0.0
    %2275 = vmatpush1.msra.mxu0 0.0
    %2276 = vmatprep.subr.mxu0 0.0
    %2277 = vmatpush1.msra.mxu0 %v2244
    %2278 = vmatprep.subr.mxu0 0.0
    %2279 = vmatpush2.msra.mxu0 0.0
    %2280 = vmatprep.subr.mxu0 0.0
    %2281 = vmatpush2.msra.mxu0 0.0
    %2282 = vmatprep.subr.mxu0 0.0
    %2283 = vmatpush2.msra.mxu0 0.0
    %2284 = vmatprep.subr.mxu0 0.0
    %2285 = vmatpush2.msra.mxu0 0.0
    %2286 = vmatprep.subr.mxu0 0.0
    %2287 = vmatpush2.msra.mxu0 0.0
    %2288 = vmatprep.subr.mxu0 0.0
    %2289 = vmatpush2.msra.mxu0 0.0
    %2290 = vmatprep.subr.mxu0 0.0
    %2291 = vmatpush2.msra.mxu0 0.0
    %2292 = vmatprep.subr.mxu0 0.0
    %2293 = vmatpush2.msra.mxu0 0.0
    %2294 = vmatprep.subr.mxu0 0.0
    %2295 = vmatpush2.msra.mxu0 0.0
    %2296 = vmatprep.subr.mxu0 0.0
    %2297 = vmatpush2.msra.mxu0 0.0
    %2298 = vmatprep.subr.mxu0 0.0
    %2299 = vmatpush2.msra.mxu0 0.0
    %2300 = vmatprep.subr.mxu0 0.0
    %2301 = vmatpush2.msra.mxu0 0.0
    %2302 = vmatprep.subr.mxu0 0.0
    %2303 = vmatpush2.msra.mxu0 0.0
    %2304 = vmatprep.subr.mxu0 0.0
    %2305 = vmatpush2.msra.mxu0 0.0
    %2306 = vmatprep.subr.mxu0 0.0
    %2307 = vmatpush2.msra.mxu0 0.0
    %2308 = vmatprep.subr.mxu0 0.0
    %2309 = vmatpush2.msra.mxu0 0.0
    %2310 = vmatprep.mubr.f32.mxu0 0.0
    %2311 = vmatmul.mubr.f32.gmra.mxu0 %v2196
    %v2312 = vpop.f32.mrf.mxu0
    %v2313 = vadd.f32 0.0, %v2312
    %v2314 = vpop.f32.mrf.mxu0
    %2315 = vmatprep.mubr.f32.mxu0 0.0
    %2316 = vmatmul.mubr.f32.gmra.mxu0 %v2199
    %v2317 = vpop.f32.mrf.mxu0
    %v2318 = vadd.f32 0.0, %v2317
    %v2319 = vpop.f32.mrf.mxu0
    %2320 = vmatprep.mubr.f32.mxu0 0.0
    %2321 = vmatmul.mubr.f32.gmra.mxu0 %v2202
    %v2322 = vpop.f32.mrf.mxu0
    %v2323 = vadd.f32 0.0, %v2322
    %v2324 = vpop.f32.mrf.mxu0
    %2325 = vmatprep.mubr.f32.mxu0 0.0
    %2326 = vmatmul.mubr.f32.gmra.mxu0 %v2205
    %v2327 = vpop.f32.mrf.mxu0
    %v2328 = vadd.f32 0.0, %v2327
    %v2329 = vpop.f32.mrf.mxu0
    %2330 = vmatprep.mubr.f32.mxu0 0.0
    %2331 = vmatmul.mubr.f32.gmra.mxu0 %v2208
    %v2332 = vpop.f32.mrf.mxu0
    %v2333 = vadd.f32 0.0, %v2332
    %v2334 = vpop.f32.mrf.mxu0
    %2335 = vmatprep.mubr.f32.mxu0 0.0
    %2336 = vmatmul.mubr.f32.gmra.mxu0 %v2211
    %v2337 = vpop.f32.mrf.mxu0
    %v2338 = vadd.f32 0.0, %v2337
    %v2339 = vpop.f32.mrf.mxu0
    %2340 = vmatprep.mubr.f32.mxu0 0.0
    %2341 = vmatmul.mubr.f32.gmra.mxu0 %v2214
    %v2342 = vpop.f32.mrf.mxu0
    %v2343 = vadd.f32 0.0, %v2342
    %v2344 = vpop.f32.mrf.mxu0
    %2345 = vmatprep.mubr.f32.mxu0 0.0
    %2346 = vmatmul.mubr.f32.gmra.mxu0 %v2217
    %v2347 = vpop.f32.mrf.mxu0
    %v2348 = vadd.f32 0.0, %v2347
    %v2349 = vpop.f32.mrf.mxu0
    %2350 = vmatprep.mubr.f32.mxu0 0.0
    %2351 = vmatmul.mubr.f32.gmra.mxu0 %v2220
    %v2352 = vpop.f32.mrf.mxu0
    %v2353 = vadd.f32 0.0, %v2352
    %v2354 = vpop.f32.mrf.mxu0
    %2355 = vmatprep.mubr.f32.mxu0 0.0
    %2356 = vmatmul.mubr.f32.gmra.mxu0 %v2223
    %v2357 = vpop.f32.mrf.mxu0
    %v2358 = vadd.f32 0.0, %v2357
    %v2359 = vpop.f32.mrf.mxu0
    %2360 = vmatprep.mubr.f32.mxu0 0.0
    %2361 = vmatmul.mubr.f32.gmra.mxu0 %v2226
    %v2362 = vpop.f32.mrf.mxu0
    %v2363 = vadd.f32 0.0, %v2362
    %v2364 = vpop.f32.mrf.mxu0
    %2365 = vmatprep.mubr.f32.mxu0 0.0
    %2366 = vmatmul.mubr.f32.gmra.mxu0 %v2229
    %v2367 = vpop.f32.mrf.mxu0
    %v2368 = vadd.f32 0.0, %v2367
    %v2369 = vpop.f32.mrf.mxu0
    %2370 = vmatprep.mubr.f32.mxu0 0.0
    %2371 = vmatmul.mubr.f32.gmra.mxu0 %v2232
    %v2372 = vpop.f32.mrf.mxu0
    %v2373 = vadd.f32 0.0, %v2372
    %v2374 = vpop.f32.mrf.mxu0
    %2375 = vmatprep.mubr.f32.mxu0 0.0
    %2376 = vmatmul.mubr.f32.gmra.mxu0 %v2235
    %v2377 = vpop.f32.mrf.mxu0
    %v2378 = vadd.f32 0.0, %v2377
    %v2379 = vpop.f32.mrf.mxu0
    %2380 = vmatprep.mubr.f32.mxu0 0.0
    %2381 = vmatmul.mubr.f32.gmra.mxu0 %v2238
    %v2382 = vpop.f32.mrf.mxu0
    %v2383 = vadd.f32 0.0, %v2382
    %v2384 = vpop.f32.mrf.mxu0
    %2385 = vmatprep.mubr.f32.mxu0 0.0
    %2386 = vmatmul.mubr.f32.gmra.mxu0 %v2241
    %v2387 = vpop.f32.mrf.mxu0
    %v2388 = vadd.f32 0.0, %v2387
    %v2389 = vpop.f32.mrf.mxu0
    %2390 = vdwg.mxu0
    %v2391 = vadd.f32 %v2161, %v2313
    %v2392 = vadd.f32 %v2162, %v2318
    %v2393 = vadd.f32 %v2163, %v2323
    %v2394 = vadd.f32 %v2164, %v2328
    %v2395 = vadd.f32 %v2165, %v2333
    %v2396 = vadd.f32 %v2166, %v2338
    %v2397 = vadd.f32 %v2167, %v2343
    %v2398 = vadd.f32 %v2168, %v2348
    %v2399 = vadd.f32 %v2169, %v2353
    %v2400 = vadd.f32 %v2170, %v2358
    %v2401 = vadd.f32 %v2171, %v2363
    %v2402 = vadd.f32 %v2172, %v2368
    %v2403 = vadd.f32 %v2173, %v2373
    %v2404 = vadd.f32 %v2174, %v2378
    %v2405 = vadd.f32 %v2175, %v2383
    %v2406 = vadd.f32 %v2176, %v2388
    %v2407 = vmax.f32 %v2391, 0.0
    %v2408 = vmax.f32 %v2392, 0.0
    %v2409 = vmax.f32 %v2393, 0.0
    %v2410 = vmax.f32 %v2394, 0.0
    %v2411 = vmax.f32 %v2395, 0.0
    %v2412 = vmax.f32 %v2396, 0.0
    %v2413 = vmax.f32 %v2397, 0.0
    %v2414 = vmax.f32 %v2398, 0.0
    %v2415 = vmax.f32 %v2399, 0.0
    %v2416 = vmax.f32 %v2400, 0.0
    %v2417 = vmax.f32 %v2401, 0.0
    %v2418 = vmax.f32 %v2402, 0.0
    %v2419 = vmax.f32 %v2403, 0.0
    %v2420 = vmax.f32 %v2404, 0.0
    %v2421 = vmax.f32 %v2405, 0.0
    %v2422 = vmax.f32 %v2406, 0.0
    %v2423 = vsel %vm85, %v2407, 0.0
    %v2424 = vsel %vm85, %v2408, 0.0
    %v2425 = vadd.f32 %v2423, %v2424
    %v2426 = vsel %vm85, %v2409, 0.0
    %v2427 = vadd.f32 %v2425, %v2426
    %v2428 = vsel %vm85, %v2410, 0.0
    %v2429 = vadd.f32 %v2427, %v2428
    %v2430 = vsel %vm85, %v2411, 0.0
    %v2431 = vadd.f32 %v2429, %v2430
    %v2432 = vsel %vm85, %v2412, 0.0
    %v2433 = vadd.f32 %v2431, %v2432
    %v2434 = vsel %vm85, %v2413, 0.0
    %v2435 = vadd.f32 %v2433, %v2434
    %v2436 = vsel %vm85, %v2414, 0.0
    %v2437 = vadd.f32 %v2435, %v2436
    %v2438 = vsel %vm85, %v2415, 0.0
    %v2439 = vadd.f32 %v2437, %v2438
    %v2440 = vsel %vm85, %v2416, 0.0
    %v2441 = vadd.f32 %v2439, %v2440
    %v2442 = vsel %vm85, %v2417, 0.0
    %v2443 = vadd.f32 %v2441, %v2442
    %v2444 = vsel %vm85, %v2418, 0.0
    %v2445 = vadd.f32 %v2443, %v2444
    %v2446 = vsel %vm85, %v2419, 0.0
    %v2447 = vadd.f32 %v2445, %v2446
    %v2448 = vsel %vm85, %v2420, 0.0
    %v2449 = vadd.f32 %v2447, %v2448
    %v2450 = vsel %vm85, %v2421, 0.0
    %v2451 = vadd.f32 %v2449, %v2450
    %v2452 = vsel %vm85, %v2422, 0.0
    %v2453 = vadd.f32 %v2451, %v2452
    %v2454 = vrot.slane %v2453, 4
    %v2455 = vadd.f32 %v2453, %v2454
    %v2456 = vrot.slane %v2455, 2
    %v2457 = vadd.f32 %v2455, %v2456
    %v2458 = vrot.slane %v2457, 1
    %v2459 = vadd.f32 %v2457, %v2458
    %v2460 = vmul.f32 %v2459, 0.0078125
    %v2461 = vsub.f32 %v2407, %v2460
    %v2462 = vsub.f32 %v2408, %v2460
    %v2463 = vsub.f32 %v2409, %v2460
    %v2464 = vsub.f32 %v2410, %v2460
    %v2465 = vsub.f32 %v2411, %v2460
    %v2466 = vsub.f32 %v2412, %v2460
    %v2467 = vsub.f32 %v2413, %v2460
    %v2468 = vsub.f32 %v2414, %v2460
    %v2469 = vsub.f32 %v2415, %v2460
    %v2470 = vsub.f32 %v2416, %v2460
    %v2471 = vsub.f32 %v2417, %v2460
    %v2472 = vsub.f32 %v2418, %v2460
    %v2473 = vsub.f32 %v2419, %v2460
    %v2474 = vsub.f32 %v2420, %v2460
    %v2475 = vsub.f32 %v2421, %v2460
    %v2476 = vsub.f32 %v2422, %v2460
    %v2477 = vmul.f32 %v2461, %v2461
    %v2478 = vmul.f32 %v2462, %v2462
    %v2479 = vmul.f32 %v2463, %v2463
    %v2480 = vmul.f32 %v2464, %v2464
    %v2481 = vmul.f32 %v2465, %v2465
    %v2482 = vmul.f32 %v2466, %v2466
    %v2483 = vmul.f32 %v2467, %v2467
    %v2484 = vmul.f32 %v2468, %v2468
    %v2485 = vmul.f32 %v2469, %v2469
    %v2486 = vmul.f32 %v2470, %v2470
    %v2487 = vmul.f32 %v2471, %v2471
    %v2488 = vmul.f32 %v2472, %v2472
    %v2489 = vmul.f32 %v2473, %v2473
    %v2490 = vmul.f32 %v2474, %v2474
    %v2491 = vmul.f32 %v2475, %v2475
    %v2492 = vmul.f32 %v2476, %v2476
    %v2493 = vsel %vm85, %v2477, 0.0
    %v2494 = vsel %vm85, %v2478, 0.0
    %v2495 = vadd.f32 %v2493, %v2494
    %v2496 = vsel %vm85, %v2479, 0.0
    %v2497 = vadd.f32 %v2495, %v2496
    %v2498 = vsel %vm85, %v2480, 0.0
    %v2499 = vadd.f32 %v2497, %v2498
    %v2500 = vsel %vm85, %v2481, 0.0
    %v2501 = vadd.f32 %v2499, %v2500
    %v2502 = vsel %vm85, %v2482, 0.0
    %v2503 = vadd.f32 %v2501, %v2502
    %v2504 = vsel %vm85, %v2483, 0.0
    %v2505 = vadd.f32 %v2503, %v2504
    %v2506 = vsel %vm85, %v2484, 0.0
    %v2507 = vadd.f32 %v2505, %v2506
    %v2508 = vsel %vm85, %v2485, 0.0
    %v2509 = vadd.f32 %v2507, %v2508
    %v2510 = vsel %vm85, %v2486, 0.0
    %v2511 = vadd.f32 %v2509, %v2510
    %v2512 = vsel %vm85, %v2487, 0.0
    %v2513 = vadd.f32 %v2511, %v2512
    %v2514 = vsel %vm85, %v2488, 0.0
    %v2515 = vadd.f32 %v2513, %v2514
    %v2516 = vsel %vm85, %v2489, 0.0
    %v2517 = vadd.f32 %v2515, %v2516
    %v2518 = vsel %vm85, %v2490, 0.0
    %v2519 = vadd.f32 %v2517, %v2518
    %v2520 = vsel %vm85, %v2491, 0.0
    %v2521 = vadd.f32 %v2519, %v2520
    %v2522 = vsel %vm85, %v2492, 0.0
    %v2523 = vadd.f32 %v2521, %v2522
    %v2524 = vrot.slane %v2523, 4
    %v2525 = vadd.f32 %v2523, %v2524
    %v2526 = vrot.slane %v2525, 2
    %v2527 = vadd.f32 %v2525, %v2526
    %v2528 = vrot.slane %v2527, 1
    %v2529 = vadd.f32 %v2527, %v2528
    %v2530 = vmul.f32 %v2529, 0.0078125
    %v2531 = vadd.f32 %v2530, 1e-05
    %v2532 = vrsqrt.pop %v2531
    %v2533 = vmul.f32 %v2461, %v2532
    %v2534 = vmul.f32 %v2462, %v2532
    %v2535 = vmul.f32 %v2463, %v2532
    %v2536 = vmul.f32 %v2464, %v2532
    %v2537 = vmul.f32 %v2465, %v2532
    %v2538 = vmul.f32 %v2466, %v2532
    %v2539 = vmul.f32 %v2467, %v2532
    %v2540 = vmul.f32 %v2468, %v2532
    %v2541 = vmul.f32 %v2469, %v2532
    %v2542 = vmul.f32 %v2470, %v2532
    %v2543 = vmul.f32 %v2471, %v2532
    %v2544 = vmul.f32 %v2472, %v2532
    %v2545 = vmul.f32 %v2473, %v2532
    %v2546 = vmul.f32 %v2474, %v2532
    %v2547 = vmul.f32 %v2475, %v2532
    %v2548 = vmul.f32 %v2476, %v2532
    %v2549 = vld [vmem:[%s3] sm:$0x1]
    %v2551 = vlaneseq
    %v2552 = vshrl.u32 %v2551, 7
    %v2553 = vsub.s32 0, %v2552
    %v2554 = vrot.slane %v2549, %v2553
    %v2556 = vmul.f32 %v2533, %v2554
    %v2557 = vmul.f32 %v2534, %v2554
    %v2558 = vmul.f32 %v2535, %v2554
    %v2559 = vmul.f32 %v2536, %v2554
    %v2560 = vmul.f32 %v2537, %v2554
    %v2561 = vmul.f32 %v2538, %v2554
    %v2562 = vmul.f32 %v2539, %v2554
    %v2563 = vmul.f32 %v2540, %v2554
    %v2564 = vmul.f32 %v2541, %v2554
    %v2565 = vmul.f32 %v2542, %v2554
    %v2566 = vmul.f32 %v2543, %v2554
    %v2567 = vmul.f32 %v2544, %v2554
    %v2568 = vmul.f32 %v2545, %v2554
    %v2569 = vmul.f32 %v2546, %v2554
    %v2570 = vmul.f32 %v2547, %v2554
    %v2571 = vmul.f32 %v2548, %v2554
    %v2572 = vld [vmem:[%s4] sm:$0x1]
    %v2574 = vlaneseq
    %v2575 = vshrl.u32 %v2574, 7
    %v2576 = vsub.s32 0, %v2575
    %v2577 = vrot.slane %v2572, %v2576
    %v2579 = vadd.f32 %v2556, %v2577
    %v2580 = vadd.f32 %v2557, %v2577
    %v2581 = vadd.f32 %v2558, %v2577
    %v2582 = vadd.f32 %v2559, %v2577
    %v2583 = vadd.f32 %v2560, %v2577
    %v2584 = vadd.f32 %v2561, %v2577
    %v2585 = vadd.f32 %v2562, %v2577
    %v2586 = vadd.f32 %v2563, %v2577
    %v2587 = vadd.f32 %v2564, %v2577
    %v2588 = vadd.f32 %v2565, %v2577
    %v2589 = vadd.f32 %v2566, %v2577
    %v2590 = vadd.f32 %v2567, %v2577
    %v2591 = vadd.f32 %v2568, %v2577
    %v2592 = vadd.f32 %v2569, %v2577
    %v2593 = vadd.f32 %v2570, %v2577
    %v2594 = vadd.f32 %v2571, %v2577
    %s2595 = scalar_lea.vmem [#allocation3], 16
    %2596 = vst.msk [vmem:[%s2595 + $0x1] sm:$0xff] %vm85, %v2579
    %2597 = vst.msk [vmem:[%s2595 + $0x11] sm:$0xff] %vm85, %v2580
    %2598 = vst.msk [vmem:[%s2595 + $0x21] sm:$0xff] %vm85, %v2581
    %2599 = vst.msk [vmem:[%s2595 + $0x31] sm:$0xff] %vm85, %v2582
    %2600 = vst.msk [vmem:[%s2595 + $0x41] sm:$0xff] %vm85, %v2583
    %2601 = vst.msk [vmem:[%s2595 + $0x51] sm:$0xff] %vm85, %v2584
    %2602 = vst.msk [vmem:[%s2595 + $0x61] sm:$0xff] %vm85, %v2585
    %2603 = vst.msk [vmem:[%s2595 + $0x71] sm:$0xff] %vm85, %v2586
    %2604 = vst.msk [vmem:[%s2595 + $0xa1] sm:$0xff] %vm85, %v2587
    %2605 = vst.msk [vmem:[%s2595 + $0xb1] sm:$0xff] %vm85, %v2588
    %2606 = vst.msk [vmem:[%s2595 + $0xc1] sm:$0xff] %vm85, %v2589
    %2607 = vst.msk [vmem:[%s2595 + $0xd1] sm:$0xff] %vm85, %v2590
    %2608 = vst.msk [vmem:[%s2595 + $0xe1] sm:$0xff] %vm85, %v2591
    %2609 = vst.msk [vmem:[%s2595 + $0xf1] sm:$0xff] %vm85, %v2592
    %2610 = vst.msk [vmem:[%s2595 + $0x101] sm:$0xff] %vm85, %v2593
    %2611 = vst.msk [vmem:[%s2595 + $0x111] sm:$0xff] %vm85, %v2594
    %v2612 = vld [vmem:[%s6] sm:$0x1]
    %v2614 = vlaneseq
    %v2615 = vshrl.u32 %v2614, 7
    %v2616 = vsub.s32 0, %v2615
    %v2617 = vrot.slane %v2612, %v2616
    %v2619 = vld [vmem:[#allocation3] sm:$0xff]
    %v2620 = vld [vmem:[#allocation3 + $0x10] sm:$0xff]
    %v2621 = vld [vmem:[#allocation3 + $0x20] sm:$0xff]
    %v2622 = vld [vmem:[#allocation3 + $0x30] sm:$0xff]
    %v2623 = vld [vmem:[#allocation3 + $0x40] sm:$0xff]
    %v2624 = vld [vmem:[#allocation3 + $0x50] sm:$0xff]
    %v2625 = vld [vmem:[#allocation3 + $0x60] sm:$0xff]
    %v2626 = vld [vmem:[#allocation3 + $0x70] sm:$0xff]
    %v2627 = vld [vmem:[#allocation3 + $0xa0] sm:$0xff]
    %v2628 = vld [vmem:[#allocation3 + $0xb0] sm:$0xff]
    %v2629 = vld [vmem:[#allocation3 + $0xc0] sm:$0xff]
    %v2630 = vld [vmem:[#allocation3 + $0xd0] sm:$0xff]
    %v2631 = vld [vmem:[#allocation3 + $0xe0] sm:$0xff]
    %v2632 = vld [vmem:[#allocation3 + $0xf0] sm:$0xff]
    %v2633 = vld [vmem:[#allocation3 + $0x100] sm:$0xff]
    %v2634 = vld [vmem:[#allocation3 + $0x110] sm:$0xff]
    %v2635 = vld [vmem:[%s5] sm:$0xff]
    %v2637 = vsel %vm85, %v2619, 0
    %v2640 = vsel %vm85, %v2620, 0
    %v2643 = vsel %vm85, %v2621, 0
    %v2646 = vsel %vm85, %v2622, 0
    %v2649 = vsel %vm85, %v2623, 0
    %v2652 = vsel %vm85, %v2624, 0
    %v2655 = vsel %vm85, %v2625, 0
    %v2658 = vsel %vm85, %v2626, 0
    %v2661 = vsel %vm85, %v2627, 0
    %v2664 = vsel %vm85, %v2628, 0
    %v2667 = vsel %vm85, %v2629, 0
    %v2670 = vsel %vm85, %v2630, 0
    %v2673 = vsel %vm85, %v2631, 0
    %v2676 = vsel %vm85, %v2632, 0
    %v2679 = vsel %vm85, %v2633, 0
    %v2682 = vsel %vm85, %v2634, 0
    %2684 = vmatprep.subr.mxu0 0.0
    %2685 = vmatpush1.msra.mxu0 0.0
    %2686 = vmatprep.subr.mxu0 0.0
    %2687 = vmatpush1.msra.mxu0 0.0
    %2688 = vmatprep.subr.mxu0 0.0
    %2689 = vmatpush1.msra.mxu0 0.0
    %2690 = vmatprep.subr.mxu0 0.0
    %2691 = vmatpush1.msra.mxu0 0.0
    %2692 = vmatprep.subr.mxu0 0.0
    %2693 = vmatpush1.msra.mxu0 0.0
    %2694 = vmatprep.subr.mxu0 0.0
    %2695 = vmatpush1.msra.mxu0 0.0
    %2696 = vmatprep.subr.mxu0 0.0
    %2697 = vmatpush1.msra.mxu0 0.0
    %2698 = vmatprep.subr.mxu0 0.0
    %2699 = vmatpush1.msra.mxu0 0.0
    %2700 = vmatprep.subr.mxu0 0.0
    %2701 = vmatpush1.msra.mxu0 0.0
    %2702 = vmatprep.subr.mxu0 0.0
    %2703 = vmatpush1.msra.mxu0 0.0
    %2704 = vmatprep.subr.mxu0 0.0
    %2705 = vmatpush1.msra.mxu0 0.0
    %2706 = vmatprep.subr.mxu0 0.0
    %2707 = vmatpush1.msra.mxu0 0.0
    %2708 = vmatprep.subr.mxu0 0.0
    %2709 = vmatpush1.msra.mxu0 0.0
    %2710 = vmatprep.subr.mxu0 0.0
    %2711 = vmatpush1.msra.mxu0 0.0
    %2712 = vmatprep.subr.mxu0 0.0
    %2713 = vmatpush1.msra.mxu0 0.0
    %2714 = vmatprep.subr.mxu0 0.0
    %2715 = vmatpush1.msra.mxu0 %v2635
    %2716 = vmatprep.subr.mxu0 0.0
    %2717 = vmatpush2.msra.mxu0 0.0
    %2718 = vmatprep.subr.mxu0 0.0
    %2719 = vmatpush2.msra.mxu0 0.0
    %2720 = vmatprep.subr.mxu0 0.0
    %2721 = vmatpush2.msra.mxu0 0.0
    %2722 = vmatprep.subr.mxu0 0.0
    %2723 = vmatpush2.msra.mxu0 0.0
    %2724 = vmatprep.subr.mxu0 0.0
    %2725 = vmatpush2.msra.mxu0 0.0
    %2726 = vmatprep.subr.mxu0 0.0
    %2727 = vmatpush2.msra.mxu0 0.0
    %2728 = vmatprep.subr.mxu0 0.0
    %2729 = vmatpush2.msra.mxu0 0.0
    %2730 = vmatprep.subr.mxu0 0.0
    %2731 = vmatpush2.msra.mxu0 0.0
    %2732 = vmatprep.subr.mxu0 0.0
    %2733 = vmatpush2.msra.mxu0 0.0
    %2734 = vmatprep.subr.mxu0 0.0
    %2735 = vmatpush2.msra.mxu0 0.0
    %2736 = vmatprep.subr.mxu0 0.0
    %2737 = vmatpush2.msra.mxu0 0.0
    %2738 = vmatprep.subr.mxu0 0.0
    %2739 = vmatpush2.msra.mxu0 0.0
    %2740 = vmatprep.subr.mxu0 0.0
    %2741 = vmatpush2.msra.mxu0 0.0
    %2742 = vmatprep.subr.mxu0 0.0
    %2743 = vmatpush2.msra.mxu0 0.0
    %2744 = vmatprep.subr.mxu0 0.0
    %2745 = vmatpush2.msra.mxu0 0.0
    %2746 = vmatprep.subr.mxu0 0.0
    %2747 = vmatpush2.msra.mxu0 0.0
    %2748 = vmatprep.mubr.f32.mxu0 0.0
    %2749 = vmatmul.mubr.f32.gmra.mxu0 %v2637
    %v2750 = vpop.f32.mrf.mxu0
    %v2751 = vadd.f32 0.0, %v2750
    %v2752 = vpop.f32.mrf.mxu0
    %2753 = vmatprep.mubr.f32.mxu0 0.0
    %2754 = vmatmul.mubr.f32.gmra.mxu0 %v2640
    %v2755 = vpop.f32.mrf.mxu0
    %v2756 = vadd.f32 0.0, %v2755
    %v2757 = vpop.f32.mrf.mxu0
    %2758 = vmatprep.mubr.f32.mxu0 0.0
    %2759 = vmatmul.mubr.f32.gmra.mxu0 %v2643
    %v2760 = vpop.f32.mrf.mxu0
    %v2761 = vadd.f32 0.0, %v2760
    %v2762 = vpop.f32.mrf.mxu0
    %2763 = vmatprep.mubr.f32.mxu0 0.0
    %2764 = vmatmul.mubr.f32.gmra.mxu0 %v2646
    %v2765 = vpop.f32.mrf.mxu0
    %v2766 = vadd.f32 0.0, %v2765
    %v2767 = vpop.f32.mrf.mxu0
    %2768 = vmatprep.mubr.f32.mxu0 0.0
    %2769 = vmatmul.mubr.f32.gmra.mxu0 %v2649
    %v2770 = vpop.f32.mrf.mxu0
    %v2771 = vadd.f32 0.0, %v2770
    %v2772 = vpop.f32.mrf.mxu0
    %2773 = vmatprep.mubr.f32.mxu0 0.0
    %2774 = vmatmul.mubr.f32.gmra.mxu0 %v2652
    %v2775 = vpop.f32.mrf.mxu0
    %v2776 = vadd.f32 0.0, %v2775
    %v2777 = vpop.f32.mrf.mxu0
    %2778 = vmatprep.mubr.f32.mxu0 0.0
    %2779 = vmatmul.mubr.f32.gmra.mxu0 %v2655
    %v2780 = vpop.f32.mrf.mxu0
    %v2781 = vadd.f32 0.0, %v2780
    %v2782 = vpop.f32.mrf.mxu0
    %2783 = vmatprep.mubr.f32.mxu0 0.0
    %2784 = vmatmul.mubr.f32.gmra.mxu0 %v2658
    %v2785 = vpop.f32.mrf.mxu0
    %v2786 = vadd.f32 0.0, %v2785
    %v2787 = vpop.f32.mrf.mxu0
    %2788 = vmatprep.mubr.f32.mxu0 0.0
    %2789 = vmatmul.mubr.f32.gmra.mxu0 %v2661
    %v2790 = vpop.f32.mrf.mxu0
    %v2791 = vadd.f32 0.0, %v2790
    %v2792 = vpop.f32.mrf.mxu0
    %2793 = vmatprep.mubr.f32.mxu0 0.0
    %2794 = vmatmul.mubr.f32.gmra.mxu0 %v2664
    %v2795 = vpop.f32.mrf.mxu0
    %v2796 = vadd.f32 0.0, %v2795
    %v2797 = vpop.f32.mrf.mxu0
    %2798 = vmatprep.mubr.f32.mxu0 0.0
    %2799 = vmatmul.mubr.f32.gmra.mxu0 %v2667
    %v2800 = vpop.f32.mrf.mxu0
    %v2801 = vadd.f32 0.0, %v2800
    %v2802 = vpop.f32.mrf.mxu0
    %2803 = vmatprep.mubr.f32.mxu0 0.0
    %2804 = vmatmul.mubr.f32.gmra.mxu0 %v2670
    %v2805 = vpop.f32.mrf.mxu0
    %v2806 = vadd.f32 0.0, %v2805
    %v2807 = vpop.f32.mrf.mxu0
    %2808 = vmatprep.mubr.f32.mxu0 0.0
    %2809 = vmatmul.mubr.f32.gmra.mxu0 %v2673
    %v2810 = vpop.f32.mrf.mxu0
    %v2811 = vadd.f32 0.0, %v2810
    %v2812 = vpop.f32.mrf.mxu0
    %2813 = vmatprep.mubr.f32.mxu0 0.0
    %2814 = vmatmul.mubr.f32.gmra.mxu0 %v2676
    %v2815 = vpop.f32.mrf.mxu0
    %v2816 = vadd.f32 0.0, %v2815
    %v2817 = vpop.f32.mrf.mxu0
    %2818 = vmatprep.mubr.f32.mxu0 0.0
    %2819 = vmatmul.mubr.f32.gmra.mxu0 %v2679
    %v2820 = vpop.f32.mrf.mxu0
    %v2821 = vadd.f32 0.0, %v2820
    %v2822 = vpop.f32.mrf.mxu0
    %2823 = vmatprep.mubr.f32.mxu0 0.0
    %2824 = vmatmul.mubr.f32.gmra.mxu0 %v2682
    %v2825 = vpop.f32.mrf.mxu0
    %v2826 = vadd.f32 0.0, %v2825
    %v2827 = vpop.f32.mrf.mxu0
    %2828 = vdwg.mxu0
    %v2829 = vadd.f32 %v2617, %v2751
    %v2830 = vadd.f32 %v2617, %v2756
    %v2831 = vadd.f32 %v2617, %v2761
    %v2832 = vadd.f32 %v2617, %v2766
    %v2833 = vadd.f32 %v2617, %v2771
    %v2834 = vadd.f32 %v2617, %v2776
    %v2835 = vadd.f32 %v2617, %v2781
    %v2836 = vadd.f32 %v2617, %v2786
    %v2837 = vadd.f32 %v2617, %v2791
    %v2838 = vadd.f32 %v2617, %v2796
    %v2839 = vadd.f32 %v2617, %v2801
    %v2840 = vadd.f32 %v2617, %v2806
    %v2841 = vadd.f32 %v2617, %v2811
    %v2842 = vadd.f32 %v2617, %v2816
    %v2843 = vadd.f32 %v2617, %v2821
    %v2844 = vadd.f32 %v2617, %v2826
    %v2845 = vld [vmem:[#allocation3 + $0x1] sm:$0xff]
    %v2846 = vld [vmem:[#allocation3 + $0x11] sm:$0xff]
    %v2847 = vld [vmem:[#allocation3 + $0x21] sm:$0xff]
    %v2848 = vld [vmem:[#allocation3 + $0x31] sm:$0xff]
    %v2849 = vld [vmem:[#allocation3 + $0x41] sm:$0xff]
    %v2850 = vld [vmem:[#allocation3 + $0x51] sm:$0xff]
    %v2851 = vld [vmem:[#allocation3 + $0x61] sm:$0xff]
    %v2852 = vld [vmem:[#allocation3 + $0x71] sm:$0xff]
    %v2853 = vld [vmem:[#allocation3 + $0xa1] sm:$0xff]
    %v2854 = vld [vmem:[#allocation3 + $0xb1] sm:$0xff]
    %v2855 = vld [vmem:[#allocation3 + $0xc1] sm:$0xff]
    %v2856 = vld [vmem:[#allocation3 + $0xd1] sm:$0xff]
    %v2857 = vld [vmem:[#allocation3 + $0xe1] sm:$0xff]
    %v2858 = vld [vmem:[#allocation3 + $0xf1] sm:$0xff]
    %v2859 = vld [vmem:[#allocation3 + $0x101] sm:$0xff]
    %v2860 = vld [vmem:[#allocation3 + $0x111] sm:$0xff]
    %s2861 = scalar_lea.vmem %s5, 8
    %v2862 = vld [vmem:[%s2861] sm:$0xff]
    %v2864 = vsel %vm85, %v2845, 0
    %v2867 = vsel %vm85, %v2846, 0
    %v2870 = vsel %vm85, %v2847, 0
    %v2873 = vsel %vm85, %v2848, 0
    %v2876 = vsel %vm85, %v2849, 0
    %v2879 = vsel %vm85, %v2850, 0
    %v2882 = vsel %vm85, %v2851, 0
    %v2885 = vsel %vm85, %v2852, 0
    %v2888 = vsel %vm85, %v2853, 0
    %v2891 = vsel %vm85, %v2854, 0
    %v2894 = vsel %vm85, %v2855, 0
    %v2897 = vsel %vm85, %v2856, 0
    %v2900 = vsel %vm85, %v2857, 0
    %v2903 = vsel %vm85, %v2858, 0
    %v2906 = vsel %vm85, %v2859, 0
    %v2909 = vsel %vm85, %v2860, 0
    %2911 = vmatprep.subr.mxu0 0.0
    %2912 = vmatpush1.msra.mxu0 0.0
    %2913 = vmatprep.subr.mxu0 0.0
    %2914 = vmatpush1.msra.mxu0 0.0
    %2915 = vmatprep.subr.mxu0 0.0
    %2916 = vmatpush1.msra.mxu0 0.0
    %2917 = vmatprep.subr.mxu0 0.0
    %2918 = vmatpush1.msra.mxu0 0.0
    %2919 = vmatprep.subr.mxu0 0.0
    %2920 = vmatpush1.msra.mxu0 0.0
    %2921 = vmatprep.subr.mxu0 0.0
    %2922 = vmatpush1.msra.mxu0 0.0
    %2923 = vmatprep.subr.mxu0 0.0
    %2924 = vmatpush1.msra.mxu0 0.0
    %2925 = vmatprep.subr.mxu0 0.0
    %2926 = vmatpush1.msra.mxu0 0.0
    %2927 = vmatprep.subr.mxu0 0.0
    %2928 = vmatpush1.msra.mxu0 0.0
    %2929 = vmatprep.subr.mxu0 0.0
    %2930 = vmatpush1.msra.mxu0 0.0
    %2931 = vmatprep.subr.mxu0 0.0
    %2932 = vmatpush1.msra.mxu0 0.0
    %2933 = vmatprep.subr.mxu0 0.0
    %2934 = vmatpush1.msra.mxu0 0.0
    %2935 = vmatprep.subr.mxu0 0.0
    %2936 = vmatpush1.msra.mxu0 0.0
    %2937 = vmatprep.subr.mxu0 0.0
    %2938 = vmatpush1.msra.mxu0 0.0
    %2939 = vmatprep.subr.mxu0 0.0
    %2940 = vmatpush1.msra.mxu0 0.0
    %2941 = vmatprep.subr.mxu0 0.0
    %2942 = vmatpush1.msra.mxu0 %v2862
    %2943 = vmatprep.subr.mxu0 0.0
    %2944 = vmatpush2.msra.mxu0 0.0
    %2945 = vmatprep.subr.mxu0 0.0
    %2946 = vmatpush2.msra.mxu0 0.0
    %2947 = vmatprep.subr.mxu0 0.0
    %2948 = vmatpush2.msra.mxu0 0.0
    %2949 = vmatprep.subr.mxu0 0.0
    %2950 = vmatpush2.msra.mxu0 0.0
    %2951 = vmatprep.subr.mxu0 0.0
    %2952 = vmatpush2.msra.mxu0 0.0
    %2953 = vmatprep.subr.mxu0 0.0
    %2954 = vmatpush2.msra.mxu0 0.0
    %2955 = vmatprep.subr.mxu0 0.0
    %2956 = vmatpush2.msra.mxu0 0.0
    %2957 = vmatprep.subr.mxu0 0.0
    %2958 = vmatpush2.msra.mxu0 0.0
    %2959 = vmatprep.subr.mxu0 0.0
    %2960 = vmatpush2.msra.mxu0 0.0
    %2961 = vmatprep.subr.mxu0 0.0
    %2962 = vmatpush2.msra.mxu0 0.0
    %2963 = vmatprep.subr.mxu0 0.0
    %2964 = vmatpush2.msra.mxu0 0.0
    %2965 = vmatprep.subr.mxu0 0.0
    %2966 = vmatpush2.msra.mxu0 0.0
    %2967 = vmatprep.subr.mxu0 0.0
    %2968 = vmatpush2.msra.mxu0 0.0
    %2969 = vmatprep.subr.mxu0 0.0
    %2970 = vmatpush2.msra.mxu0 0.0
    %2971 = vmatprep.subr.mxu0 0.0
    %2972 = vmatpush2.msra.mxu0 0.0
    %2973 = vmatprep.subr.mxu0 0.0
    %2974 = vmatpush2.msra.mxu0 0.0
    %2975 = vmatprep.mubr.f32.mxu0 0.0
    %2976 = vmatmul.mubr.f32.gmra.mxu0 %v2864
    %v2977 = vpop.f32.mrf.mxu0
    %v2978 = vadd.f32 0.0, %v2977
    %v2979 = vpop.f32.mrf.mxu0
    %2980 = vmatprep.mubr.f32.mxu0 0.0
    %2981 = vmatmul.mubr.f32.gmra.mxu0 %v2867
    %v2982 = vpop.f32.mrf.mxu0
    %v2983 = vadd.f32 0.0, %v2982
    %v2984 = vpop.f32.mrf.mxu0
    %2985 = vmatprep.mubr.f32.mxu0 0.0
    %2986 = vmatmul.mubr.f32.gmra.mxu0 %v2870
    %v2987 = vpop.f32.mrf.mxu0
    %v2988 = vadd.f32 0.0, %v2987
    %v2989 = vpop.f32.mrf.mxu0
    %2990 = vmatprep.mubr.f32.mxu0 0.0
    %2991 = vmatmul.mubr.f32.gmra.mxu0 %v2873
    %v2992 = vpop.f32.mrf.mxu0
    %v2993 = vadd.f32 0.0, %v2992
    %v2994 = vpop.f32.mrf.mxu0
    %2995 = vmatprep.mubr.f32.mxu0 0.0
    %2996 = vmatmul.mubr.f32.gmra.mxu0 %v2876
    %v2997 = vpop.f32.mrf.mxu0
    %v2998 = vadd.f32 0.0, %v2997
    %v2999 = vpop.f32.mrf.mxu0
    %3000 = vmatprep.mubr.f32.mxu0 0.0
    %3001 = vmatmul.mubr.f32.gmra.mxu0 %v2879
    %v3002 = vpop.f32.mrf.mxu0
    %v3003 = vadd.f32 0.0, %v3002
    %v3004 = vpop.f32.mrf.mxu0
    %3005 = vmatprep.mubr.f32.mxu0 0.0
    %3006 = vmatmul.mubr.f32.gmra.mxu0 %v2882
    %v3007 = vpop.f32.mrf.mxu0
    %v3008 = vadd.f32 0.0, %v3007
    %v3009 = vpop.f32.mrf.mxu0
    %3010 = vmatprep.mubr.f32.mxu0 0.0
    %3011 = vmatmul.mubr.f32.gmra.mxu0 %v2885
    %v3012 = vpop.f32.mrf.mxu0
    %v3013 = vadd.f32 0.0, %v3012
    %v3014 = vpop.f32.mrf.mxu0
    %3015 = vmatprep.mubr.f32.mxu0 0.0
    %3016 = vmatmul.mubr.f32.gmra.mxu0 %v2888
    %v3017 = vpop.f32.mrf.mxu0
    %v3018 = vadd.f32 0.0, %v3017
    %v3019 = vpop.f32.mrf.mxu0
    %3020 = vmatprep.mubr.f32.mxu0 0.0
    %3021 = vmatmul.mubr.f32.gmra.mxu0 %v2891
    %v3022 = vpop.f32.mrf.mxu0
    %v3023 = vadd.f32 0.0, %v3022
    %v3024 = vpop.f32.mrf.mxu0
    %3025 = vmatprep.mubr.f32.mxu0 0.0
    %3026 = vmatmul.mubr.f32.gmra.mxu0 %v2894
    %v3027 = vpop.f32.mrf.mxu0
    %v3028 = vadd.f32 0.0, %v3027
    %v3029 = vpop.f32.mrf.mxu0
    %3030 = vmatprep.mubr.f32.mxu0 0.0
    %3031 = vmatmul.mubr.f32.gmra.mxu0 %v2897
    %v3032 = vpop.f32.mrf.mxu0
    %v3033 = vadd.f32 0.0, %v3032
    %v3034 = vpop.f32.mrf.mxu0
    %3035 = vmatprep.mubr.f32.mxu0 0.0
    %3036 = vmatmul.mubr.f32.gmra.mxu0 %v2900
    %v3037 = vpop.f32.mrf.mxu0
    %v3038 = vadd.f32 0.0, %v3037
    %v3039 = vpop.f32.mrf.mxu0
    %3040 = vmatprep.mubr.f32.mxu0 0.0
    %3041 = vmatmul.mubr.f32.gmra.mxu0 %v2903
    %v3042 = vpop.f32.mrf.mxu0
    %v3043 = vadd.f32 0.0, %v3042
    %v3044 = vpop.f32.mrf.mxu0
    %3045 = vmatprep.mubr.f32.mxu0 0.0
    %3046 = vmatmul.mubr.f32.gmra.mxu0 %v2906
    %v3047 = vpop.f32.mrf.mxu0
    %v3048 = vadd.f32 0.0, %v3047
    %v3049 = vpop.f32.mrf.mxu0
    %3050 = vmatprep.mubr.f32.mxu0 0.0
    %3051 = vmatmul.mubr.f32.gmra.mxu0 %v2909
    %v3052 = vpop.f32.mrf.mxu0
    %v3053 = vadd.f32 0.0, %v3052
    %v3054 = vpop.f32.mrf.mxu0
    %3055 = vdwg.mxu0
    %v3056 = vadd.f32 %v2829, %v2978
    %v3057 = vadd.f32 %v2830, %v2983
    %v3058 = vadd.f32 %v2831, %v2988
    %v3059 = vadd.f32 %v2832, %v2993
    %v3060 = vadd.f32 %v2833, %v2998
    %v3061 = vadd.f32 %v2834, %v3003
    %v3062 = vadd.f32 %v2835, %v3008
    %v3063 = vadd.f32 %v2836, %v3013
    %v3064 = vadd.f32 %v2837, %v3018
    %v3065 = vadd.f32 %v2838, %v3023
    %v3066 = vadd.f32 %v2839, %v3028
    %v3067 = vadd.f32 %v2840, %v3033
    %v3068 = vadd.f32 %v2841, %v3038
    %v3069 = vadd.f32 %v2842, %v3043
    %v3070 = vadd.f32 %v2843, %v3048
    %v3071 = vadd.f32 %v2844, %v3053
    %v3072 = vld [vmem:[#allocation3 + $0x2] sm:$0xff]
    %v3073 = vld [vmem:[#allocation3 + $0x12] sm:$0xff]
    %v3074 = vld [vmem:[#allocation3 + $0x22] sm:$0xff]
    %v3075 = vld [vmem:[#allocation3 + $0x32] sm:$0xff]
    %v3076 = vld [vmem:[#allocation3 + $0x42] sm:$0xff]
    %v3077 = vld [vmem:[#allocation3 + $0x52] sm:$0xff]
    %v3078 = vld [vmem:[#allocation3 + $0x62] sm:$0xff]
    %v3079 = vld [vmem:[#allocation3 + $0x72] sm:$0xff]
    %v3080 = vld [vmem:[#allocation3 + $0xa2] sm:$0xff]
    %v3081 = vld [vmem:[#allocation3 + $0xb2] sm:$0xff]
    %v3082 = vld [vmem:[#allocation3 + $0xc2] sm:$0xff]
    %v3083 = vld [vmem:[#allocation3 + $0xd2] sm:$0xff]
    %v3084 = vld [vmem:[#allocation3 + $0xe2] sm:$0xff]
    %v3085 = vld [vmem:[#allocation3 + $0xf2] sm:$0xff]
    %v3086 = vld [vmem:[#allocation3 + $0x102] sm:$0xff]
    %v3087 = vld [vmem:[#allocation3 + $0x112] sm:$0xff]
    %s3088 = scalar_lea.vmem %s5, 16
    %v3089 = vld [vmem:[%s3088] sm:$0xff]
    %v3091 = vsel %vm85, %v3072, 0
    %v3094 = vsel %vm85, %v3073, 0
    %v3097 = vsel %vm85, %v3074, 0
    %v3100 = vsel %vm85, %v3075, 0
    %v3103 = vsel %vm85, %v3076, 0
    %v3106 = vsel %vm85, %v3077, 0
    %v3109 = vsel %vm85, %v3078, 0
    %v3112 = vsel %vm85, %v3079, 0
    %v3115 = vsel %vm85, %v3080, 0
    %v3118 = vsel %vm85, %v3081, 0
    %v3121 = vsel %vm85, %v3082, 0
    %v3124 = vsel %vm85, %v3083, 0
    %v3127 = vsel %vm85, %v3084, 0
    %v3130 = vsel %vm85, %v3085, 0
    %v3133 = vsel %vm85, %v3086, 0
    %v3136 = vsel %vm85, %v3087, 0
    %3138 = vmatprep.subr.mxu0 0.0
    %3139 = vmatpush1.msra.mxu0 0.0
    %3140 = vmatprep.subr.mxu0 0.0
    %3141 = vmatpush1.msra.mxu0 0.0
    %3142 = vmatprep.subr.mxu0 0.0
    %3143 = vmatpush1.msra.mxu0 0.0
    %3144 = vmatprep.subr.mxu0 0.0
    %3145 = vmatpush1.msra.mxu0 0.0
    %3146 = vmatprep.subr.mxu0 0.0
    %3147 = vmatpush1.msra.mxu0 0.0
    %3148 = vmatprep.subr.mxu0 0.0
    %3149 = vmatpush1.msra.mxu0 0.0
    %3150 = vmatprep.subr.mxu0 0.0
    %3151 = vmatpush1.msra.mxu0 0.0
    %3152 = vmatprep.subr.mxu0 0.0
    %3153 = vmatpush1.msra.mxu0 0.0
    %3154 = vmatprep.subr.mxu0 0.0
    %3155 = vmatpush1.msra.mxu0 0.0
    %3156 = vmatprep.subr.mxu0 0.0
    %3157 = vmatpush1.msra.mxu0 0.0
    %3158 = vmatprep.subr.mxu0 0.0
    %3159 = vmatpush1.msra.mxu0 0.0
    %3160 = vmatprep.subr.mxu0 0.0
    %3161 = vmatpush1.msra.mxu0 0.0
    %3162 = vmatprep.subr.mxu0 0.0
    %3163 = vmatpush1.msra.mxu0 0.0
    %3164 = vmatprep.subr.mxu0 0.0
    %3165 = vmatpush1.msra.mxu0 0.0
    %3166 = vmatprep.subr.mxu0 0.0
    %3167 = vmatpush1.msra.mxu0 0.0
    %3168 = vmatprep.subr.mxu0 0.0
    %3169 = vmatpush1.msra.mxu0 %v3089
    %3170 = vmatprep.subr.mxu0 0.0
    %3171 = vmatpush2.msra.mxu0 0.0
    %3172 = vmatprep.subr.mxu0 0.0
    %3173 = vmatpush2.msra.mxu0 0.0
    %3174 = vmatprep.subr.mxu0 0.0
    %3175 = vmatpush2.msra.mxu0 0.0
    %3176 = vmatprep.subr.mxu0 0.0
    %3177 = vmatpush2.msra.mxu0 0.0
    %3178 = vmatprep.subr.mxu0 0.0
    %3179 = vmatpush2.msra.mxu0 0.0
    %3180 = vmatprep.subr.mxu0 0.0
    %3181 = vmatpush2.msra.mxu0 0.0
    %3182 = vmatprep.subr.mxu0 0.0
    %3183 = vmatpush2.msra.mxu0 0.0
    %3184 = vmatprep.subr.mxu0 0.0
    %3185 = vmatpush2.msra.mxu0 0.0
    %3186 = vmatprep.subr.mxu0 0.0
    %3187 = vmatpush2.msra.mxu0 0.0
    %3188 = vmatprep.subr.mxu0 0.0
    %3189 = vmatpush2.msra.mxu0 0.0
    %3190 = vmatprep.subr.mxu0 0.0
    %3191 = vmatpush2.msra.mxu0 0.0
    %3192 = vmatprep.subr.mxu0 0.0
    %3193 = vmatpush2.msra.mxu0 0.0
    %3194 = vmatprep.subr.mxu0 0.0
    %3195 = vmatpush2.msra.mxu0 0.0
    %3196 = vmatprep.subr.mxu0 0.0
    %3197 = vmatpush2.msra.mxu0 0.0
    %3198 = vmatprep.subr.mxu0 0.0
    %3199 = vmatpush2.msra.mxu0 0.0
    %3200 = vmatprep.subr.mxu0 0.0
    %3201 = vmatpush2.msra.mxu0 0.0
    %3202 = vmatprep.mubr.f32.mxu0 0.0
    %3203 = vmatmul.mubr.f32.gmra.mxu0 %v3091
    %v3204 = vpop.f32.mrf.mxu0
    %v3205 = vadd.f32 0.0, %v3204
    %v3206 = vpop.f32.mrf.mxu0
    %3207 = vmatprep.mubr.f32.mxu0 0.0
    %3208 = vmatmul.mubr.f32.gmra.mxu0 %v3094
    %v3209 = vpop.f32.mrf.mxu0
    %v3210 = vadd.f32 0.0, %v3209
    %v3211 = vpop.f32.mrf.mxu0
    %3212 = vmatprep.mubr.f32.mxu0 0.0
    %3213 = vmatmul.mubr.f32.gmra.mxu0 %v3097
    %v3214 = vpop.f32.mrf.mxu0
    %v3215 = vadd.f32 0.0, %v3214
    %v3216 = vpop.f32.mrf.mxu0
    %3217 = vmatprep.mubr.f32.mxu0 0.0
    %3218 = vmatmul.mubr.f32.gmra.mxu0 %v3100
    %v3219 = vpop.f32.mrf.mxu0
    %v3220 = vadd.f32 0.0, %v3219
    %v3221 = vpop.f32.mrf.mxu0
    %3222 = vmatprep.mubr.f32.mxu0 0.0
    %3223 = vmatmul.mubr.f32.gmra.mxu0 %v3103
    %v3224 = vpop.f32.mrf.mxu0
    %v3225 = vadd.f32 0.0, %v3224
    %v3226 = vpop.f32.mrf.mxu0
    %3227 = vmatprep.mubr.f32.mxu0 0.0
    %3228 = vmatmul.mubr.f32.gmra.mxu0 %v3106
    %v3229 = vpop.f32.mrf.mxu0
    %v3230 = vadd.f32 0.0, %v3229
    %v3231 = vpop.f32.mrf.mxu0
    %3232 = vmatprep.mubr.f32.mxu0 0.0
    %3233 = vmatmul.mubr.f32.gmra.mxu0 %v3109
    %v3234 = vpop.f32.mrf.mxu0
    %v3235 = vadd.f32 0.0, %v3234
    %v3236 = vpop.f32.mrf.mxu0
    %3237 = vmatprep.mubr.f32.mxu0 0.0
    %3238 = vmatmul.mubr.f32.gmra.mxu0 %v3112
    %v3239 = vpop.f32.mrf.mxu0
    %v3240 = vadd.f32 0.0, %v3239
    %v3241 = vpop.f32.mrf.mxu0
    %3242 = vmatprep.mubr.f32.mxu0 0.0
    %3243 = vmatmul.mubr.f32.gmra.mxu0 %v3115
    %v3244 = vpop.f32.mrf.mxu0
    %v3245 = vadd.f32 0.0, %v3244
    %v3246 = vpop.f32.mrf.mxu0
    %3247 = vmatprep.mubr.f32.mxu0 0.0
    %3248 = vmatmul.mubr.f32.gmra.mxu0 %v3118
    %v3249 = vpop.f32.mrf.mxu0
    %v3250 = vadd.f32 0.0, %v3249
    %v3251 = vpop.f32.mrf.mxu0
    %3252 = vmatprep.mubr.f32.mxu0 0.0
    %3253 = vmatmul.mubr.f32.gmra.mxu0 %v3121
    %v3254 = vpop.f32.mrf.mxu0
    %v3255 = vadd.f32 0.0, %v3254
    %v3256 = vpop.f32.mrf.mxu0
    %3257 = vmatprep.mubr.f32.mxu0 0.0
    %3258 = vmatmul.mubr.f32.gmra.mxu0 %v3124
    %v3259 = vpop.f32.mrf.mxu0
    %v3260 = vadd.f32 0.0, %v3259
    %v3261 = vpop.f32.mrf.mxu0
    %3262 = vmatprep.mubr.f32.mxu0 0.0
    %3263 = vmatmul.mubr.f32.gmra.mxu0 %v3127
    %v3264 = vpop.f32.mrf.mxu0
    %v3265 = vadd.f32 0.0, %v3264
    %v3266 = vpop.f32.mrf.mxu0
    %3267 = vmatprep.mubr.f32.mxu0 0.0
    %3268 = vmatmul.mubr.f32.gmra.mxu0 %v3130
    %v3269 = vpop.f32.mrf.mxu0
    %v3270 = vadd.f32 0.0, %v3269
    %v3271 = vpop.f32.mrf.mxu0
    %3272 = vmatprep.mubr.f32.mxu0 0.0
    %3273 = vmatmul.mubr.f32.gmra.mxu0 %v3133
    %v3274 = vpop.f32.mrf.mxu0
    %v3275 = vadd.f32 0.0, %v3274
    %v3276 = vpop.f32.mrf.mxu0
    %3277 = vmatprep.mubr.f32.mxu0 0.0
    %3278 = vmatmul.mubr.f32.gmra.mxu0 %v3136
    %v3279 = vpop.f32.mrf.mxu0
    %v3280 = vadd.f32 0.0, %v3279
    %v3281 = vpop.f32.mrf.mxu0
    %3282 = vdwg.mxu0
    %v3283 = vadd.f32 %v3056, %v3205
    %v3284 = vadd.f32 %v3057, %v3210
    %v3285 = vadd.f32 %v3058, %v3215
    %v3286 = vadd.f32 %v3059, %v3220
    %v3287 = vadd.f32 %v3060, %v3225
    %v3288 = vadd.f32 %v3061, %v3230
    %v3289 = vadd.f32 %v3062, %v3235
    %v3290 = vadd.f32 %v3063, %v3240
    %v3291 = vadd.f32 %v3064, %v3245
    %v3292 = vadd.f32 %v3065, %v3250
    %v3293 = vadd.f32 %v3066, %v3255
    %v3294 = vadd.f32 %v3067, %v3260
    %v3295 = vadd.f32 %v3068, %v3265
    %v3296 = vadd.f32 %v3069, %v3270
    %v3297 = vadd.f32 %v3070, %v3275
    %v3298 = vadd.f32 %v3071, %v3280
    %v3299 = vld [vmem:[%s2595] sm:$0xff]
    %v3300 = vld [vmem:[%s2595 + $0x10] sm:$0xff]
    %v3301 = vld [vmem:[%s2595 + $0x20] sm:$0xff]
    %v3302 = vld [vmem:[%s2595 + $0x30] sm:$0xff]
    %v3303 = vld [vmem:[%s2595 + $0x40] sm:$0xff]
    %v3304 = vld [vmem:[%s2595 + $0x50] sm:$0xff]
    %v3305 = vld [vmem:[%s2595 + $0x60] sm:$0xff]
    %v3306 = vld [vmem:[%s2595 + $0x70] sm:$0xff]
    %v3307 = vld [vmem:[%s2595 + $0xa0] sm:$0xff]
    %v3308 = vld [vmem:[%s2595 + $0xb0] sm:$0xff]
    %v3309 = vld [vmem:[%s2595 + $0xc0] sm:$0xff]
    %v3310 = vld [vmem:[%s2595 + $0xd0] sm:$0xff]
    %v3311 = vld [vmem:[%s2595 + $0xe0] sm:$0xff]
    %v3312 = vld [vmem:[%s2595 + $0xf0] sm:$0xff]
    %v3313 = vld [vmem:[%s2595 + $0x100] sm:$0xff]
    %v3314 = vld [vmem:[%s2595 + $0x110] sm:$0xff]
    %s3315 = scalar_lea.vmem %s5, 24
    %v3316 = vld [vmem:[%s3315] sm:$0xff]
    %v3318 = vsel %vm85, %v3299, 0
    %v3321 = vsel %vm85, %v3300, 0
    %v3324 = vsel %vm85, %v3301, 0
    %v3327 = vsel %vm85, %v3302, 0
    %v3330 = vsel %vm85, %v3303, 0
    %v3333 = vsel %vm85, %v3304, 0
    %v3336 = vsel %vm85, %v3305, 0
    %v3339 = vsel %vm85, %v3306, 0
    %v3342 = vsel %vm85, %v3307, 0
    %v3345 = vsel %vm85, %v3308, 0
    %v3348 = vsel %vm85, %v3309, 0
    %v3351 = vsel %vm85, %v3310, 0
    %v3354 = vsel %vm85, %v3311, 0
    %v3357 = vsel %vm85, %v3312, 0
    %v3360 = vsel %vm85, %v3313, 0
    %v3363 = vsel %vm85, %v3314, 0
    %3365 = vmatprep.subr.mxu0 0.0
    %3366 = vmatpush1.msra.mxu0 0.0
    %3367 = vmatprep.subr.mxu0 0.0
    %3368 = vmatpush1.msra.mxu0 0.0
    %3369 = vmatprep.subr.mxu0 0.0
    %3370 = vmatpush1.msra.mxu0 0.0
    %3371 = vmatprep.subr.mxu0 0.0
    %3372 = vmatpush1.msra.mxu0 0.0
    %3373 = vmatprep.subr.mxu0 0.0
    %3374 = vmatpush1.msra.mxu0 0.0
    %3375 = vmatprep.subr.mxu0 0.0
    %3376 = vmatpush1.msra.mxu0 0.0
    %3377 = vmatprep.subr.mxu0 0.0
    %3378 = vmatpush1.msra.mxu0 0.0
    %3379 = vmatprep.subr.mxu0 0.0
    %3380 = vmatpush1.msra.mxu0 0.0
    %3381 = vmatprep.subr.mxu0 0.0
    %3382 = vmatpush1.msra.mxu0 0.0
    %3383 = vmatprep.subr.mxu0 0.0
    %3384 = vmatpush1.msra.mxu0 0.0
    %3385 = vmatprep.subr.mxu0 0.0
    %3386 = vmatpush1.msra.mxu0 0.0
    %3387 = vmatprep.subr.mxu0 0.0
    %3388 = vmatpush1.msra.mxu0 0.0
    %3389 = vmatprep.subr.mxu0 0.0
    %3390 = vmatpush1.msra.mxu0 0.0
    %3391 = vmatprep.subr.mxu0 0.0
    %3392 = vmatpush1.msra.mxu0 0.0
    %3393 = vmatprep.subr.mxu0 0.0
    %3394 = vmatpush1.msra.mxu0 0.0
    %3395 = vmatprep.subr.mxu0 0.0
    %3396 = vmatpush1.msra.mxu0 %v3316
    %3397 = vmatprep.subr.mxu0 0.0
    %3398 = vmatpush2.msra.mxu0 0.0
    %3399 = vmatprep.subr.mxu0 0.0
    %3400 = vmatpush2.msra.mxu0 0.0
    %3401 = vmatprep.subr.mxu0 0.0
    %3402 = vmatpush2.msra.mxu0 0.0
    %3403 = vmatprep.subr.mxu0 0.0
    %3404 = vmatpush2.msra.mxu0 0.0
    %3405 = vmatprep.subr.mxu0 0.0
    %3406 = vmatpush2.msra.mxu0 0.0
    %3407 = vmatprep.subr.mxu0 0.0
    %3408 = vmatpush2.msra.mxu0 0.0
    %3409 = vmatprep.subr.mxu0 0.0
    %3410 = vmatpush2.msra.mxu0 0.0
    %3411 = vmatprep.subr.mxu0 0.0
    %3412 = vmatpush2.msra.mxu0 0.0
    %3413 = vmatprep.subr.mxu0 0.0
    %3414 = vmatpush2.msra.mxu0 0.0
    %3415 = vmatprep.subr.mxu0 0.0
    %3416 = vmatpush2.msra.mxu0 0.0
    %3417 = vmatprep.subr.mxu0 0.0
    %3418 = vmatpush2.msra.mxu0 0.0
    %3419 = vmatprep.subr.mxu0 0.0
    %3420 = vmatpush2.msra.mxu0 0.0
    %3421 = vmatprep.subr.mxu0 0.0
    %3422 = vmatpush2.msra.mxu0 0.0
    %3423 = vmatprep.subr.mxu0 0.0
    %3424 = vmatpush2.msra.mxu0 0.0
    %3425 = vmatprep.subr.mxu0 0.0
    %3426 = vmatpush2.msra.mxu0 0.0
    %3427 = vmatprep.subr.mxu0 0.0
    %3428 = vmatpush2.msra.mxu0 0.0
    %3429 = vmatprep.mubr.f32.mxu0 0.0
    %3430 = vmatmul.mubr.f32.gmra.mxu0 %v3318
    %v3431 = vpop.f32.mrf.mxu0
    %v3432 = vadd.f32 0.0, %v3431
    %v3433 = vpop.f32.mrf.mxu0
    %3434 = vmatprep.mubr.f32.mxu0 0.0
    %3435 = vmatmul.mubr.f32.gmra.mxu0 %v3321
    %v3436 = vpop.f32.mrf.mxu0
    %v3437 = vadd.f32 0.0, %v3436
    %v3438 = vpop.f32.mrf.mxu0
    %3439 = vmatprep.mubr.f32.mxu0 0.0
    %3440 = vmatmul.mubr.f32.gmra.mxu0 %v3324
    %v3441 = vpop.f32.mrf.mxu0
    %v3442 = vadd.f32 0.0, %v3441
    %v3443 = vpop.f32.mrf.mxu0
    %3444 = vmatprep.mubr.f32.mxu0 0.0
    %3445 = vmatmul.mubr.f32.gmra.mxu0 %v3327
    %v3446 = vpop.f32.mrf.mxu0
    %v3447 = vadd.f32 0.0, %v3446
    %v3448 = vpop.f32.mrf.mxu0
    %3449 = vmatprep.mubr.f32.mxu0 0.0
    %3450 = vmatmul.mubr.f32.gmra.mxu0 %v3330
    %v3451 = vpop.f32.mrf.mxu0
    %v3452 = vadd.f32 0.0, %v3451
    %v3453 = vpop.f32.mrf.mxu0
    %3454 = vmatprep.mubr.f32.mxu0 0.0
    %3455 = vmatmul.mubr.f32.gmra.mxu0 %v3333
    %v3456 = vpop.f32.mrf.mxu0
    %v3457 = vadd.f32 0.0, %v3456
    %v3458 = vpop.f32.mrf.mxu0
    %3459 = vmatprep.mubr.f32.mxu0 0.0
    %3460 = vmatmul.mubr.f32.gmra.mxu0 %v3336
    %v3461 = vpop.f32.mrf.mxu0
    %v3462 = vadd.f32 0.0, %v3461
    %v3463 = vpop.f32.mrf.mxu0
    %3464 = vmatprep.mubr.f32.mxu0 0.0
    %3465 = vmatmul.mubr.f32.gmra.mxu0 %v3339
    %v3466 = vpop.f32.mrf.mxu0
    %v3467 = vadd.f32 0.0, %v3466
    %v3468 = vpop.f32.mrf.mxu0
    %3469 = vmatprep.mubr.f32.mxu0 0.0
    %3470 = vmatmul.mubr.f32.gmra.mxu0 %v3342
    %v3471 = vpop.f32.mrf.mxu0
    %v3472 = vadd.f32 0.0, %v3471
    %v3473 = vpop.f32.mrf.mxu0
    %3474 = vmatprep.mubr.f32.mxu0 0.0
    %3475 = vmatmul.mubr.f32.gmra.mxu0 %v3345
    %v3476 = vpop.f32.mrf.mxu0
    %v3477 = vadd.f32 0.0, %v3476
    %v3478 = vpop.f32.mrf.mxu0
    %3479 = vmatprep.mubr.f32.mxu0 0.0
    %3480 = vmatmul.mubr.f32.gmra.mxu0 %v3348
    %v3481 = vpop.f32.mrf.mxu0
    %v3482 = vadd.f32 0.0, %v3481
    %v3483 = vpop.f32.mrf.mxu0
    %3484 = vmatprep.mubr.f32.mxu0 0.0
    %3485 = vmatmul.mubr.f32.gmra.mxu0 %v3351
    %v3486 = vpop.f32.mrf.mxu0
    %v3487 = vadd.f32 0.0, %v3486
    %v3488 = vpop.f32.mrf.mxu0
    %3489 = vmatprep.mubr.f32.mxu0 0.0
    %3490 = vmatmul.mubr.f32.gmra.mxu0 %v3354
    %v3491 = vpop.f32.mrf.mxu0
    %v3492 = vadd.f32 0.0, %v3491
    %v3493 = vpop.f32.mrf.mxu0
    %3494 = vmatprep.mubr.f32.mxu0 0.0
    %3495 = vmatmul.mubr.f32.gmra.mxu0 %v3357
    %v3496 = vpop.f32.mrf.mxu0
    %v3497 = vadd.f32 0.0, %v3496
    %v3498 = vpop.f32.mrf.mxu0
    %3499 = vmatprep.mubr.f32.mxu0 0.0
    %3500 = vmatmul.mubr.f32.gmra.mxu0 %v3360
    %v3501 = vpop.f32.mrf.mxu0
    %v3502 = vadd.f32 0.0, %v3501
    %v3503 = vpop.f32.mrf.mxu0
    %3504 = vmatprep.mubr.f32.mxu0 0.0
    %3505 = vmatmul.mubr.f32.gmra.mxu0 %v3363
    %v3506 = vpop.f32.mrf.mxu0
    %v3507 = vadd.f32 0.0, %v3506
    %v3508 = vpop.f32.mrf.mxu0
    %3509 = vdwg.mxu0
    %v3510 = vadd.f32 %v3283, %v3432
    %v3511 = vadd.f32 %v3284, %v3437
    %v3512 = vadd.f32 %v3285, %v3442
    %v3513 = vadd.f32 %v3286, %v3447
    %v3514 = vadd.f32 %v3287, %v3452
    %v3515 = vadd.f32 %v3288, %v3457
    %v3516 = vadd.f32 %v3289, %v3462
    %v3517 = vadd.f32 %v3290, %v3467
    %v3518 = vadd.f32 %v3291, %v3472
    %v3519 = vadd.f32 %v3292, %v3477
    %v3520 = vadd.f32 %v3293, %v3482
    %v3521 = vadd.f32 %v3294, %v3487
    %v3522 = vadd.f32 %v3295, %v3492
    %v3523 = vadd.f32 %v3296, %v3497
    %v3524 = vadd.f32 %v3297, %v3502
    %v3525 = vadd.f32 %v3298, %v3507
    %v3526 = vld [vmem:[%s2595 + $0x1] sm:$0xff]
    %v3527 = vld [vmem:[%s2595 + $0x11] sm:$0xff]
    %v3528 = vld [vmem:[%s2595 + $0x21] sm:$0xff]
    %v3529 = vld [vmem:[%s2595 + $0x31] sm:$0xff]
    %v3530 = vld [vmem:[%s2595 + $0x41] sm:$0xff]
    %v3531 = vld [vmem:[%s2595 + $0x51] sm:$0xff]
    %v3532 = vld [vmem:[%s2595 + $0x61] sm:$0xff]
    %v3533 = vld [vmem:[%s2595 + $0x71] sm:$0xff]
    %v3534 = vld [vmem:[%s2595 + $0xa1] sm:$0xff]
    %v3535 = vld [vmem:[%s2595 + $0xb1] sm:$0xff]
    %v3536 = vld [vmem:[%s2595 + $0xc1] sm:$0xff]
    %v3537 = vld [vmem:[%s2595 + $0xd1] sm:$0xff]
    %v3538 = vld [vmem:[%s2595 + $0xe1] sm:$0xff]
    %v3539 = vld [vmem:[%s2595 + $0xf1] sm:$0xff]
    %v3540 = vld [vmem:[%s2595 + $0x101] sm:$0xff]
    %v3541 = vld [vmem:[%s2595 + $0x111] sm:$0xff]
    %s3542 = scalar_lea.vmem %s5, 32
    %v3543 = vld [vmem:[%s3542] sm:$0xff]
    %v3545 = vsel %vm85, %v3526, 0
    %v3548 = vsel %vm85, %v3527, 0
    %v3551 = vsel %vm85, %v3528, 0
    %v3554 = vsel %vm85, %v3529, 0
    %v3557 = vsel %vm85, %v3530, 0
    %v3560 = vsel %vm85, %v3531, 0
    %v3563 = vsel %vm85, %v3532, 0
    %v3566 = vsel %vm85, %v3533, 0
    %v3569 = vsel %vm85, %v3534, 0
    %v3572 = vsel %vm85, %v3535, 0
    %v3575 = vsel %vm85, %v3536, 0
    %v3578 = vsel %vm85, %v3537, 0
    %v3581 = vsel %vm85, %v3538, 0
    %v3584 = vsel %vm85, %v3539, 0
    %v3587 = vsel %vm85, %v3540, 0
    %v3590 = vsel %vm85, %v3541, 0
    %3592 = vmatprep.subr.mxu0 0.0
    %3593 = vmatpush1.msra.mxu0 0.0
    %3594 = vmatprep.subr.mxu0 0.0
    %3595 = vmatpush1.msra.mxu0 0.0
    %3596 = vmatprep.subr.mxu0 0.0
    %3597 = vmatpush1.msra.mxu0 0.0
    %3598 = vmatprep.subr.mxu0 0.0
    %3599 = vmatpush1.msra.mxu0 0.0
    %3600 = vmatprep.subr.mxu0 0.0
    %3601 = vmatpush1.msra.mxu0 0.0
    %3602 = vmatprep.subr.mxu0 0.0
    %3603 = vmatpush1.msra.mxu0 0.0
    %3604 = vmatprep.subr.mxu0 0.0
    %3605 = vmatpush1.msra.mxu0 0.0
    %3606 = vmatprep.subr.mxu0 0.0
    %3607 = vmatpush1.msra.mxu0 0.0
    %3608 = vmatprep.subr.mxu0 0.0
    %3609 = vmatpush1.msra.mxu0 0.0
    %3610 = vmatprep.subr.mxu0 0.0
    %3611 = vmatpush1.msra.mxu0 0.0
    %3612 = vmatprep.subr.mxu0 0.0
    %3613 = vmatpush1.msra.mxu0 0.0
    %3614 = vmatprep.subr.mxu0 0.0
    %3615 = vmatpush1.msra.mxu0 0.0
    %3616 = vmatprep.subr.mxu0 0.0
    %3617 = vmatpush1.msra.mxu0 0.0
    %3618 = vmatprep.subr.mxu0 0.0
    %3619 = vmatpush1.msra.mxu0 0.0
    %3620 = vmatprep.subr.mxu0 0.0
    %3621 = vmatpush1.msra.mxu0 0.0
    %3622 = vmatprep.subr.mxu0 0.0
    %3623 = vmatpush1.msra.mxu0 %v3543
    %3624 = vmatprep.subr.mxu0 0.0
    %3625 = vmatpush2.msra.mxu0 0.0
    %3626 = vmatprep.subr.mxu0 0.0
    %3627 = vmatpush2.msra.mxu0 0.0
    %3628 = vmatprep.subr.mxu0 0.0
    %3629 = vmatpush2.msra.mxu0 0.0
    %3630 = vmatprep.subr.mxu0 0.0
    %3631 = vmatpush2.msra.mxu0 0.0
    %3632 = vmatprep.subr.mxu0 0.0
    %3633 = vmatpush2.msra.mxu0 0.0
    %3634 = vmatprep.subr.mxu0 0.0
    %3635 = vmatpush2.msra.mxu0 0.0
    %3636 = vmatprep.subr.mxu0 0.0
    %3637 = vmatpush2.msra.mxu0 0.0
    %3638 = vmatprep.subr.mxu0 0.0
    %3639 = vmatpush2.msra.mxu0 0.0
    %3640 = vmatprep.subr.mxu0 0.0
    %3641 = vmatpush2.msra.mxu0 0.0
    %3642 = vmatprep.subr.mxu0 0.0
    %3643 = vmatpush2.msra.mxu0 0.0
    %3644 = vmatprep.subr.mxu0 0.0
    %3645 = vmatpush2.msra.mxu0 0.0
    %3646 = vmatprep.subr.mxu0 0.0
    %3647 = vmatpush2.msra.mxu0 0.0
    %3648 = vmatprep.subr.mxu0 0.0
    %3649 = vmatpush2.msra.mxu0 0.0
    %3650 = vmatprep.subr.mxu0 0.0
    %3651 = vmatpush2.msra.mxu0 0.0
    %3652 = vmatprep.subr.mxu0 0.0
    %3653 = vmatpush2.msra.mxu0 0.0
    %3654 = vmatprep.subr.mxu0 0.0
    %3655 = vmatpush2.msra.mxu0 0.0
    %3656 = vmatprep.mubr.f32.mxu0 0.0
    %3657 = vmatmul.mubr.f32.gmra.mxu0 %v3545
    %v3658 = vpop.f32.mrf.mxu0
    %v3659 = vadd.f32 0.0, %v3658
    %v3660 = vpop.f32.mrf.mxu0
    %3661 = vmatprep.mubr.f32.mxu0 0.0
    %3662 = vmatmul.mubr.f32.gmra.mxu0 %v3548
    %v3663 = vpop.f32.mrf.mxu0
    %v3664 = vadd.f32 0.0, %v3663
    %v3665 = vpop.f32.mrf.mxu0
    %3666 = vmatprep.mubr.f32.mxu0 0.0
    %3667 = vmatmul.mubr.f32.gmra.mxu0 %v3551
    %v3668 = vpop.f32.mrf.mxu0
    %v3669 = vadd.f32 0.0, %v3668
    %v3670 = vpop.f32.mrf.mxu0
    %3671 = vmatprep.mubr.f32.mxu0 0.0
    %3672 = vmatmul.mubr.f32.gmra.mxu0 %v3554
    %v3673 = vpop.f32.mrf.mxu0
    %v3674 = vadd.f32 0.0, %v3673
    %v3675 = vpop.f32.mrf.mxu0
    %3676 = vmatprep.mubr.f32.mxu0 0.0
    %3677 = vmatmul.mubr.f32.gmra.mxu0 %v3557
    %v3678 = vpop.f32.mrf.mxu0
    %v3679 = vadd.f32 0.0, %v3678
    %v3680 = vpop.f32.mrf.mxu0
    %3681 = vmatprep.mubr.f32.mxu0 0.0
    %3682 = vmatmul.mubr.f32.gmra.mxu0 %v3560
    %v3683 = vpop.f32.mrf.mxu0
    %v3684 = vadd.f32 0.0, %v3683
    %v3685 = vpop.f32.mrf.mxu0
    %3686 = vmatprep.mubr.f32.mxu0 0.0
    %3687 = vmatmul.mubr.f32.gmra.mxu0 %v3563
    %v3688 = vpop.f32.mrf.mxu0
    %v3689 = vadd.f32 0.0, %v3688
    %v3690 = vpop.f32.mrf.mxu0
    %3691 = vmatprep.mubr.f32.mxu0 0.0
    %3692 = vmatmul.mubr.f32.gmra.mxu0 %v3566
    %v3693 = vpop.f32.mrf.mxu0
    %v3694 = vadd.f32 0.0, %v3693
    %v3695 = vpop.f32.mrf.mxu0
    %3696 = vmatprep.mubr.f32.mxu0 0.0
    %3697 = vmatmul.mubr.f32.gmra.mxu0 %v3569
    %v3698 = vpop.f32.mrf.mxu0
    %v3699 = vadd.f32 0.0, %v3698
    %v3700 = vpop.f32.mrf.mxu0
    %3701 = vmatprep.mubr.f32.mxu0 0.0
    %3702 = vmatmul.mubr.f32.gmra.mxu0 %v3572
    %v3703 = vpop.f32.mrf.mxu0
    %v3704 = vadd.f32 0.0, %v3703
    %v3705 = vpop.f32.mrf.mxu0
    %3706 = vmatprep.mubr.f32.mxu0 0.0
    %3707 = vmatmul.mubr.f32.gmra.mxu0 %v3575
    %v3708 = vpop.f32.mrf.mxu0
    %v3709 = vadd.f32 0.0, %v3708
    %v3710 = vpop.f32.mrf.mxu0
    %3711 = vmatprep.mubr.f32.mxu0 0.0
    %3712 = vmatmul.mubr.f32.gmra.mxu0 %v3578
    %v3713 = vpop.f32.mrf.mxu0
    %v3714 = vadd.f32 0.0, %v3713
    %v3715 = vpop.f32.mrf.mxu0
    %3716 = vmatprep.mubr.f32.mxu0 0.0
    %3717 = vmatmul.mubr.f32.gmra.mxu0 %v3581
    %v3718 = vpop.f32.mrf.mxu0
    %v3719 = vadd.f32 0.0, %v3718
    %v3720 = vpop.f32.mrf.mxu0
    %3721 = vmatprep.mubr.f32.mxu0 0.0
    %3722 = vmatmul.mubr.f32.gmra.mxu0 %v3584
    %v3723 = vpop.f32.mrf.mxu0
    %v3724 = vadd.f32 0.0, %v3723
    %v3725 = vpop.f32.mrf.mxu0
    %3726 = vmatprep.mubr.f32.mxu0 0.0
    %3727 = vmatmul.mubr.f32.gmra.mxu0 %v3587
    %v3728 = vpop.f32.mrf.mxu0
    %v3729 = vadd.f32 0.0, %v3728
    %v3730 = vpop.f32.mrf.mxu0
    %3731 = vmatprep.mubr.f32.mxu0 0.0
    %3732 = vmatmul.mubr.f32.gmra.mxu0 %v3590
    %v3733 = vpop.f32.mrf.mxu0
    %v3734 = vadd.f32 0.0, %v3733
    %v3735 = vpop.f32.mrf.mxu0
    %3736 = vdwg.mxu0
    %v3737 = vadd.f32 %v3510, %v3659
    %v3738 = vadd.f32 %v3511, %v3664
    %v3739 = vadd.f32 %v3512, %v3669
    %v3740 = vadd.f32 %v3513, %v3674
    %v3741 = vadd.f32 %v3514, %v3679
    %v3742 = vadd.f32 %v3515, %v3684
    %v3743 = vadd.f32 %v3516, %v3689
    %v3744 = vadd.f32 %v3517, %v3694
    %v3745 = vadd.f32 %v3518, %v3699
    %v3746 = vadd.f32 %v3519, %v3704
    %v3747 = vadd.f32 %v3520, %v3709
    %v3748 = vadd.f32 %v3521, %v3714
    %v3749 = vadd.f32 %v3522, %v3719
    %v3750 = vadd.f32 %v3523, %v3724
    %v3751 = vadd.f32 %v3524, %v3729
    %v3752 = vadd.f32 %v3525, %v3734
    %v3753 = vld [vmem:[%s2595 + $0x2] sm:$0xff]
    %v3754 = vld [vmem:[%s2595 + $0x12] sm:$0xff]
    %v3755 = vld [vmem:[%s2595 + $0x22] sm:$0xff]
    %v3756 = vld [vmem:[%s2595 + $0x32] sm:$0xff]
    %v3757 = vld [vmem:[%s2595 + $0x42] sm:$0xff]
    %v3758 = vld [vmem:[%s2595 + $0x52] sm:$0xff]
    %v3759 = vld [vmem:[%s2595 + $0x62] sm:$0xff]
    %v3760 = vld [vmem:[%s2595 + $0x72] sm:$0xff]
    %v3761 = vld [vmem:[%s2595 + $0xa2] sm:$0xff]
    %v3762 = vld [vmem:[%s2595 + $0xb2] sm:$0xff]
    %v3763 = vld [vmem:[%s2595 + $0xc2] sm:$0xff]
    %v3764 = vld [vmem:[%s2595 + $0xd2] sm:$0xff]
    %v3765 = vld [vmem:[%s2595 + $0xe2] sm:$0xff]
    %v3766 = vld [vmem:[%s2595 + $0xf2] sm:$0xff]
    %v3767 = vld [vmem:[%s2595 + $0x102] sm:$0xff]
    %v3768 = vld [vmem:[%s2595 + $0x112] sm:$0xff]
    %s3769 = scalar_lea.vmem %s5, 40
    %v3770 = vld [vmem:[%s3769] sm:$0xff]
    %v3772 = vsel %vm85, %v3753, 0
    %v3775 = vsel %vm85, %v3754, 0
    %v3778 = vsel %vm85, %v3755, 0
    %v3781 = vsel %vm85, %v3756, 0
    %v3784 = vsel %vm85, %v3757, 0
    %v3787 = vsel %vm85, %v3758, 0
    %v3790 = vsel %vm85, %v3759, 0
    %v3793 = vsel %vm85, %v3760, 0
    %v3796 = vsel %vm85, %v3761, 0
    %v3799 = vsel %vm85, %v3762, 0
    %v3802 = vsel %vm85, %v3763, 0
    %v3805 = vsel %vm85, %v3764, 0
    %v3808 = vsel %vm85, %v3765, 0
    %v3811 = vsel %vm85, %v3766, 0
    %v3814 = vsel %vm85, %v3767, 0
    %v3817 = vsel %vm85, %v3768, 0
    %3819 = vmatprep.subr.mxu0 0.0
    %3820 = vmatpush1.msra.mxu0 0.0
    %3821 = vmatprep.subr.mxu0 0.0
    %3822 = vmatpush1.msra.mxu0 0.0
    %3823 = vmatprep.subr.mxu0 0.0
    %3824 = vmatpush1.msra.mxu0 0.0
    %3825 = vmatprep.subr.mxu0 0.0
    %3826 = vmatpush1.msra.mxu0 0.0
    %3827 = vmatprep.subr.mxu0 0.0
    %3828 = vmatpush1.msra.mxu0 0.0
    %3829 = vmatprep.subr.mxu0 0.0
    %3830 = vmatpush1.msra.mxu0 0.0
    %3831 = vmatprep.subr.mxu0 0.0
    %3832 = vmatpush1.msra.mxu0 0.0
    %3833 = vmatprep.subr.mxu0 0.0
    %3834 = vmatpush1.msra.mxu0 0.0
    %3835 = vmatprep.subr.mxu0 0.0
    %3836 = vmatpush1.msra.mxu0 0.0
    %3837 = vmatprep.subr.mxu0 0.0
    %3838 = vmatpush1.msra.mxu0 0.0
    %3839 = vmatprep.subr.mxu0 0.0
    %3840 = vmatpush1.msra.mxu0 0.0
    %3841 = vmatprep.subr.mxu0 0.0
    %3842 = vmatpush1.msra.mxu0 0.0
    %3843 = vmatprep.subr.mxu0 0.0
    %3844 = vmatpush1.msra.mxu0 0.0
    %3845 = vmatprep.subr.mxu0 0.0
    %3846 = vmatpush1.msra.mxu0 0.0
    %3847 = vmatprep.subr.mxu0 0.0
    %3848 = vmatpush1.msra.mxu0 0.0
    %3849 = vmatprep.subr.mxu0 0.0
    %3850 = vmatpush1.msra.mxu0 %v3770
    %3851 = vmatprep.subr.mxu0 0.0
    %3852 = vmatpush2.msra.mxu0 0.0
    %3853 = vmatprep.subr.mxu0 0.0
    %3854 = vmatpush2.msra.mxu0 0.0
    %3855 = vmatprep.subr.mxu0 0.0
    %3856 = vmatpush2.msra.mxu0 0.0
    %3857 = vmatprep.subr.mxu0 0.0
    %3858 = vmatpush2.msra.mxu0 0.0
    %3859 = vmatprep.subr.mxu0 0.0
    %3860 = vmatpush2.msra.mxu0 0.0
    %3861 = vmatprep.subr.mxu0 0.0
    %3862 = vmatpush2.msra.mxu0 0.0
    %3863 = vmatprep.subr.mxu0 0.0
    %3864 = vmatpush2.msra.mxu0 0.0
    %3865 = vmatprep.subr.mxu0 0.0
    %3866 = vmatpush2.msra.mxu0 0.0
    %3867 = vmatprep.subr.mxu0 0.0
    %3868 = vmatpush2.msra.mxu0 0.0
    %3869 = vmatprep.subr.mxu0 0.0
    %3870 = vmatpush2.msra.mxu0 0.0
    %3871 = vmatprep.subr.mxu0 0.0
    %3872 = vmatpush2.msra.mxu0 0.0
    %3873 = vmatprep.subr.mxu0 0.0
    %3874 = vmatpush2.msra.mxu0 0.0
    %3875 = vmatprep.subr.mxu0 0.0
    %3876 = vmatpush2.msra.mxu0 0.0
    %3877 = vmatprep.subr.mxu0 0.0
    %3878 = vmatpush2.msra.mxu0 0.0
    %3879 = vmatprep.subr.mxu0 0.0
    %3880 = vmatpush2.msra.mxu0 0.0
    %3881 = vmatprep.subr.mxu0 0.0
    %3882 = vmatpush2.msra.mxu0 0.0
    %3883 = vmatprep.mubr.f32.mxu0 0.0
    %3884 = vmatmul.mubr.f32.gmra.mxu0 %v3772
    %v3885 = vpop.f32.mrf.mxu0
    %v3886 = vadd.f32 0.0, %v3885
    %v3887 = vpop.f32.mrf.mxu0
    %3888 = vmatprep.mubr.f32.mxu0 0.0
    %3889 = vmatmul.mubr.f32.gmra.mxu0 %v3775
    %v3890 = vpop.f32.mrf.mxu0
    %v3891 = vadd.f32 0.0, %v3890
    %v3892 = vpop.f32.mrf.mxu0
    %3893 = vmatprep.mubr.f32.mxu0 0.0
    %3894 = vmatmul.mubr.f32.gmra.mxu0 %v3778
    %v3895 = vpop.f32.mrf.mxu0
    %v3896 = vadd.f32 0.0, %v3895
    %v3897 = vpop.f32.mrf.mxu0
    %3898 = vmatprep.mubr.f32.mxu0 0.0
    %3899 = vmatmul.mubr.f32.gmra.mxu0 %v3781
    %v3900 = vpop.f32.mrf.mxu0
    %v3901 = vadd.f32 0.0, %v3900
    %v3902 = vpop.f32.mrf.mxu0
    %3903 = vmatprep.mubr.f32.mxu0 0.0
    %3904 = vmatmul.mubr.f32.gmra.mxu0 %v3784
    %v3905 = vpop.f32.mrf.mxu0
    %v3906 = vadd.f32 0.0, %v3905
    %v3907 = vpop.f32.mrf.mxu0
    %3908 = vmatprep.mubr.f32.mxu0 0.0
    %3909 = vmatmul.mubr.f32.gmra.mxu0 %v3787
    %v3910 = vpop.f32.mrf.mxu0
    %v3911 = vadd.f32 0.0, %v3910
    %v3912 = vpop.f32.mrf.mxu0
    %3913 = vmatprep.mubr.f32.mxu0 0.0
    %3914 = vmatmul.mubr.f32.gmra.mxu0 %v3790
    %v3915 = vpop.f32.mrf.mxu0
    %v3916 = vadd.f32 0.0, %v3915
    %v3917 = vpop.f32.mrf.mxu0
    %3918 = vmatprep.mubr.f32.mxu0 0.0
    %3919 = vmatmul.mubr.f32.gmra.mxu0 %v3793
    %v3920 = vpop.f32.mrf.mxu0
    %v3921 = vadd.f32 0.0, %v3920
    %v3922 = vpop.f32.mrf.mxu0
    %3923 = vmatprep.mubr.f32.mxu0 0.0
    %3924 = vmatmul.mubr.f32.gmra.mxu0 %v3796
    %v3925 = vpop.f32.mrf.mxu0
    %v3926 = vadd.f32 0.0, %v3925
    %v3927 = vpop.f32.mrf.mxu0
    %3928 = vmatprep.mubr.f32.mxu0 0.0
    %3929 = vmatmul.mubr.f32.gmra.mxu0 %v3799
    %v3930 = vpop.f32.mrf.mxu0
    %v3931 = vadd.f32 0.0, %v3930
    %v3932 = vpop.f32.mrf.mxu0
    %3933 = vmatprep.mubr.f32.mxu0 0.0
    %3934 = vmatmul.mubr.f32.gmra.mxu0 %v3802
    %v3935 = vpop.f32.mrf.mxu0
    %v3936 = vadd.f32 0.0, %v3935
    %v3937 = vpop.f32.mrf.mxu0
    %3938 = vmatprep.mubr.f32.mxu0 0.0
    %3939 = vmatmul.mubr.f32.gmra.mxu0 %v3805
    %v3940 = vpop.f32.mrf.mxu0
    %v3941 = vadd.f32 0.0, %v3940
    %v3942 = vpop.f32.mrf.mxu0
    %3943 = vmatprep.mubr.f32.mxu0 0.0
    %3944 = vmatmul.mubr.f32.gmra.mxu0 %v3808
    %v3945 = vpop.f32.mrf.mxu0
    %v3946 = vadd.f32 0.0, %v3945
    %v3947 = vpop.f32.mrf.mxu0
    %3948 = vmatprep.mubr.f32.mxu0 0.0
    %3949 = vmatmul.mubr.f32.gmra.mxu0 %v3811
    %v3950 = vpop.f32.mrf.mxu0
    %v3951 = vadd.f32 0.0, %v3950
    %v3952 = vpop.f32.mrf.mxu0
    %3953 = vmatprep.mubr.f32.mxu0 0.0
    %3954 = vmatmul.mubr.f32.gmra.mxu0 %v3814
    %v3955 = vpop.f32.mrf.mxu0
    %v3956 = vadd.f32 0.0, %v3955
    %v3957 = vpop.f32.mrf.mxu0
    %3958 = vmatprep.mubr.f32.mxu0 0.0
    %3959 = vmatmul.mubr.f32.gmra.mxu0 %v3817
    %v3960 = vpop.f32.mrf.mxu0
    %v3961 = vadd.f32 0.0, %v3960
    %v3962 = vpop.f32.mrf.mxu0
    %3963 = vdwg.mxu0
    %v3964 = vadd.f32 %v3737, %v3886
    %v3965 = vadd.f32 %v3738, %v3891
    %v3966 = vadd.f32 %v3739, %v3896
    %v3967 = vadd.f32 %v3740, %v3901
    %v3968 = vadd.f32 %v3741, %v3906
    %v3969 = vadd.f32 %v3742, %v3911
    %v3970 = vadd.f32 %v3743, %v3916
    %v3971 = vadd.f32 %v3744, %v3921
    %v3972 = vadd.f32 %v3745, %v3926
    %v3973 = vadd.f32 %v3746, %v3931
    %v3974 = vadd.f32 %v3747, %v3936
    %v3975 = vadd.f32 %v3748, %v3941
    %v3976 = vadd.f32 %v3749, %v3946
    %v3977 = vadd.f32 %v3750, %v3951
    %v3978 = vadd.f32 %v3751, %v3956
    %v3979 = vadd.f32 %v3752, %v3961
    %s3980 = scalar_lea.vmem [#allocation3], 32
    %v3981 = vld [vmem:[%s3980] sm:$0xff]
    %v3982 = vld [vmem:[%s3980 + $0x10] sm:$0xff]
    %v3983 = vld [vmem:[%s3980 + $0x20] sm:$0xff]
    %v3984 = vld [vmem:[%s3980 + $0x30] sm:$0xff]
    %v3985 = vld [vmem:[%s3980 + $0x40] sm:$0xff]
    %v3986 = vld [vmem:[%s3980 + $0x50] sm:$0xff]
    %v3987 = vld [vmem:[%s3980 + $0x60] sm:$0xff]
    %v3988 = vld [vmem:[%s3980 + $0x70] sm:$0xff]
    %v3989 = vld [vmem:[%s3980 + $0xa0] sm:$0xff]
    %v3990 = vld [vmem:[%s3980 + $0xb0] sm:$0xff]
    %v3991 = vld [vmem:[%s3980 + $0xc0] sm:$0xff]
    %v3992 = vld [vmem:[%s3980 + $0xd0] sm:$0xff]
    %v3993 = vld [vmem:[%s3980 + $0xe0] sm:$0xff]
    %v3994 = vld [vmem:[%s3980 + $0xf0] sm:$0xff]
    %v3995 = vld [vmem:[%s3980 + $0x100] sm:$0xff]
    %v3996 = vld [vmem:[%s3980 + $0x110] sm:$0xff]
    %s3997 = scalar_lea.vmem %s5, 48
    %v3998 = vld [vmem:[%s3997] sm:$0xff]
    %v4000 = vsel %vm85, %v3981, 0
    %v4003 = vsel %vm85, %v3982, 0
    %v4006 = vsel %vm85, %v3983, 0
    %v4009 = vsel %vm85, %v3984, 0
    %v4012 = vsel %vm85, %v3985, 0
    %v4015 = vsel %vm85, %v3986, 0
    %v4018 = vsel %vm85, %v3987, 0
    %v4021 = vsel %vm85, %v3988, 0
    %v4024 = vsel %vm85, %v3989, 0
    %v4027 = vsel %vm85, %v3990, 0
    %v4030 = vsel %vm85, %v3991, 0
    %v4033 = vsel %vm85, %v3992, 0
    %v4036 = vsel %vm85, %v3993, 0
    %v4039 = vsel %vm85, %v3994, 0
    %v4042 = vsel %vm85, %v3995, 0
    %v4045 = vsel %vm85, %v3996, 0
    %4047 = vmatprep.subr.mxu0 0.0
    %4048 = vmatpush1.msra.mxu0 0.0
    %4049 = vmatprep.subr.mxu0 0.0
    %4050 = vmatpush1.msra.mxu0 0.0
    %4051 = vmatprep.subr.mxu0 0.0
    %4052 = vmatpush1.msra.mxu0 0.0
    %4053 = vmatprep.subr.mxu0 0.0
    %4054 = vmatpush1.msra.mxu0 0.0
    %4055 = vmatprep.subr.mxu0 0.0
    %4056 = vmatpush1.msra.mxu0 0.0
    %4057 = vmatprep.subr.mxu0 0.0
    %4058 = vmatpush1.msra.mxu0 0.0
    %4059 = vmatprep.subr.mxu0 0.0
    %4060 = vmatpush1.msra.mxu0 0.0
    %4061 = vmatprep.subr.mxu0 0.0
    %4062 = vmatpush1.msra.mxu0 0.0
    %4063 = vmatprep.subr.mxu0 0.0
    %4064 = vmatpush1.msra.mxu0 0.0
    %4065 = vmatprep.subr.mxu0 0.0
    %4066 = vmatpush1.msra.mxu0 0.0
    %4067 = vmatprep.subr.mxu0 0.0
    %4068 = vmatpush1.msra.mxu0 0.0
    %4069 = vmatprep.subr.mxu0 0.0
    %4070 = vmatpush1.msra.mxu0 0.0
    %4071 = vmatprep.subr.mxu0 0.0
    %4072 = vmatpush1.msra.mxu0 0.0
    %4073 = vmatprep.subr.mxu0 0.0
    %4074 = vmatpush1.msra.mxu0 0.0
    %4075 = vmatprep.subr.mxu0 0.0
    %4076 = vmatpush1.msra.mxu0 0.0
    %4077 = vmatprep.subr.mxu0 0.0
    %4078 = vmatpush1.msra.mxu0 %v3998
    %4079 = vmatprep.subr.mxu0 0.0
    %4080 = vmatpush2.msra.mxu0 0.0
    %4081 = vmatprep.subr.mxu0 0.0
    %4082 = vmatpush2.msra.mxu0 0.0
    %4083 = vmatprep.subr.mxu0 0.0
    %4084 = vmatpush2.msra.mxu0 0.0
    %4085 = vmatprep.subr.mxu0 0.0
    %4086 = vmatpush2.msra.mxu0 0.0
    %4087 = vmatprep.subr.mxu0 0.0
    %4088 = vmatpush2.msra.mxu0 0.0
    %4089 = vmatprep.subr.mxu0 0.0
    %4090 = vmatpush2.msra.mxu0 0.0
    %4091 = vmatprep.subr.mxu0 0.0
    %4092 = vmatpush2.msra.mxu0 0.0
    %4093 = vmatprep.subr.mxu0 0.0
    %4094 = vmatpush2.msra.mxu0 0.0
    %4095 = vmatprep.subr.mxu0 0.0
    %4096 = vmatpush2.msra.mxu0 0.0
    %4097 = vmatprep.subr.mxu0 0.0
    %4098 = vmatpush2.msra.mxu0 0.0
    %4099 = vmatprep.subr.mxu0 0.0
    %4100 = vmatpush2.msra.mxu0 0.0
    %4101 = vmatprep.subr.mxu0 0.0
    %4102 = vmatpush2.msra.mxu0 0.0
    %4103 = vmatprep.subr.mxu0 0.0
    %4104 = vmatpush2.msra.mxu0 0.0
    %4105 = vmatprep.subr.mxu0 0.0
    %4106 = vmatpush2.msra.mxu0 0.0
    %4107 = vmatprep.subr.mxu0 0.0
    %4108 = vmatpush2.msra.mxu0 0.0
    %4109 = vmatprep.subr.mxu0 0.0
    %4110 = vmatpush2.msra.mxu0 0.0
    %4111 = vmatprep.mubr.f32.mxu0 0.0
    %4112 = vmatmul.mubr.f32.gmra.mxu0 %v4000
    %v4113 = vpop.f32.mrf.mxu0
    %v4114 = vadd.f32 0.0, %v4113
    %v4115 = vpop.f32.mrf.mxu0
    %4116 = vmatprep.mubr.f32.mxu0 0.0
    %4117 = vmatmul.mubr.f32.gmra.mxu0 %v4003
    %v4118 = vpop.f32.mrf.mxu0
    %v4119 = vadd.f32 0.0, %v4118
    %v4120 = vpop.f32.mrf.mxu0
    %4121 = vmatprep.mubr.f32.mxu0 0.0
    %4122 = vmatmul.mubr.f32.gmra.mxu0 %v4006
    %v4123 = vpop.f32.mrf.mxu0
    %v4124 = vadd.f32 0.0, %v4123
    %v4125 = vpop.f32.mrf.mxu0
    %4126 = vmatprep.mubr.f32.mxu0 0.0
    %4127 = vmatmul.mubr.f32.gmra.mxu0 %v4009
    %v4128 = vpop.f32.mrf.mxu0
    %v4129 = vadd.f32 0.0, %v4128
    %v4130 = vpop.f32.mrf.mxu0
    %4131 = vmatprep.mubr.f32.mxu0 0.0
    %4132 = vmatmul.mubr.f32.gmra.mxu0 %v4012
    %v4133 = vpop.f32.mrf.mxu0
    %v4134 = vadd.f32 0.0, %v4133
    %v4135 = vpop.f32.mrf.mxu0
    %4136 = vmatprep.mubr.f32.mxu0 0.0
    %4137 = vmatmul.mubr.f32.gmra.mxu0 %v4015
    %v4138 = vpop.f32.mrf.mxu0
    %v4139 = vadd.f32 0.0, %v4138
    %v4140 = vpop.f32.mrf.mxu0
    %4141 = vmatprep.mubr.f32.mxu0 0.0
    %4142 = vmatmul.mubr.f32.gmra.mxu0 %v4018
    %v4143 = vpop.f32.mrf.mxu0
    %v4144 = vadd.f32 0.0, %v4143
    %v4145 = vpop.f32.mrf.mxu0
    %4146 = vmatprep.mubr.f32.mxu0 0.0
    %4147 = vmatmul.mubr.f32.gmra.mxu0 %v4021
    %v4148 = vpop.f32.mrf.mxu0
    %v4149 = vadd.f32 0.0, %v4148
    %v4150 = vpop.f32.mrf.mxu0
    %4151 = vmatprep.mubr.f32.mxu0 0.0
    %4152 = vmatmul.mubr.f32.gmra.mxu0 %v4024
    %v4153 = vpop.f32.mrf.mxu0
    %v4154 = vadd.f32 0.0, %v4153
    %v4155 = vpop.f32.mrf.mxu0
    %4156 = vmatprep.mubr.f32.mxu0 0.0
    %4157 = vmatmul.mubr.f32.gmra.mxu0 %v4027
    %v4158 = vpop.f32.mrf.mxu0
    %v4159 = vadd.f32 0.0, %v4158
    %v4160 = vpop.f32.mrf.mxu0
    %4161 = vmatprep.mubr.f32.mxu0 0.0
    %4162 = vmatmul.mubr.f32.gmra.mxu0 %v4030
    %v4163 = vpop.f32.mrf.mxu0
    %v4164 = vadd.f32 0.0, %v4163
    %v4165 = vpop.f32.mrf.mxu0
    %4166 = vmatprep.mubr.f32.mxu0 0.0
    %4167 = vmatmul.mubr.f32.gmra.mxu0 %v4033
    %v4168 = vpop.f32.mrf.mxu0
    %v4169 = vadd.f32 0.0, %v4168
    %v4170 = vpop.f32.mrf.mxu0
    %4171 = vmatprep.mubr.f32.mxu0 0.0
    %4172 = vmatmul.mubr.f32.gmra.mxu0 %v4036
    %v4173 = vpop.f32.mrf.mxu0
    %v4174 = vadd.f32 0.0, %v4173
    %v4175 = vpop.f32.mrf.mxu0
    %4176 = vmatprep.mubr.f32.mxu0 0.0
    %4177 = vmatmul.mubr.f32.gmra.mxu0 %v4039
    %v4178 = vpop.f32.mrf.mxu0
    %v4179 = vadd.f32 0.0, %v4178
    %v4180 = vpop.f32.mrf.mxu0
    %4181 = vmatprep.mubr.f32.mxu0 0.0
    %4182 = vmatmul.mubr.f32.gmra.mxu0 %v4042
    %v4183 = vpop.f32.mrf.mxu0
    %v4184 = vadd.f32 0.0, %v4183
    %v4185 = vpop.f32.mrf.mxu0
    %4186 = vmatprep.mubr.f32.mxu0 0.0
    %4187 = vmatmul.mubr.f32.gmra.mxu0 %v4045
    %v4188 = vpop.f32.mrf.mxu0
    %v4189 = vadd.f32 0.0, %v4188
    %v4190 = vpop.f32.mrf.mxu0
    %4191 = vdwg.mxu0
    %v4192 = vadd.f32 %v3964, %v4114
    %v4193 = vadd.f32 %v3965, %v4119
    %v4194 = vadd.f32 %v3966, %v4124
    %v4195 = vadd.f32 %v3967, %v4129
    %v4196 = vadd.f32 %v3968, %v4134
    %v4197 = vadd.f32 %v3969, %v4139
    %v4198 = vadd.f32 %v3970, %v4144
    %v4199 = vadd.f32 %v3971, %v4149
    %v4200 = vadd.f32 %v3972, %v4154
    %v4201 = vadd.f32 %v3973, %v4159
    %v4202 = vadd.f32 %v3974, %v4164
    %v4203 = vadd.f32 %v3975, %v4169
    %v4204 = vadd.f32 %v3976, %v4174
    %v4205 = vadd.f32 %v3977, %v4179
    %v4206 = vadd.f32 %v3978, %v4184
    %v4207 = vadd.f32 %v3979, %v4189
    %v4208 = vld [vmem:[%s3980 + $0x1] sm:$0xff]
    %v4209 = vld [vmem:[%s3980 + $0x11] sm:$0xff]
    %v4210 = vld [vmem:[%s3980 + $0x21] sm:$0xff]
    %v4211 = vld [vmem:[%s3980 + $0x31] sm:$0xff]
    %v4212 = vld [vmem:[%s3980 + $0x41] sm:$0xff]
    %v4213 = vld [vmem:[%s3980 + $0x51] sm:$0xff]
    %v4214 = vld [vmem:[%s3980 + $0x61] sm:$0xff]
    %v4215 = vld [vmem:[%s3980 + $0x71] sm:$0xff]
    %v4216 = vld [vmem:[%s3980 + $0xa1] sm:$0xff]
    %v4217 = vld [vmem:[%s3980 + $0xb1] sm:$0xff]
    %v4218 = vld [vmem:[%s3980 + $0xc1] sm:$0xff]
    %v4219 = vld [vmem:[%s3980 + $0xd1] sm:$0xff]
    %v4220 = vld [vmem:[%s3980 + $0xe1] sm:$0xff]
    %v4221 = vld [vmem:[%s3980 + $0xf1] sm:$0xff]
    %v4222 = vld [vmem:[%s3980 + $0x101] sm:$0xff]
    %v4223 = vld [vmem:[%s3980 + $0x111] sm:$0xff]
    %s4224 = scalar_lea.vmem %s5, 56
    %v4225 = vld [vmem:[%s4224] sm:$0xff]
    %v4227 = vsel %vm85, %v4208, 0
    %v4230 = vsel %vm85, %v4209, 0
    %v4233 = vsel %vm85, %v4210, 0
    %v4236 = vsel %vm85, %v4211, 0
    %v4239 = vsel %vm85, %v4212, 0
    %v4242 = vsel %vm85, %v4213, 0
    %v4245 = vsel %vm85, %v4214, 0
    %v4248 = vsel %vm85, %v4215, 0
    %v4251 = vsel %vm85, %v4216, 0
    %v4254 = vsel %vm85, %v4217, 0
    %v4257 = vsel %vm85, %v4218, 0
    %v4260 = vsel %vm85, %v4219, 0
    %v4263 = vsel %vm85, %v4220, 0
    %v4266 = vsel %vm85, %v4221, 0
    %v4269 = vsel %vm85, %v4222, 0
    %v4272 = vsel %vm85, %v4223, 0
    %4274 = vmatprep.subr.mxu0 0.0
    %4275 = vmatpush1.msra.mxu0 0.0
    %4276 = vmatprep.subr.mxu0 0.0
    %4277 = vmatpush1.msra.mxu0 0.0
    %4278 = vmatprep.subr.mxu0 0.0
    %4279 = vmatpush1.msra.mxu0 0.0
    %4280 = vmatprep.subr.mxu0 0.0
    %4281 = vmatpush1.msra.mxu0 0.0
    %4282 = vmatprep.subr.mxu0 0.0
    %4283 = vmatpush1.msra.mxu0 0.0
    %4284 = vmatprep.subr.mxu0 0.0
    %4285 = vmatpush1.msra.mxu0 0.0
    %4286 = vmatprep.subr.mxu0 0.0
    %4287 = vmatpush1.msra.mxu0 0.0
    %4288 = vmatprep.subr.mxu0 0.0
    %4289 = vmatpush1.msra.mxu0 0.0
    %4290 = vmatprep.subr.mxu0 0.0
    %4291 = vmatpush1.msra.mxu0 0.0
    %4292 = vmatprep.subr.mxu0 0.0
    %4293 = vmatpush1.msra.mxu0 0.0
    %4294 = vmatprep.subr.mxu0 0.0
    %4295 = vmatpush1.msra.mxu0 0.0
    %4296 = vmatprep.subr.mxu0 0.0
    %4297 = vmatpush1.msra.mxu0 0.0
    %4298 = vmatprep.subr.mxu0 0.0
    %4299 = vmatpush1.msra.mxu0 0.0
    %4300 = vmatprep.subr.mxu0 0.0
    %4301 = vmatpush1.msra.mxu0 0.0
    %4302 = vmatprep.subr.mxu0 0.0
    %4303 = vmatpush1.msra.mxu0 0.0
    %4304 = vmatprep.subr.mxu0 0.0
    %4305 = vmatpush1.msra.mxu0 %v4225
    %4306 = vmatprep.subr.mxu0 0.0
    %4307 = vmatpush2.msra.mxu0 0.0
    %4308 = vmatprep.subr.mxu0 0.0
    %4309 = vmatpush2.msra.mxu0 0.0
    %4310 = vmatprep.subr.mxu0 0.0
    %4311 = vmatpush2.msra.mxu0 0.0
    %4312 = vmatprep.subr.mxu0 0.0
    %4313 = vmatpush2.msra.mxu0 0.0
    %4314 = vmatprep.subr.mxu0 0.0
    %4315 = vmatpush2.msra.mxu0 0.0
    %4316 = vmatprep.subr.mxu0 0.0
    %4317 = vmatpush2.msra.mxu0 0.0
    %4318 = vmatprep.subr.mxu0 0.0
    %4319 = vmatpush2.msra.mxu0 0.0
    %4320 = vmatprep.subr.mxu0 0.0
    %4321 = vmatpush2.msra.mxu0 0.0
    %4322 = vmatprep.subr.mxu0 0.0
    %4323 = vmatpush2.msra.mxu0 0.0
    %4324 = vmatprep.subr.mxu0 0.0
    %4325 = vmatpush2.msra.mxu0 0.0
    %4326 = vmatprep.subr.mxu0 0.0
    %4327 = vmatpush2.msra.mxu0 0.0
    %4328 = vmatprep.subr.mxu0 0.0
    %4329 = vmatpush2.msra.mxu0 0.0
    %4330 = vmatprep.subr.mxu0 0.0
    %4331 = vmatpush2.msra.mxu0 0.0
    %4332 = vmatprep.subr.mxu0 0.0
    %4333 = vmatpush2.msra.mxu0 0.0
    %4334 = vmatprep.subr.mxu0 0.0
    %4335 = vmatpush2.msra.mxu0 0.0
    %4336 = vmatprep.subr.mxu0 0.0
    %4337 = vmatpush2.msra.mxu0 0.0
    %4338 = vmatprep.mubr.f32.mxu0 0.0
    %4339 = vmatmul.mubr.f32.gmra.mxu0 %v4227
    %v4340 = vpop.f32.mrf.mxu0
    %v4341 = vadd.f32 0.0, %v4340
    %v4342 = vpop.f32.mrf.mxu0
    %4343 = vmatprep.mubr.f32.mxu0 0.0
    %4344 = vmatmul.mubr.f32.gmra.mxu0 %v4230
    %v4345 = vpop.f32.mrf.mxu0
    %v4346 = vadd.f32 0.0, %v4345
    %v4347 = vpop.f32.mrf.mxu0
    %4348 = vmatprep.mubr.f32.mxu0 0.0
    %4349 = vmatmul.mubr.f32.gmra.mxu0 %v4233
    %v4350 = vpop.f32.mrf.mxu0
    %v4351 = vadd.f32 0.0, %v4350
    %v4352 = vpop.f32.mrf.mxu0
    %4353 = vmatprep.mubr.f32.mxu0 0.0
    %4354 = vmatmul.mubr.f32.gmra.mxu0 %v4236
    %v4355 = vpop.f32.mrf.mxu0
    %v4356 = vadd.f32 0.0, %v4355
    %v4357 = vpop.f32.mrf.mxu0
    %4358 = vmatprep.mubr.f32.mxu0 0.0
    %4359 = vmatmul.mubr.f32.gmra.mxu0 %v4239
    %v4360 = vpop.f32.mrf.mxu0
    %v4361 = vadd.f32 0.0, %v4360
    %v4362 = vpop.f32.mrf.mxu0
    %4363 = vmatprep.mubr.f32.mxu0 0.0
    %4364 = vmatmul.mubr.f32.gmra.mxu0 %v4242
    %v4365 = vpop.f32.mrf.mxu0
    %v4366 = vadd.f32 0.0, %v4365
    %v4367 = vpop.f32.mrf.mxu0
    %4368 = vmatprep.mubr.f32.mxu0 0.0
    %4369 = vmatmul.mubr.f32.gmra.mxu0 %v4245
    %v4370 = vpop.f32.mrf.mxu0
    %v4371 = vadd.f32 0.0, %v4370
    %v4372 = vpop.f32.mrf.mxu0
    %4373 = vmatprep.mubr.f32.mxu0 0.0
    %4374 = vmatmul.mubr.f32.gmra.mxu0 %v4248
    %v4375 = vpop.f32.mrf.mxu0
    %v4376 = vadd.f32 0.0, %v4375
    %v4377 = vpop.f32.mrf.mxu0
    %4378 = vmatprep.mubr.f32.mxu0 0.0
    %4379 = vmatmul.mubr.f32.gmra.mxu0 %v4251
    %v4380 = vpop.f32.mrf.mxu0
    %v4381 = vadd.f32 0.0, %v4380
    %v4382 = vpop.f32.mrf.mxu0
    %4383 = vmatprep.mubr.f32.mxu0 0.0
    %4384 = vmatmul.mubr.f32.gmra.mxu0 %v4254
    %v4385 = vpop.f32.mrf.mxu0
    %v4386 = vadd.f32 0.0, %v4385
    %v4387 = vpop.f32.mrf.mxu0
    %4388 = vmatprep.mubr.f32.mxu0 0.0
    %4389 = vmatmul.mubr.f32.gmra.mxu0 %v4257
    %v4390 = vpop.f32.mrf.mxu0
    %v4391 = vadd.f32 0.0, %v4390
    %v4392 = vpop.f32.mrf.mxu0
    %4393 = vmatprep.mubr.f32.mxu0 0.0
    %4394 = vmatmul.mubr.f32.gmra.mxu0 %v4260
    %v4395 = vpop.f32.mrf.mxu0
    %v4396 = vadd.f32 0.0, %v4395
    %v4397 = vpop.f32.mrf.mxu0
    %4398 = vmatprep.mubr.f32.mxu0 0.0
    %4399 = vmatmul.mubr.f32.gmra.mxu0 %v4263
    %v4400 = vpop.f32.mrf.mxu0
    %v4401 = vadd.f32 0.0, %v4400
    %v4402 = vpop.f32.mrf.mxu0
    %4403 = vmatprep.mubr.f32.mxu0 0.0
    %4404 = vmatmul.mubr.f32.gmra.mxu0 %v4266
    %v4405 = vpop.f32.mrf.mxu0
    %v4406 = vadd.f32 0.0, %v4405
    %v4407 = vpop.f32.mrf.mxu0
    %4408 = vmatprep.mubr.f32.mxu0 0.0
    %4409 = vmatmul.mubr.f32.gmra.mxu0 %v4269
    %v4410 = vpop.f32.mrf.mxu0
    %v4411 = vadd.f32 0.0, %v4410
    %v4412 = vpop.f32.mrf.mxu0
    %4413 = vmatprep.mubr.f32.mxu0 0.0
    %4414 = vmatmul.mubr.f32.gmra.mxu0 %v4272
    %v4415 = vpop.f32.mrf.mxu0
    %v4416 = vadd.f32 0.0, %v4415
    %v4417 = vpop.f32.mrf.mxu0
    %4418 = vdwg.mxu0
    %v4419 = vadd.f32 %v4192, %v4341
    %v4420 = vadd.f32 %v4193, %v4346
    %v4421 = vadd.f32 %v4194, %v4351
    %v4422 = vadd.f32 %v4195, %v4356
    %v4423 = vadd.f32 %v4196, %v4361
    %v4424 = vadd.f32 %v4197, %v4366
    %v4425 = vadd.f32 %v4198, %v4371
    %v4426 = vadd.f32 %v4199, %v4376
    %v4427 = vadd.f32 %v4200, %v4381
    %v4428 = vadd.f32 %v4201, %v4386
    %v4429 = vadd.f32 %v4202, %v4391
    %v4430 = vadd.f32 %v4203, %v4396
    %v4431 = vadd.f32 %v4204, %v4401
    %v4432 = vadd.f32 %v4205, %v4406
    %v4433 = vadd.f32 %v4206, %v4411
    %v4434 = vadd.f32 %v4207, %v4416
    %v4435 = vld [vmem:[%s3980 + $0x2] sm:$0xff]
    %v4436 = vld [vmem:[%s3980 + $0x12] sm:$0xff]
    %v4437 = vld [vmem:[%s3980 + $0x22] sm:$0xff]
    %v4438 = vld [vmem:[%s3980 + $0x32] sm:$0xff]
    %v4439 = vld [vmem:[%s3980 + $0x42] sm:$0xff]
    %v4440 = vld [vmem:[%s3980 + $0x52] sm:$0xff]
    %v4441 = vld [vmem:[%s3980 + $0x62] sm:$0xff]
    %v4442 = vld [vmem:[%s3980 + $0x72] sm:$0xff]
    %v4443 = vld [vmem:[%s3980 + $0xa2] sm:$0xff]
    %v4444 = vld [vmem:[%s3980 + $0xb2] sm:$0xff]
    %v4445 = vld [vmem:[%s3980 + $0xc2] sm:$0xff]
    %v4446 = vld [vmem:[%s3980 + $0xd2] sm:$0xff]
    %v4447 = vld [vmem:[%s3980 + $0xe2] sm:$0xff]
    %v4448 = vld [vmem:[%s3980 + $0xf2] sm:$0xff]
    %v4449 = vld [vmem:[%s3980 + $0x102] sm:$0xff]
    %v4450 = vld [vmem:[%s3980 + $0x112] sm:$0xff]
    %s4451 = scalar_lea.vmem %s5, 64
    %v4452 = vld [vmem:[%s4451] sm:$0xff]
    %v4454 = vsel %vm85, %v4435, 0
    %v4457 = vsel %vm85, %v4436, 0
    %v4460 = vsel %vm85, %v4437, 0
    %v4463 = vsel %vm85, %v4438, 0
    %v4466 = vsel %vm85, %v4439, 0
    %v4469 = vsel %vm85, %v4440, 0
    %v4472 = vsel %vm85, %v4441, 0
    %v4475 = vsel %vm85, %v4442, 0
    %v4478 = vsel %vm85, %v4443, 0
    %v4481 = vsel %vm85, %v4444, 0
    %v4484 = vsel %vm85, %v4445, 0
    %v4487 = vsel %vm85, %v4446, 0
    %v4490 = vsel %vm85, %v4447, 0
    %v4493 = vsel %vm85, %v4448, 0
    %v4496 = vsel %vm85, %v4449, 0
    %v4499 = vsel %vm85, %v4450, 0
    %4501 = vmatprep.subr.mxu0 0.0
    %4502 = vmatpush1.msra.mxu0 0.0
    %4503 = vmatprep.subr.mxu0 0.0
    %4504 = vmatpush1.msra.mxu0 0.0
    %4505 = vmatprep.subr.mxu0 0.0
    %4506 = vmatpush1.msra.mxu0 0.0
    %4507 = vmatprep.subr.mxu0 0.0
    %4508 = vmatpush1.msra.mxu0 0.0
    %4509 = vmatprep.subr.mxu0 0.0
    %4510 = vmatpush1.msra.mxu0 0.0
    %4511 = vmatprep.subr.mxu0 0.0
    %4512 = vmatpush1.msra.mxu0 0.0
    %4513 = vmatprep.subr.mxu0 0.0
    %4514 = vmatpush1.msra.mxu0 0.0
    %4515 = vmatprep.subr.mxu0 0.0
    %4516 = vmatpush1.msra.mxu0 0.0
    %4517 = vmatprep.subr.mxu0 0.0
    %4518 = vmatpush1.msra.mxu0 0.0
    %4519 = vmatprep.subr.mxu0 0.0
    %4520 = vmatpush1.msra.mxu0 0.0
    %4521 = vmatprep.subr.mxu0 0.0
    %4522 = vmatpush1.msra.mxu0 0.0
    %4523 = vmatprep.subr.mxu0 0.0
    %4524 = vmatpush1.msra.mxu0 0.0
    %4525 = vmatprep.subr.mxu0 0.0
    %4526 = vmatpush1.msra.mxu0 0.0
    %4527 = vmatprep.subr.mxu0 0.0
    %4528 = vmatpush1.msra.mxu0 0.0
    %4529 = vmatprep.subr.mxu0 0.0
    %4530 = vmatpush1.msra.mxu0 0.0
    %4531 = vmatprep.subr.mxu0 0.0
    %4532 = vmatpush1.msra.mxu0 %v4452
    %4533 = vmatprep.subr.mxu0 0.0
    %4534 = vmatpush2.msra.mxu0 0.0
    %4535 = vmatprep.subr.mxu0 0.0
    %4536 = vmatpush2.msra.mxu0 0.0
    %4537 = vmatprep.subr.mxu0 0.0
    %4538 = vmatpush2.msra.mxu0 0.0
    %4539 = vmatprep.subr.mxu0 0.0
    %4540 = vmatpush2.msra.mxu0 0.0
    %4541 = vmatprep.subr.mxu0 0.0
    %4542 = vmatpush2.msra.mxu0 0.0
    %4543 = vmatprep.subr.mxu0 0.0
    %4544 = vmatpush2.msra.mxu0 0.0
    %4545 = vmatprep.subr.mxu0 0.0
    %4546 = vmatpush2.msra.mxu0 0.0
    %4547 = vmatprep.subr.mxu0 0.0
    %4548 = vmatpush2.msra.mxu0 0.0
    %4549 = vmatprep.subr.mxu0 0.0
    %4550 = vmatpush2.msra.mxu0 0.0
    %4551 = vmatprep.subr.mxu0 0.0
    %4552 = vmatpush2.msra.mxu0 0.0
    %4553 = vmatprep.subr.mxu0 0.0
    %4554 = vmatpush2.msra.mxu0 0.0
    %4555 = vmatprep.subr.mxu0 0.0
    %4556 = vmatpush2.msra.mxu0 0.0
    %4557 = vmatprep.subr.mxu0 0.0
    %4558 = vmatpush2.msra.mxu0 0.0
    %4559 = vmatprep.subr.mxu0 0.0
    %4560 = vmatpush2.msra.mxu0 0.0
    %4561 = vmatprep.subr.mxu0 0.0
    %4562 = vmatpush2.msra.mxu0 0.0
    %4563 = vmatprep.subr.mxu0 0.0
    %4564 = vmatpush2.msra.mxu0 0.0
    %4565 = vmatprep.mubr.f32.mxu0 0.0
    %4566 = vmatmul.mubr.f32.gmra.mxu0 %v4454
    %v4567 = vpop.f32.mrf.mxu0
    %v4568 = vadd.f32 0.0, %v4567
    %v4569 = vpop.f32.mrf.mxu0
    %4570 = vmatprep.mubr.f32.mxu0 0.0
    %4571 = vmatmul.mubr.f32.gmra.mxu0 %v4457
    %v4572 = vpop.f32.mrf.mxu0
    %v4573 = vadd.f32 0.0, %v4572
    %v4574 = vpop.f32.mrf.mxu0
    %4575 = vmatprep.mubr.f32.mxu0 0.0
    %4576 = vmatmul.mubr.f32.gmra.mxu0 %v4460
    %v4577 = vpop.f32.mrf.mxu0
    %v4578 = vadd.f32 0.0, %v4577
    %v4579 = vpop.f32.mrf.mxu0
    %4580 = vmatprep.mubr.f32.mxu0 0.0
    %4581 = vmatmul.mubr.f32.gmra.mxu0 %v4463
    %v4582 = vpop.f32.mrf.mxu0
    %v4583 = vadd.f32 0.0, %v4582
    %v4584 = vpop.f32.mrf.mxu0
    %4585 = vmatprep.mubr.f32.mxu0 0.0
    %4586 = vmatmul.mubr.f32.gmra.mxu0 %v4466
    %v4587 = vpop.f32.mrf.mxu0
    %v4588 = vadd.f32 0.0, %v4587
    %v4589 = vpop.f32.mrf.mxu0
    %4590 = vmatprep.mubr.f32.mxu0 0.0
    %4591 = vmatmul.mubr.f32.gmra.mxu0 %v4469
    %v4592 = vpop.f32.mrf.mxu0
    %v4593 = vadd.f32 0.0, %v4592
    %v4594 = vpop.f32.mrf.mxu0
    %4595 = vmatprep.mubr.f32.mxu0 0.0
    %4596 = vmatmul.mubr.f32.gmra.mxu0 %v4472
    %v4597 = vpop.f32.mrf.mxu0
    %v4598 = vadd.f32 0.0, %v4597
    %v4599 = vpop.f32.mrf.mxu0
    %4600 = vmatprep.mubr.f32.mxu0 0.0
    %4601 = vmatmul.mubr.f32.gmra.mxu0 %v4475
    %v4602 = vpop.f32.mrf.mxu0
    %v4603 = vadd.f32 0.0, %v4602
    %v4604 = vpop.f32.mrf.mxu0
    %4605 = vmatprep.mubr.f32.mxu0 0.0
    %4606 = vmatmul.mubr.f32.gmra.mxu0 %v4478
    %v4607 = vpop.f32.mrf.mxu0
    %v4608 = vadd.f32 0.0, %v4607
    %v4609 = vpop.f32.mrf.mxu0
    %4610 = vmatprep.mubr.f32.mxu0 0.0
    %4611 = vmatmul.mubr.f32.gmra.mxu0 %v4481
    %v4612 = vpop.f32.mrf.mxu0
    %v4613 = vadd.f32 0.0, %v4612
    %v4614 = vpop.f32.mrf.mxu0
    %4615 = vmatprep.mubr.f32.mxu0 0.0
    %4616 = vmatmul.mubr.f32.gmra.mxu0 %v4484
    %v4617 = vpop.f32.mrf.mxu0
    %v4618 = vadd.f32 0.0, %v4617
    %v4619 = vpop.f32.mrf.mxu0
    %4620 = vmatprep.mubr.f32.mxu0 0.0
    %4621 = vmatmul.mubr.f32.gmra.mxu0 %v4487
    %v4622 = vpop.f32.mrf.mxu0
    %v4623 = vadd.f32 0.0, %v4622
    %v4624 = vpop.f32.mrf.mxu0
    %4625 = vmatprep.mubr.f32.mxu0 0.0
    %4626 = vmatmul.mubr.f32.gmra.mxu0 %v4490
    %v4627 = vpop.f32.mrf.mxu0
    %v4628 = vadd.f32 0.0, %v4627
    %v4629 = vpop.f32.mrf.mxu0
    %4630 = vmatprep.mubr.f32.mxu0 0.0
    %4631 = vmatmul.mubr.f32.gmra.mxu0 %v4493
    %v4632 = vpop.f32.mrf.mxu0
    %v4633 = vadd.f32 0.0, %v4632
    %v4634 = vpop.f32.mrf.mxu0
    %4635 = vmatprep.mubr.f32.mxu0 0.0
    %4636 = vmatmul.mubr.f32.gmra.mxu0 %v4496
    %v4637 = vpop.f32.mrf.mxu0
    %v4638 = vadd.f32 0.0, %v4637
    %v4639 = vpop.f32.mrf.mxu0
    %4640 = vmatprep.mubr.f32.mxu0 0.0
    %4641 = vmatmul.mubr.f32.gmra.mxu0 %v4499
    %v4642 = vpop.f32.mrf.mxu0
    %v4643 = vadd.f32 0.0, %v4642
    %v4644 = vpop.f32.mrf.mxu0
    %4645 = vdwg.mxu0
    %v4646 = vadd.f32 %v4419, %v4568
    %v4647 = vadd.f32 %v4420, %v4573
    %v4648 = vadd.f32 %v4421, %v4578
    %v4649 = vadd.f32 %v4422, %v4583
    %v4650 = vadd.f32 %v4423, %v4588
    %v4651 = vadd.f32 %v4424, %v4593
    %v4652 = vadd.f32 %v4425, %v4598
    %v4653 = vadd.f32 %v4426, %v4603
    %v4654 = vadd.f32 %v4427, %v4608
    %v4655 = vadd.f32 %v4428, %v4613
    %v4656 = vadd.f32 %v4429, %v4618
    %v4657 = vadd.f32 %v4430, %v4623
    %v4658 = vadd.f32 %v4431, %v4628
    %v4659 = vadd.f32 %v4432, %v4633
    %v4660 = vadd.f32 %v4433, %v4638
    %v4661 = vadd.f32 %v4434, %v4643
    %v4662 = vmax.f32 %v4646, 0.0
    %v4663 = vmax.f32 %v4647, 0.0
    %v4664 = vmax.f32 %v4648, 0.0
    %v4665 = vmax.f32 %v4649, 0.0
    %v4666 = vmax.f32 %v4650, 0.0
    %v4667 = vmax.f32 %v4651, 0.0
    %v4668 = vmax.f32 %v4652, 0.0
    %v4669 = vmax.f32 %v4653, 0.0
    %v4670 = vmax.f32 %v4654, 0.0
    %v4671 = vmax.f32 %v4655, 0.0
    %v4672 = vmax.f32 %v4656, 0.0
    %v4673 = vmax.f32 %v4657, 0.0
    %v4674 = vmax.f32 %v4658, 0.0
    %v4675 = vmax.f32 %v4659, 0.0
    %v4676 = vmax.f32 %v4660, 0.0
    %v4677 = vmax.f32 %v4661, 0.0
    %v4678 = vsel %vm85, %v4662, 0.0
    %v4679 = vsel %vm85, %v4663, 0.0
    %v4680 = vadd.f32 %v4678, %v4679
    %v4681 = vsel %vm85, %v4664, 0.0
    %v4682 = vadd.f32 %v4680, %v4681
    %v4683 = vsel %vm85, %v4665, 0.0
    %v4684 = vadd.f32 %v4682, %v4683
    %v4685 = vsel %vm85, %v4666, 0.0
    %v4686 = vadd.f32 %v4684, %v4685
    %v4687 = vsel %vm85, %v4667, 0.0
    %v4688 = vadd.f32 %v4686, %v4687
    %v4689 = vsel %vm85, %v4668, 0.0
    %v4690 = vadd.f32 %v4688, %v4689
    %v4691 = vsel %vm85, %v4669, 0.0
    %v4692 = vadd.f32 %v4690, %v4691
    %v4693 = vsel %vm85, %v4670, 0.0
    %v4694 = vadd.f32 %v4692, %v4693
    %v4695 = vsel %vm85, %v4671, 0.0
    %v4696 = vadd.f32 %v4694, %v4695
    %v4697 = vsel %vm85, %v4672, 0.0
    %v4698 = vadd.f32 %v4696, %v4697
    %v4699 = vsel %vm85, %v4673, 0.0
    %v4700 = vadd.f32 %v4698, %v4699
    %v4701 = vsel %vm85, %v4674, 0.0
    %v4702 = vadd.f32 %v4700, %v4701
    %v4703 = vsel %vm85, %v4675, 0.0
    %v4704 = vadd.f32 %v4702, %v4703
    %v4705 = vsel %vm85, %v4676, 0.0
    %v4706 = vadd.f32 %v4704, %v4705
    %v4707 = vsel %vm85, %v4677, 0.0
    %v4708 = vadd.f32 %v4706, %v4707
    %v4709 = vrot.slane %v4708, 4
    %v4710 = vadd.f32 %v4708, %v4709
    %v4711 = vrot.slane %v4710, 2
    %v4712 = vadd.f32 %v4710, %v4711
    %v4713 = vrot.slane %v4712, 1
    %v4714 = vadd.f32 %v4712, %v4713
    %v4715 = vmul.f32 %v4714, 0.0078125
    %v4716 = vsub.f32 %v4662, %v4715
    %v4717 = vsub.f32 %v4663, %v4715
    %v4718 = vsub.f32 %v4664, %v4715
    %v4719 = vsub.f32 %v4665, %v4715
    %v4720 = vsub.f32 %v4666, %v4715
    %v4721 = vsub.f32 %v4667, %v4715
    %v4722 = vsub.f32 %v4668, %v4715
    %v4723 = vsub.f32 %v4669, %v4715
    %v4724 = vsub.f32 %v4670, %v4715
    %v4725 = vsub.f32 %v4671, %v4715
    %v4726 = vsub.f32 %v4672, %v4715
    %v4727 = vsub.f32 %v4673, %v4715
    %v4728 = vsub.f32 %v4674, %v4715
    %v4729 = vsub.f32 %v4675, %v4715
    %v4730 = vsub.f32 %v4676, %v4715
    %v4731 = vsub.f32 %v4677, %v4715
    %v4732 = vmul.f32 %v4716, %v4716
    %v4733 = vmul.f32 %v4717, %v4717
    %v4734 = vmul.f32 %v4718, %v4718
    %v4735 = vmul.f32 %v4719, %v4719
    %v4736 = vmul.f32 %v4720, %v4720
    %v4737 = vmul.f32 %v4721, %v4721
    %v4738 = vmul.f32 %v4722, %v4722
    %v4739 = vmul.f32 %v4723, %v4723
    %v4740 = vmul.f32 %v4724, %v4724
    %v4741 = vmul.f32 %v4725, %v4725
    %v4742 = vmul.f32 %v4726, %v4726
    %v4743 = vmul.f32 %v4727, %v4727
    %v4744 = vmul.f32 %v4728, %v4728
    %v4745 = vmul.f32 %v4729, %v4729
    %v4746 = vmul.f32 %v4730, %v4730
    %v4747 = vmul.f32 %v4731, %v4731
    %v4748 = vsel %vm85, %v4732, 0.0
    %v4749 = vsel %vm85, %v4733, 0.0
    %v4750 = vadd.f32 %v4748, %v4749
    %v4751 = vsel %vm85, %v4734, 0.0
    %v4752 = vadd.f32 %v4750, %v4751
    %v4753 = vsel %vm85, %v4735, 0.0
    %v4754 = vadd.f32 %v4752, %v4753
    %v4755 = vsel %vm85, %v4736, 0.0
    %v4756 = vadd.f32 %v4754, %v4755
    %v4757 = vsel %vm85, %v4737, 0.0
    %v4758 = vadd.f32 %v4756, %v4757
    %v4759 = vsel %vm85, %v4738, 0.0
    %v4760 = vadd.f32 %v4758, %v4759
    %v4761 = vsel %vm85, %v4739, 0.0
    %v4762 = vadd.f32 %v4760, %v4761
    %v4763 = vsel %vm85, %v4740, 0.0
    %v4764 = vadd.f32 %v4762, %v4763
    %v4765 = vsel %vm85, %v4741, 0.0
    %v4766 = vadd.f32 %v4764, %v4765
    %v4767 = vsel %vm85, %v4742, 0.0
    %v4768 = vadd.f32 %v4766, %v4767
    %v4769 = vsel %vm85, %v4743, 0.0
    %v4770 = vadd.f32 %v4768, %v4769
    %v4771 = vsel %vm85, %v4744, 0.0
    %v4772 = vadd.f32 %v4770, %v4771
    %v4773 = vsel %vm85, %v4745, 0.0
    %v4774 = vadd.f32 %v4772, %v4773
    %v4775 = vsel %vm85, %v4746, 0.0
    %v4776 = vadd.f32 %v4774, %v4775
    %v4777 = vsel %vm85, %v4747, 0.0
    %v4778 = vadd.f32 %v4776, %v4777
    %v4779 = vrot.slane %v4778, 4
    %v4780 = vadd.f32 %v4778, %v4779
    %v4781 = vrot.slane %v4780, 2
    %v4782 = vadd.f32 %v4780, %v4781
    %v4783 = vrot.slane %v4782, 1
    %v4784 = vadd.f32 %v4782, %v4783
    %v4785 = vmul.f32 %v4784, 0.0078125
    %v4786 = vadd.f32 %v4785, 1e-05
    %v4787 = vrsqrt.pop %v4786
    %v4788 = vmul.f32 %v4716, %v4787
    %v4789 = vmul.f32 %v4717, %v4787
    %v4790 = vmul.f32 %v4718, %v4787
    %v4791 = vmul.f32 %v4719, %v4787
    %v4792 = vmul.f32 %v4720, %v4787
    %v4793 = vmul.f32 %v4721, %v4787
    %v4794 = vmul.f32 %v4722, %v4787
    %v4795 = vmul.f32 %v4723, %v4787
    %v4796 = vmul.f32 %v4724, %v4787
    %v4797 = vmul.f32 %v4725, %v4787
    %v4798 = vmul.f32 %v4726, %v4787
    %v4799 = vmul.f32 %v4727, %v4787
    %v4800 = vmul.f32 %v4728, %v4787
    %v4801 = vmul.f32 %v4729, %v4787
    %v4802 = vmul.f32 %v4730, %v4787
    %v4803 = vmul.f32 %v4731, %v4787
    %v4804 = vld [vmem:[%s7] sm:$0x1]
    %v4806 = vlaneseq
    %v4807 = vshrl.u32 %v4806, 7
    %v4808 = vsub.s32 0, %v4807
    %v4809 = vrot.slane %v4804, %v4808
    %v4811 = vmul.f32 %v4788, %v4809
    %v4812 = vmul.f32 %v4789, %v4809
    %v4813 = vmul.f32 %v4790, %v4809
    %v4814 = vmul.f32 %v4791, %v4809
    %v4815 = vmul.f32 %v4792, %v4809
    %v4816 = vmul.f32 %v4793, %v4809
    %v4817 = vmul.f32 %v4794, %v4809
    %v4818 = vmul.f32 %v4795, %v4809
    %v4819 = vmul.f32 %v4796, %v4809
    %v4820 = vmul.f32 %v4797, %v4809
    %v4821 = vmul.f32 %v4798, %v4809
    %v4822 = vmul.f32 %v4799, %v4809
    %v4823 = vmul.f32 %v4800, %v4809
    %v4824 = vmul.f32 %v4801, %v4809
    %v4825 = vmul.f32 %v4802, %v4809
    %v4826 = vmul.f32 %v4803, %v4809
    %v4827 = vld [vmem:[%s8] sm:$0x1]
    %v4829 = vlaneseq
    %v4830 = vshrl.u32 %v4829, 7
    %v4831 = vsub.s32 0, %v4830
    %v4832 = vrot.slane %v4827, %v4831
    %v4834 = vadd.f32 %v4811, %v4832
    %v4835 = vadd.f32 %v4812, %v4832
    %v4836 = vadd.f32 %v4813, %v4832
    %v4837 = vadd.f32 %v4814, %v4832
    %v4838 = vadd.f32 %v4815, %v4832
    %v4839 = vadd.f32 %v4816, %v4832
    %v4840 = vadd.f32 %v4817, %v4832
    %v4841 = vadd.f32 %v4818, %v4832
    %v4842 = vadd.f32 %v4819, %v4832
    %v4843 = vadd.f32 %v4820, %v4832
    %v4844 = vadd.f32 %v4821, %v4832
    %v4845 = vadd.f32 %v4822, %v4832
    %v4846 = vadd.f32 %v4823, %v4832
    %v4847 = vadd.f32 %v4824, %v4832
    %v4848 = vadd.f32 %v4825, %v4832
    %v4849 = vadd.f32 %v4826, %v4832
    %4850 = vxpose.xlu0.b32.start [1/16] %v4834, 128
    %4851 = vxpose.xlu0.b32.cont [2/16] %v4835, 128
    %4852 = vxpose.xlu0.b32.cont [3/16] %v4836, 128
    %4853 = vxpose.xlu0.b32.cont [4/16] %v4837, 128
    %4854 = vxpose.xlu0.b32.cont [5/16] %v4838, 128
    %4855 = vxpose.xlu0.b32.cont [6/16] %v4839, 128
    %4856 = vxpose.xlu0.b32.cont [7/16] %v4840, 128
    %4857 = vxpose.xlu0.b32.cont [8/16] %v4841, 128
    %4858 = vxpose.xlu0.b32.cont [9/16] %v4842, 128
    %4859 = vxpose.xlu0.b32.cont [10/16] %v4843, 128
    %4860 = vxpose.xlu0.b32.cont [11/16] %v4844, 128
    %4861 = vxpose.xlu0.b32.cont [12/16] %v4845, 128
    %4862 = vxpose.xlu0.b32.cont [13/16] %v4846, 128
    %4863 = vxpose.xlu0.b32.cont [14/16] %v4847, 128
    %4864 = vxpose.xlu0.b32.cont [15/16] %v4848, 128
    %4865 = vxpose.xlu0.b32.end [16/16] %v4849, 128
    %v4866 = vpop.trf.xlu0
    %v4867 = vpop.trf.xlu0
    %v4868 = vpop.trf.xlu0
    %v4869 = vpop.trf.xlu0
    %v4870 = vpop.trf.xlu0
    %v4871 = vpop.trf.xlu0
    %v4872 = vpop.trf.xlu0
    %v4873 = vpop.trf.xlu0
    %v4874 = vpop.trf.xlu0
    %v4875 = vpop.trf.xlu0
    %v4876 = vpop.trf.xlu0
    %v4877 = vpop.trf.xlu0
    %v4878 = vpop.trf.xlu0
    %v4879 = vpop.trf.xlu0
    %v4880 = vpop.trf.xlu0
    %v4881 = vpop.trf.xlu0
    %4882 = vst [vmem:[#allocation4] sm:$0xff] %v4866
    // Predicated region
    $region38: #{tpu_custom_call.1} parent=1 // pred_check
      _
    $region39: #{tpu_custom_call.1} parent=1 // pred_check_branch
      %4884 = sbr.rel (0) target = $region41
    $region40: #{tpu_custom_call.1} parent=1 // pred_region
      %s4886 = ssub.s32 128, 128
      %4887 = vsyncadd [#allocation5], %s4886
      %s4889 = sshll.u32 [#allocation4], 4
      %s4890 = int_to_ptr.vmem [resolvable:$true] %s4889
      %4892 = dma.vmem_to_hbm [thread:$0]  %s4890, 128, %s9, [#allocation5]
    $region41: #{tpu_custom_call.1} parent=1 // pred_fallthru
      _
    // Predicated region
    $region42: #{tpu_custom_call.1} parent=1 // pred_check
      _
    $region43: #{tpu_custom_call.1} parent=1 // pred_check_branch
      %4894 = sbr.rel (0) target = $region45
    $region44: #{tpu_custom_call.1} parent=1 // pred_region
      %4895 = dma.done [#allocation5], 128
    $region45: #{tpu_custom_call.1} parent=1 // pred_fallthru
      _
    %4896 = vsyncpa [#allocation5], 1

</llo_original>
